<compile_context>
chip_gen: v6e
topology: v6e:2x2x1
jax: 0.10.0
libtpu: 0.0.40
codegen_flags: <defaults>
</compile_context>

<pallas_src>
import jax
import jax.numpy as jnp
from jax.experimental import pallas as pl
from jax.experimental.pallas import tpu as pltpu

# ---------------- small hyperparameters (consistent with SimpleViT) ----------
IMAGE     = 16
PATCH     = 4
CHANNELS  = 3
DIM       = 128          # must be multiple of 4 for the sincos posemb
DEPTH     = 2
HEADS     = 4
DIM_HEAD  = 32
INNER     = HEADS * DIM_HEAD     # 128
MLP       = 128
CLASSES   = 10
B         = 2

GRID_H    = IMAGE // PATCH
GRID_W    = IMAGE // PATCH
N         = GRID_H * GRID_W            # 16 patch tokens
BN        = B * N                      # 32 rows fed to every matmul
PATCH_DIM = CHANNELS * PATCH * PATCH   # 48
PK        = 128                        # patch_dim zero-padded to lane width
CPAD      = 128                        # num_classes padded to lane width
SCALE     = DIM_HEAD ** -0.5
EPS       = 1e-5                       # torch.nn.LayerNorm default

# ---- small f32 slab layout (rows of width 128) -------------------------------
ROW_PE_B   = 0                          # patch-embedding bias
ROW_POS    = 1                          # BN rows: posemb tiled over batch
ROW_LAYER0 = 1 + BN                     # per layer: a_lnw, a_lnb, f_lnw, f_lnb, b1, b2
ROWS_PER_L = 6
ROW_HEAD   = ROW_LAYER0 + DEPTH * ROWS_PER_L   # h_lnw, h_lnb, h_b
S_ROWS     = ROW_HEAD + 3

# ---- big bf16 slab layout (128-row blocks of width 128) ----------------------
BLK_PE     = 0                          # patch-embedding weight (48->128 rows, zero pad)
BLK_LAYER0 = 1                          # per layer: Wq, Wk, Wv, Wo, W1, W2
BLKS_PER_L = 6
BLK_HEAD   = 1 + DEPTH * BLKS_PER_L     # classifier weight (10->128 cols, zero pad)
W_BLKS     = BLK_HEAD + 1


# ----------------------------- in-kernel helpers -----------------------------
def _layernorm(x, w, b):
    mean = jnp.mean(x, axis=-1, keepdims=True)
    var = jnp.mean((x - mean) ** 2, axis=-1, keepdims=True)
    return (x - mean) * jax.lax.rsqrt(var + EPS) * w + b


def _gelu_exact(x):
    # torch.nn.GELU() default is the exact erf formulation.
    return 0.5 * x * (1.0 + jax.lax.erf(x * 0.7071067811865476))


# ----------------------------- fused Pallas kernel ----------------------------
def vit_fused_kernel(p_ref, s_ref, w_ref, o_ref):
    # p_ref: (BN, PK)        f32  lane-padded patches
    # s_ref: (S_ROWS, 128)   f32  small parameters (biases, LN, posemb)
    # w_ref: (W_BLKS*128,128) bf16 big matrices
    # o_ref: (B, CPAD)       f32  lane-padded logits

    def wblk(i):                                 # (128, 128) bf16, static slice
        return w_ref[i * 128:(i + 1) * 128, :]

    def srow(i, n=1):                            # (n, 128) f32, static slice
        return s_ref[i:i + n, :]

    # ---- patch embedding + positional embedding -----------------------------
    x = jnp.dot(p_ref[...].astype(jnp.bfloat16), wblk(BLK_PE),
                preferred_element_type=jnp.float32)               # (BN, DIM) f32
    x = x + srow(ROW_PE_B) + srow(ROW_POS, BN)                    # bias + tiled posemb

    # ---- transformer layers (statically unrolled over DEPTH) ----------------
    for l in range(DEPTH):
        sb = ROW_LAYER0 + ROWS_PER_L * l
        wb = BLK_LAYER0 + BLKS_PER_L * l

        # --- attention block ---
        xn = _layernorm(x, srow(sb + 0), srow(sb + 1)).astype(jnp.bfloat16)
        q = jnp.dot(xn, wblk(wb + 0), preferred_element_type=jnp.float32)  # (BN, INNER)
        k = jnp.dot(xn, wblk(wb + 1), preferred_element_type=jnp.float32)
        v = jnp.dot(xn, wblk(wb + 2), preferred_element_type=jnp.float32)

        # fold heads into a single einsum batch dim: (H*B, N, d), batch g = h*B + b
        def to_heads(t):
            t = jnp.concatenate(
                [t[:, h * DIM_HEAD:(h + 1) * DIM_HEAD] for h in range(HEADS)], axis=0)
            return t.reshape(HEADS * B, N, DIM_HEAD).astype(jnp.bfloat16)

        qh, kh, vh = to_heads(q), to_heads(k), to_heads(v)

        dots = jnp.einsum('gnd,gmd->gnm', qh, kh,
                          preferred_element_type=jnp.float32) * SCALE      # (8,16,16)
        dots = dots - jnp.max(dots, axis=-1, keepdims=True)
        e = jnp.exp(dots)
        attn = e * pl.reciprocal(jnp.sum(e, axis=-1, keepdims=True), approx=True)
        oh = jnp.einsum('gnm,gmd->gnd', attn.astype(jnp.bfloat16), vh,
                        preferred_element_type=jnp.float32)                # (8,16,32)

        # back to (BN, INNER) = 'b h n d -> b n (h d)', then ONE Wo matmul
        oh = oh.reshape(HEADS, BN, DIM_HEAD)
        oh = jnp.concatenate([oh[h] for h in range(HEADS)], axis=-1)       # (BN, 128)
        x = x + jnp.dot(oh.astype(jnp.bfloat16), wblk(wb + 3),
                        preferred_element_type=jnp.float32)                # residual

        # --- feed-forward block ---
        xn = _layernorm(x, srow(sb + 2), srow(sb + 3))
        h1 = jnp.dot(xn.astype(jnp.bfloat16), wblk(wb + 4),
                     preferred_element_type=jnp.float32) + srow(sb + 4)
        h1 = _gelu_exact(h1)
        y = jnp.dot(h1.astype(jnp.bfloat16), wblk(wb + 5),
                    preferred_element_type=jnp.float32) + srow(sb + 5)
        x = x + y                                                          # residual

    # ---- head: mean over tokens -> LayerNorm -> Linear (lane-dense output) --
    xm = jnp.sum(x.reshape(B, N, DIM), axis=1) * (1.0 / N)                 # (B, DIM)
    xn = _layernorm(xm, srow(ROW_HEAD + 0), srow(ROW_HEAD + 1))
    o_ref[...] = jnp.dot(xn.astype(jnp.bfloat16), wblk(BLK_HEAD),
                         preferred_element_type=jnp.float32) + srow(ROW_HEAD + 2)


# ----------------------------- pallas_call wrapper ----------------------------
def vit_fused(patches, small_slab, big_slab):
    vmem = pltpu.MemorySpace.VMEM
    return pl.pallas_call(
        vit_fused_kernel,
        out_shape=jax.ShapeDtypeStruct((B, CPAD), jnp.float32),
        in_specs=[pl.BlockSpec(memory_space=vmem)] * 3,     # whole arrays resident in VMEM
        out_specs=pl.BlockSpec(memory_space=vmem),
    )(patches, small_slab, big_slab)


# ----------------------------- one-time weight packing ------------------------
def posemb_sincos_2d(h, w, dim, temperature=10000.0):
    y, x = jnp.meshgrid(jnp.arange(h), jnp.arange(w), indexing="ij")
    omega = jnp.arange(dim // 4, dtype=jnp.float32) / (dim // 4 - 1)
    omega = 1.0 / (temperature ** omega)
    y = y.reshape(-1)[:, None].astype(jnp.float32) * omega[None, :]
    x = x.reshape(-1)[:, None].astype(jnp.float32) * omega[None, :]
    return jnp.concatenate(
        [jnp.sin(x), jnp.cos(x), jnp.sin(y), jnp.cos(y)], axis=1).astype(jnp.float32)


def init_params(key):
    def nrm(k, shape, scale=0.02):
        return scale * jax.random.normal(k, shape, dtype=jnp.float32)

    keys = iter(jax.random.split(key, 64))
    params = {
        "pe_w": nrm(next(keys), (PATCH_DIM, DIM)),
        "pe_b": jnp.zeros((1, DIM), jnp.float32),
        "layers": [],
        "head_ln_w": jnp.ones((1, DIM), jnp.float32),
        "head_ln_b": jnp.zeros((1, DIM), jnp.float32),
        "head_w": nrm(next(keys), (DIM, CLASSES)),
        "head_b": jnp.zeros((1, CLASSES), jnp.float32),
    }
    for _ in range(DEPTH):
        params["layers"].append({
            "attn_ln_w": jnp.ones((1, DIM), jnp.float32),
            "attn_ln_b": jnp.zeros((1, DIM), jnp.float32),
            "wqkv": nrm(next(keys), (DIM, 3 * INNER)),
            "wo": nrm(next(keys), (INNER, DIM)),
            "ff_ln_w": jnp.ones((1, DIM), jnp.float32),
            "ff_ln_b": jnp.zeros((1, DIM), jnp.float32),
            "w1": nrm(next(keys), (DIM, MLP)),
            "b1": jnp.zeros((1, MLP), jnp.float32),
            "w2": nrm(next(keys), (MLP, DIM)),
            "b2": jnp.zeros((1, DIM), jnp.float32),
        })
    return params


def pack_params(params):
    """One-time prep (hoisted out of the jitted forward): build the two weight slabs."""
    pos = posemb_sincos_2d(GRID_H, GRID_W, DIM)                     # (N, DIM)
    pos_bn = jnp.tile(pos, (B, 1))                                  # (BN, DIM)

    rows = [params["pe_b"], pos_bn]
    for lyr in params["layers"]:
        rows += [lyr["attn_ln_w"], lyr["attn_ln_b"],
                 lyr["ff_ln_w"], lyr["ff_ln_b"], lyr["b1"], lyr["b2"]]
    rows += [params["head_ln_w"], params["head_ln_b"],
             jnp.pad(params["head_b"], ((0, 0), (0, CPAD - CLASSES)))]
    small = jnp.concatenate(rows, axis=0).astype(jnp.float32)
    assert small.shape == (S_ROWS, DIM), small.shape

    blks = [jnp.pad(params["pe_w"], ((0, PK - PATCH_DIM), (0, 0)))]
    for lyr in params["layers"]:
        wqkv = lyr["wqkv"]
        blks += [wqkv[:, 0:INNER], wqkv[:, INNER:2 * INNER], wqkv[:, 2 * INNER:3 * INNER],
                 lyr["wo"], lyr["w1"], lyr["w2"]]
    blks += [jnp.pad(params["head_w"], ((0, 0), (0, CPAD - CLASSES)))]
    big = jnp.concatenate(blks, axis=0).astype(jnp.bfloat16)
    assert big.shape == (W_BLKS * 128, 128), big.shape
    return small, big


# ----------------------------- jitted forward ---------------------------------
@jax.jit
def simple_vit_forward(img, small_slab, big_slab):
    # img: (B, C, H, W) NCHW, matching the PyTorch input convention.
    # Only image-dependent prep stays in the per-call path.
    Bsz, C, H, W = img.shape
    gh, gw = H // PATCH, W // PATCH
    # einops 'b c (h p1) (w p2) -> b (h w) (p1 p2 c)'  (c fastest)
    p = img.reshape(Bsz, C, gh, PATCH, gw, PATCH)
    p = jnp.transpose(p, (0, 2, 4, 3, 5, 1))                 # (B, gh, gw, p1, p2, C)
    p = p.reshape(Bsz * gh * gw, PATCH * PATCH * C).astype(jnp.float32)
    p = jnp.pad(p, ((0, 0), (0, PK - PATCH_DIM)))            # lane-pad K to 128
    out = vit_fused(p, small_slab, big_slab)                  # (B, CPAD)
    return out[:, :CLASSES]


if __name__ == "__main__":
    key = jax.random.PRNGKey(0)
    k_img, k_par = jax.random.split(key)
    img = jax.random.normal(k_img, (B, CHANNELS, IMAGE, IMAGE), dtype=jnp.float32)

    params = init_params(k_par)
    small_slab, big_slab = pack_params(params)               # one-time packing
    jax.block_until_ready((small_slab, big_slab))

    out = simple_vit_forward(img, small_slab, big_slab)
    out = jax.block_until_ready(out)

    assert out.shape == (B, CLASSES), out.shape
    assert bool(jnp.all(jnp.isfinite(out)))
    print("KERNEL_OK")
</pallas_src>

<mosaic_0001>
module attributes {stable_mosaic.version = 11 : i64} {
  func.func @vit_fused_kernel(%arg0: memref<32x128xf32, #tpu.memory_space<vmem>>, %arg1: memref<48x128xf32, #tpu.memory_space<vmem>>, %arg2: memref<1792x128xbf16, #tpu.memory_space<vmem>>, %arg3: memref<2x128xf32, #tpu.memory_space<vmem>>) attributes {dimension_semantics = [], scalar_prefetch = 0 : i64, scratch_operands = 0 : i64, tpu.core_type = #tpu.core_type<tc>} {
    %c0 = arith.constant 0 : index
    %c0_0 = arith.constant 0 : index
    %0 = vector.load %arg0[%c0, %c0_0] : memref<32x128xf32, #tpu.memory_space<vmem>>, vector<32x128xf32>
    %1 = arith.truncf %0 : vector<32x128xf32> to vector<32x128xbf16>
    %c0_1 = arith.constant 0 : index
    %c0_2 = arith.constant 0 : index
    %2 = vector.load %arg2[%c0_1, %c0_2] : memref<1792x128xbf16, #tpu.memory_space<vmem>>, vector<128x128xbf16>
    %cst = arith.constant dense<0.000000e+00> : vector<32x128xf32>
    %3 = tpu.matmul %1, %2, %cst {dimension_numbers = #tpu.dot_dimension_numbers<[1], [0], [0], [1], [0, 0, 1, 1], [], []>} : vector<32x128xbf16>, vector<128x128xbf16>, vector<32x128xf32> -> vector<32x128xf32>
    %c0_3 = arith.constant 0 : index
    %c0_4 = arith.constant 0 : index
    %4 = vector.load %arg1[%c0_3, %c0_4] : memref<48x128xf32, #tpu.memory_space<vmem>>, vector<1x128xf32>
    %5 = vector.broadcast %4 : vector<1x128xf32> to vector<32x128xf32>
    %6 = arith.addf %3, %5 : vector<32x128xf32>
    %c1 = arith.constant 1 : index
    %c0_5 = arith.constant 0 : index
    %7 = vector.load %arg1[%c1, %c0_5] : memref<48x128xf32, #tpu.memory_space<vmem>>, vector<32x128xf32>
    %8 = arith.addf %6, %7 : vector<32x128xf32>
    %c33 = arith.constant 33 : index
    %c0_6 = arith.constant 0 : index
    %9 = vector.load %arg1[%c33, %c0_6] : memref<48x128xf32, #tpu.memory_space<vmem>>, vector<1x128xf32>
    %c34 = arith.constant 34 : index
    %c0_7 = arith.constant 0 : index
    %10 = vector.load %arg1[%c34, %c0_7] : memref<48x128xf32, #tpu.memory_space<vmem>>, vector<1x128xf32>
    %cst_8 = arith.constant dense<0.000000e+00> : vector<32xf32>
    %11 = vector.multi_reduction <add>, %8, %cst_8 [1] : vector<32x128xf32> to vector<32xf32>
    %12 = vector.shape_cast %11 : vector<32xf32> to vector<32x1xf32>
    %cst_9 = arith.constant 1.280000e+02 : f32
    %13 = vector.broadcast %cst_9 : f32 to vector<32x1xf32>
    %14 = arith.divf %12, %13 : vector<32x1xf32>
    %15 = vector.broadcast %14 : vector<32x1xf32> to vector<32x128xf32>
    %16 = arith.subf %8, %15 : vector<32x128xf32>
    %17 = arith.mulf %16, %16 : vector<32x128xf32>
    %cst_10 = arith.constant dense<0.000000e+00> : vector<32xf32>
    %18 = vector.multi_reduction <add>, %17, %cst_10 [1] : vector<32x128xf32> to vector<32xf32>
    %19 = vector.shape_cast %18 : vector<32xf32> to vector<32x1xf32>
    %cst_11 = arith.constant 1.280000e+02 : f32
    %20 = vector.broadcast %cst_11 : f32 to vector<32x1xf32>
    %21 = arith.divf %19, %20 : vector<32x1xf32>
    %22 = vector.broadcast %14 : vector<32x1xf32> to vector<32x128xf32>
    %23 = arith.subf %8, %22 : vector<32x128xf32>
    %cst_12 = arith.constant 9.99999974E-6 : f32
    %24 = vector.broadcast %cst_12 : f32 to vector<32x1xf32>
    %25 = arith.addf %21, %24 : vector<32x1xf32>
    %26 = math.rsqrt %25 : vector<32x1xf32>
    %27 = vector.broadcast %26 : vector<32x1xf32> to vector<32x128xf32>
    %28 = arith.mulf %23, %27 : vector<32x128xf32>
    %29 = vector.broadcast %9 : vector<1x128xf32> to vector<32x128xf32>
    %30 = arith.mulf %28, %29 : vector<32x128xf32>
    %31 = vector.broadcast %10 : vector<1x128xf32> to vector<32x128xf32>
    %32 = arith.addf %30, %31 : vector<32x128xf32>
    %33 = arith.truncf %32 : vector<32x128xf32> to vector<32x128xbf16>
    %c128 = arith.constant 128 : index
    %c0_13 = arith.constant 0 : index
    %34 = vector.load %arg2[%c128, %c0_13] : memref<1792x128xbf16, #tpu.memory_space<vmem>>, vector<128x128xbf16>
    %cst_14 = arith.constant dense<0.000000e+00> : vector<32x128xf32>
    %35 = tpu.matmul %33, %34, %cst_14 {dimension_numbers = #tpu.dot_dimension_numbers<[1], [0], [0], [1], [0, 0, 1, 1], [], []>} : vector<32x128xbf16>, vector<128x128xbf16>, vector<32x128xf32> -> vector<32x128xf32>
    %c256 = arith.constant 256 : index
    %c0_15 = arith.constant 0 : index
    %36 = vector.load %arg2[%c256, %c0_15] : memref<1792x128xbf16, #tpu.memory_space<vmem>>, vector<128x128xbf16>
    %cst_16 = arith.constant dense<0.000000e+00> : vector<32x128xf32>
    %37 = tpu.matmul %33, %36, %cst_16 {dimension_numbers = #tpu.dot_dimension_numbers<[1], [0], [0], [1], [0, 0, 1, 1], [], []>} : vector<32x128xbf16>, vector<128x128xbf16>, vector<32x128xf32> -> vector<32x128xf32>
    %c384 = arith.constant 384 : index
    %c0_17 = arith.constant 0 : index
    %38 = vector.load %arg2[%c384, %c0_17] : memref<1792x128xbf16, #tpu.memory_space<vmem>>, vector<128x128xbf16>
    %cst_18 = arith.constant dense<0.000000e+00> : vector<32x128xf32>
    %39 = tpu.matmul %33, %38, %cst_18 {dimension_numbers = #tpu.dot_dimension_numbers<[1], [0], [0], [1], [0, 0, 1, 1], [], []>} : vector<32x128xbf16>, vector<128x128xbf16>, vector<32x128xf32> -> vector<32x128xf32>
    %40 = vector.extract_strided_slice %35 {offsets = [0, 0], sizes = [32, 32], strides = [1, 1]} : vector<32x128xf32> to vector<32x32xf32>
    %41 = vector.extract_strided_slice %35 {offsets = [0, 32], sizes = [32, 32], strides = [1, 1]} : vector<32x128xf32> to vector<32x32xf32>
    %42 = vector.extract_strided_slice %35 {offsets = [0, 64], sizes = [32, 32], strides = [1, 1]} : vector<32x128xf32> to vector<32x32xf32>
    %43 = vector.extract_strided_slice %35 {offsets = [0, 96], sizes = [32, 32], strides = [1, 1]} : vector<32x128xf32> to vector<32x32xf32>
    %44 = tpu.concatenate %40, %41, %42, %43 in 0 : vector<32x32xf32>, vector<32x32xf32>, vector<32x32xf32>, vector<32x32xf32> -> vector<128x32xf32>
    %45 = vector.shape_cast %44 : vector<128x32xf32> to vector<8x16x32xf32>
    %46 = arith.truncf %45 : vector<8x16x32xf32> to vector<8x16x32xbf16>
    %47 = vector.extract_strided_slice %37 {offsets = [0, 0], sizes = [32, 32], strides = [1, 1]} : vector<32x128xf32> to vector<32x32xf32>
    %48 = vector.extract_strided_slice %37 {offsets = [0, 32], sizes = [32, 32], strides = [1, 1]} : vector<32x128xf32> to vector<32x32xf32>
    %49 = vector.extract_strided_slice %37 {offsets = [0, 64], sizes = [32, 32], strides = [1, 1]} : vector<32x128xf32> to vector<32x32xf32>
    %50 = vector.extract_strided_slice %37 {offsets = [0, 96], sizes = [32, 32], strides = [1, 1]} : vector<32x128xf32> to vector<32x32xf32>
    %51 = tpu.concatenate %47, %48, %49, %50 in 0 : vector<32x32xf32>, vector<32x32xf32>, vector<32x32xf32>, vector<32x32xf32> -> vector<128x32xf32>
    %52 = vector.shape_cast %51 : vector<128x32xf32> to vector<8x16x32xf32>
    %53 = arith.truncf %52 : vector<8x16x32xf32> to vector<8x16x32xbf16>
    %54 = vector.extract_strided_slice %39 {offsets = [0, 0], sizes = [32, 32], strides = [1, 1]} : vector<32x128xf32> to vector<32x32xf32>
    %55 = vector.extract_strided_slice %39 {offsets = [0, 32], sizes = [32, 32], strides = [1, 1]} : vector<32x128xf32> to vector<32x32xf32>
    %56 = vector.extract_strided_slice %39 {offsets = [0, 64], sizes = [32, 32], strides = [1, 1]} : vector<32x128xf32> to vector<32x32xf32>
    %57 = vector.extract_strided_slice %39 {offsets = [0, 96], sizes = [32, 32], strides = [1, 1]} : vector<32x128xf32> to vector<32x32xf32>
    %58 = tpu.concatenate %54, %55, %56, %57 in 0 : vector<32x32xf32>, vector<32x32xf32>, vector<32x32xf32>, vector<32x32xf32> -> vector<128x32xf32>
    %59 = vector.shape_cast %58 : vector<128x32xf32> to vector<8x16x32xf32>
    %60 = arith.truncf %59 : vector<8x16x32xf32> to vector<8x16x32xbf16>
    "tpu.trace_start"() <{level = 10 : i32, message = "gnd,gmd->gnm"}> : () -> ()
    %cst_19 = arith.constant dense<0.000000e+00> : vector<8x16x16xf32>
    %61 = tpu.matmul %46, %53, %cst_19 {dimension_numbers = #tpu.dot_dimension_numbers<[2], [2], [1], [1], [0, 0, 0, 1, 1, 1], [0], [0]>} : vector<8x16x32xbf16>, vector<8x16x32xbf16>, vector<8x16x16xf32> -> vector<8x16x16xf32>
    "tpu.trace_stop"() : () -> ()
    %cst_20 = arith.constant 0.176776692 : f32
    %62 = vector.broadcast %cst_20 : f32 to vector<8x16x16xf32>
    %63 = arith.mulf %61, %62 : vector<8x16x16xf32>
    %cst_21 = arith.constant dense<0xFF800000> : vector<8x16xf32>
    %64 = vector.multi_reduction <maximumf>, %63, %cst_21 [2] : vector<8x16x16xf32> to vector<8x16xf32>
    %65 = vector.shape_cast %64 : vector<8x16xf32> to vector<8x16x1xf32>
    %66 = vector.broadcast %65 : vector<8x16x1xf32> to vector<8x16x16xf32>
    %67 = arith.subf %63, %66 : vector<8x16x16xf32>
    %68 = math.exp %67 : vector<8x16x16xf32>
    %cst_22 = arith.constant dense<0.000000e+00> : vector<8x16xf32>
    %69 = vector.multi_reduction <add>, %68, %cst_22 [2] : vector<8x16x16xf32> to vector<8x16xf32>
    %70 = vector.shape_cast %69 : vector<8x16xf32> to vector<8x16x1xf32>
    %71 = tpu.reciprocal %70 {approx = true} : vector<8x16x1xf32> -> vector<8x16x1xf32>
    %72 = vector.broadcast %71 : vector<8x16x1xf32> to vector<8x16x16xf32>
    %73 = arith.mulf %68, %72 : vector<8x16x16xf32>
    %74 = arith.truncf %73 : vector<8x16x16xf32> to vector<8x16x16xbf16>
    "tpu.trace_start"() <{level = 10 : i32, message = "gnm,gmd->gnd"}> : () -> ()
    %cst_23 = arith.constant dense<0.000000e+00> : vector<8x16x32xf32>
    %75 = tpu.matmul %74, %60, %cst_23 {dimension_numbers = #tpu.dot_dimension_numbers<[2], [1], [1], [2], [0, 0, 0, 1, 1, 2], [0], [0]>} : vector<8x16x16xbf16>, vector<8x16x32xbf16>, vector<8x16x32xf32> -> vector<8x16x32xf32>
    "tpu.trace_stop"() : () -> ()
    %76 = vector.shape_cast %75 : vector<8x16x32xf32> to vector<4x32x32xf32>
    %77 = vector.extract_strided_slice %76 {offsets = [0, 0, 0], sizes = [1, 32, 32], strides = [1, 1, 1]} : vector<4x32x32xf32> to vector<1x32x32xf32>
    %78 = vector.shape_cast %77 : vector<1x32x32xf32> to vector<32x32xf32>
    %79 = vector.extract_strided_slice %76 {offsets = [1, 0, 0], sizes = [1, 32, 32], strides = [1, 1, 1]} : vector<4x32x32xf32> to vector<1x32x32xf32>
    %80 = vector.shape_cast %79 : vector<1x32x32xf32> to vector<32x32xf32>
    %81 = vector.extract_strided_slice %76 {offsets = [2, 0, 0], sizes = [1, 32, 32], strides = [1, 1, 1]} : vector<4x32x32xf32> to vector<1x32x32xf32>
    %82 = vector.shape_cast %81 : vector<1x32x32xf32> to vector<32x32xf32>
    %83 = vector.extract_strided_slice %76 {offsets = [3, 0, 0], sizes = [1, 32, 32], strides = [1, 1, 1]} : vector<4x32x32xf32> to vector<1x32x32xf32>
    %84 = vector.shape_cast %83 : vector<1x32x32xf32> to vector<32x32xf32>
    %85 = tpu.concatenate %78, %80, %82, %84 in 1 : vector<32x32xf32>, vector<32x32xf32>, vector<32x32xf32>, vector<32x32xf32> -> vector<32x128xf32>
    %86 = arith.truncf %85 : vector<32x128xf32> to vector<32x128xbf16>
    %c512 = arith.constant 512 : index
    %c0_24 = arith.constant 0 : index
    %87 = vector.load %arg2[%c512, %c0_24] : memref<1792x128xbf16, #tpu.memory_space<vmem>>, vector<128x128xbf16>
    %cst_25 = arith.constant dense<0.000000e+00> : vector<32x128xf32>
    %88 = tpu.matmul %86, %87, %cst_25 {dimension_numbers = #tpu.dot_dimension_numbers<[1], [0], [0], [1], [0, 0, 1, 1], [], []>} : vector<32x128xbf16>, vector<128x128xbf16>, vector<32x128xf32> -> vector<32x128xf32>
    %89 = arith.addf %8, %88 : vector<32x128xf32>
    %c35 = arith.constant 35 : index
    %c0_26 = arith.constant 0 : index
    %90 = vector.load %arg1[%c35, %c0_26] : memref<48x128xf32, #tpu.memory_space<vmem>>, vector<1x128xf32>
    %c36 = arith.constant 36 : index
    %c0_27 = arith.constant 0 : index
    %91 = vector.load %arg1[%c36, %c0_27] : memref<48x128xf32, #tpu.memory_space<vmem>>, vector<1x128xf32>
    %cst_28 = arith.constant dense<0.000000e+00> : vector<32xf32>
    %92 = vector.multi_reduction <add>, %89, %cst_28 [1] : vector<32x128xf32> to vector<32xf32>
    %93 = vector.shape_cast %92 : vector<32xf32> to vector<32x1xf32>
    %cst_29 = arith.constant 1.280000e+02 : f32
    %94 = vector.broadcast %cst_29 : f32 to vector<32x1xf32>
    %95 = arith.divf %93, %94 : vector<32x1xf32>
    %96 = vector.broadcast %95 : vector<32x1xf32> to vector<32x128xf32>
    %97 = arith.subf %89, %96 : vector<32x128xf32>
    %98 = arith.mulf %97, %97 : vector<32x128xf32>
    %cst_30 = arith.constant dense<0.000000e+00> : vector<32xf32>
    %99 = vector.multi_reduction <add>, %98, %cst_30 [1] : vector<32x128xf32> to vector<32xf32>
    %100 = vector.shape_cast %99 : vector<32xf32> to vector<32x1xf32>
    %cst_31 = arith.constant 1.280000e+02 : f32
    %101 = vector.broadcast %cst_31 : f32 to vector<32x1xf32>
    %102 = arith.divf %100, %101 : vector<32x1xf32>
    %103 = vector.broadcast %95 : vector<32x1xf32> to vector<32x128xf32>
    %104 = arith.subf %89, %103 : vector<32x128xf32>
    %cst_32 = arith.constant 9.99999974E-6 : f32
    %105 = vector.broadcast %cst_32 : f32 to vector<32x1xf32>
    %106 = arith.addf %102, %105 : vector<32x1xf32>
    %107 = math.rsqrt %106 : vector<32x1xf32>
    %108 = vector.broadcast %107 : vector<32x1xf32> to vector<32x128xf32>
    %109 = arith.mulf %104, %108 : vector<32x128xf32>
    %110 = vector.broadcast %90 : vector<1x128xf32> to vector<32x128xf32>
    %111 = arith.mulf %109, %110 : vector<32x128xf32>
    %112 = vector.broadcast %91 : vector<1x128xf32> to vector<32x128xf32>
    %113 = arith.addf %111, %112 : vector<32x128xf32>
    %114 = arith.truncf %113 : vector<32x128xf32> to vector<32x128xbf16>
    %c640 = arith.constant 640 : index
    %c0_33 = arith.constant 0 : index
    %115 = vector.load %arg2[%c640, %c0_33] : memref<1792x128xbf16, #tpu.memory_space<vmem>>, vector<128x128xbf16>
    %cst_34 = arith.constant dense<0.000000e+00> : vector<32x128xf32>
    %116 = tpu.matmul %114, %115, %cst_34 {dimension_numbers = #tpu.dot_dimension_numbers<[1], [0], [0], [1], [0, 0, 1, 1], [], []>} : vector<32x128xbf16>, vector<128x128xbf16>, vector<32x128xf32> -> vector<32x128xf32>
    %c37 = arith.constant 37 : index
    %c0_35 = arith.constant 0 : index
    %117 = vector.load %arg1[%c37, %c0_35] : memref<48x128xf32, #tpu.memory_space<vmem>>, vector<1x128xf32>
    %118 = vector.broadcast %117 : vector<1x128xf32> to vector<32x128xf32>
    %119 = arith.addf %116, %118 : vector<32x128xf32>
    %cst_36 = arith.constant 5.000000e-01 : f32
    %120 = vector.broadcast %cst_36 : f32 to vector<32x128xf32>
    %121 = arith.mulf %120, %119 : vector<32x128xf32>
    %cst_37 = arith.constant 0.707106769 : f32
    %122 = vector.broadcast %cst_37 : f32 to vector<32x128xf32>
    %123 = arith.mulf %119, %122 : vector<32x128xf32>
    %124 = math.erf %123 : vector<32x128xf32>
    %cst_38 = arith.constant 1.000000e+00 : f32
    %125 = vector.broadcast %cst_38 : f32 to vector<32x128xf32>
    %126 = arith.addf %125, %124 : vector<32x128xf32>
    %127 = arith.mulf %121, %126 : vector<32x128xf32>
    %128 = arith.truncf %127 : vector<32x128xf32> to vector<32x128xbf16>
    %c768 = arith.constant 768 : index
    %c0_39 = arith.constant 0 : index
    %129 = vector.load %arg2[%c768, %c0_39] : memref<1792x128xbf16, #tpu.memory_space<vmem>>, vector<128x128xbf16>
    %cst_40 = arith.constant dense<0.000000e+00> : vector<32x128xf32>
    %130 = tpu.matmul %128, %129, %cst_40 {dimension_numbers = #tpu.dot_dimension_numbers<[1], [0], [0], [1], [0, 0, 1, 1], [], []>} : vector<32x128xbf16>, vector<128x128xbf16>, vector<32x128xf32> -> vector<32x128xf32>
    %c38 = arith.constant 38 : index
    %c0_41 = arith.constant 0 : index
    %131 = vector.load %arg1[%c38, %c0_41] : memref<48x128xf32, #tpu.memory_space<vmem>>, vector<1x128xf32>
    %132 = vector.broadcast %131 : vector<1x128xf32> to vector<32x128xf32>
    %133 = arith.addf %130, %132 : vector<32x128xf32>
    %134 = arith.addf %89, %133 : vector<32x128xf32>
    %c39 = arith.constant 39 : index
    %c0_42 = arith.constant 0 : index
    %135 = vector.load %arg1[%c39, %c0_42] : memref<48x128xf32, #tpu.memory_space<vmem>>, vector<1x128xf32>
    %c40 = arith.constant 40 : index
    %c0_43 = arith.constant 0 : index
    %136 = vector.load %arg1[%c40, %c0_43] : memref<48x128xf32, #tpu.memory_space<vmem>>, vector<1x128xf32>
    %cst_44 = arith.constant dense<0.000000e+00> : vector<32xf32>
    %137 = vector.multi_reduction <add>, %134, %cst_44 [1] : vector<32x128xf32> to vector<32xf32>
    %138 = vector.shape_cast %137 : vector<32xf32> to vector<32x1xf32>
    %cst_45 = arith.constant 1.280000e+02 : f32
    %139 = vector.broadcast %cst_45 : f32 to vector<32x1xf32>
    %140 = arith.divf %138, %139 : vector<32x1xf32>
    %141 = vector.broadcast %140 : vector<32x1xf32> to vector<32x128xf32>
    %142 = arith.subf %134, %141 : vector<32x128xf32>
    %143 = arith.mulf %142, %142 : vector<32x128xf32>
    %cst_46 = arith.constant dense<0.000000e+00> : vector<32xf32>
    %144 = vector.multi_reduction <add>, %143, %cst_46 [1] : vector<32x128xf32> to vector<32xf32>
    %145 = vector.shape_cast %144 : vector<32xf32> to vector<32x1xf32>
    %cst_47 = arith.constant 1.280000e+02 : f32
    %146 = vector.broadcast %cst_47 : f32 to vector<32x1xf32>
    %147 = arith.divf %145, %146 : vector<32x1xf32>
    %148 = vector.broadcast %140 : vector<32x1xf32> to vector<32x128xf32>
    %149 = arith.subf %134, %148 : vector<32x128xf32>
    %cst_48 = arith.constant 9.99999974E-6 : f32
    %150 = vector.broadcast %cst_48 : f32 to vector<32x1xf32>
    %151 = arith.addf %147, %150 : vector<32x1xf32>
    %152 = math.rsqrt %151 : vector<32x1xf32>
    %153 = vector.broadcast %152 : vector<32x1xf32> to vector<32x128xf32>
    %154 = arith.mulf %149, %153 : vector<32x128xf32>
    %155 = vector.broadcast %135 : vector<1x128xf32> to vector<32x128xf32>
    %156 = arith.mulf %154, %155 : vector<32x128xf32>
    %157 = vector.broadcast %136 : vector<1x128xf32> to vector<32x128xf32>
    %158 = arith.addf %156, %157 : vector<32x128xf32>
    %159 = arith.truncf %158 : vector<32x128xf32> to vector<32x128xbf16>
    %c896 = arith.constant 896 : index
    %c0_49 = arith.constant 0 : index
    %160 = vector.load %arg2[%c896, %c0_49] : memref<1792x128xbf16, #tpu.memory_space<vmem>>, vector<128x128xbf16>
    %cst_50 = arith.constant dense<0.000000e+00> : vector<32x128xf32>
    %161 = tpu.matmul %159, %160, %cst_50 {dimension_numbers = #tpu.dot_dimension_numbers<[1], [0], [0], [1], [0, 0, 1, 1], [], []>} : vector<32x128xbf16>, vector<128x128xbf16>, vector<32x128xf32> -> vector<32x128xf32>
    %c1024 = arith.constant 1024 : index
    %c0_51 = arith.constant 0 : index
    %162 = vector.load %arg2[%c1024, %c0_51] : memref<1792x128xbf16, #tpu.memory_space<vmem>>, vector<128x128xbf16>
    %cst_52 = arith.constant dense<0.000000e+00> : vector<32x128xf32>
    %163 = tpu.matmul %159, %162, %cst_52 {dimension_numbers = #tpu.dot_dimension_numbers<[1], [0], [0], [1], [0, 0, 1, 1], [], []>} : vector<32x128xbf16>, vector<128x128xbf16>, vector<32x128xf32> -> vector<32x128xf32>
    %c1152 = arith.constant 1152 : index
    %c0_53 = arith.constant 0 : index
    %164 = vector.load %arg2[%c1152, %c0_53] : memref<1792x128xbf16, #tpu.memory_space<vmem>>, vector<128x128xbf16>
    %cst_54 = arith.constant dense<0.000000e+00> : vector<32x128xf32>
    %165 = tpu.matmul %159, %164, %cst_54 {dimension_numbers = #tpu.dot_dimension_numbers<[1], [0], [0], [1], [0, 0, 1, 1], [], []>} : vector<32x128xbf16>, vector<128x128xbf16>, vector<32x128xf32> -> vector<32x128xf32>
    %166 = vector.extract_strided_slice %161 {offsets = [0, 0], sizes = [32, 32], strides = [1, 1]} : vector<32x128xf32> to vector<32x32xf32>
    %167 = vector.extract_strided_slice %161 {offsets = [0, 32], sizes = [32, 32], strides = [1, 1]} : vector<32x128xf32> to vector<32x32xf32>
    %168 = vector.extract_strided_slice %161 {offsets = [0, 64], sizes = [32, 32], strides = [1, 1]} : vector<32x128xf32> to vector<32x32xf32>
    %169 = vector.extract_strided_slice %161 {offsets = [0, 96], sizes = [32, 32], strides = [1, 1]} : vector<32x128xf32> to vector<32x32xf32>
    %170 = tpu.concatenate %166, %167, %168, %169 in 0 : vector<32x32xf32>, vector<32x32xf32>, vector<32x32xf32>, vector<32x32xf32> -> vector<128x32xf32>
    %171 = vector.shape_cast %170 : vector<128x32xf32> to vector<8x16x32xf32>
    %172 = arith.truncf %171 : vector<8x16x32xf32> to vector<8x16x32xbf16>
    %173 = vector.extract_strided_slice %163 {offsets = [0, 0], sizes = [32, 32], strides = [1, 1]} : vector<32x128xf32> to vector<32x32xf32>
    %174 = vector.extract_strided_slice %163 {offsets = [0, 32], sizes = [32, 32], strides = [1, 1]} : vector<32x128xf32> to vector<32x32xf32>
    %175 = vector.extract_strided_slice %163 {offsets = [0, 64], sizes = [32, 32], strides = [1, 1]} : vector<32x128xf32> to vector<32x32xf32>
    %176 = vector.extract_strided_slice %163 {offsets = [0, 96], sizes = [32, 32], strides = [1, 1]} : vector<32x128xf32> to vector<32x32xf32>
    %177 = tpu.concatenate %173, %174, %175, %176 in 0 : vector<32x32xf32>, vector<32x32xf32>, vector<32x32xf32>, vector<32x32xf32> -> vector<128x32xf32>
    %178 = vector.shape_cast %177 : vector<128x32xf32> to vector<8x16x32xf32>
    %179 = arith.truncf %178 : vector<8x16x32xf32> to vector<8x16x32xbf16>
    %180 = vector.extract_strided_slice %165 {offsets = [0, 0], sizes = [32, 32], strides = [1, 1]} : vector<32x128xf32> to vector<32x32xf32>
    %181 = vector.extract_strided_slice %165 {offsets = [0, 32], sizes = [32, 32], strides = [1, 1]} : vector<32x128xf32> to vector<32x32xf32>
    %182 = vector.extract_strided_slice %165 {offsets = [0, 64], sizes = [32, 32], strides = [1, 1]} : vector<32x128xf32> to vector<32x32xf32>
    %183 = vector.extract_strided_slice %165 {offsets = [0, 96], sizes = [32, 32], strides = [1, 1]} : vector<32x128xf32> to vector<32x32xf32>
    %184 = tpu.concatenate %180, %181, %182, %183 in 0 : vector<32x32xf32>, vector<32x32xf32>, vector<32x32xf32>, vector<32x32xf32> -> vector<128x32xf32>
    %185 = vector.shape_cast %184 : vector<128x32xf32> to vector<8x16x32xf32>
    %186 = arith.truncf %185 : vector<8x16x32xf32> to vector<8x16x32xbf16>
    "tpu.trace_start"() <{level = 10 : i32, message = "gnd,gmd->gnm"}> : () -> ()
    %cst_55 = arith.constant dense<0.000000e+00> : vector<8x16x16xf32>
    %187 = tpu.matmul %172, %179, %cst_55 {dimension_numbers = #tpu.dot_dimension_numbers<[2], [2], [1], [1], [0, 0, 0, 1, 1, 1], [0], [0]>} : vector<8x16x32xbf16>, vector<8x16x32xbf16>, vector<8x16x16xf32> -> vector<8x16x16xf32>
    "tpu.trace_stop"() : () -> ()
    %cst_56 = arith.constant 0.176776692 : f32
    %188 = vector.broadcast %cst_56 : f32 to vector<8x16x16xf32>
    %189 = arith.mulf %187, %188 : vector<8x16x16xf32>
    %cst_57 = arith.constant dense<0xFF800000> : vector<8x16xf32>
    %190 = vector.multi_reduction <maximumf>, %189, %cst_57 [2] : vector<8x16x16xf32> to vector<8x16xf32>
    %191 = vector.shape_cast %190 : vector<8x16xf32> to vector<8x16x1xf32>
    %192 = vector.broadcast %191 : vector<8x16x1xf32> to vector<8x16x16xf32>
    %193 = arith.subf %189, %192 : vector<8x16x16xf32>
    %194 = math.exp %193 : vector<8x16x16xf32>
    %cst_58 = arith.constant dense<0.000000e+00> : vector<8x16xf32>
    %195 = vector.multi_reduction <add>, %194, %cst_58 [2] : vector<8x16x16xf32> to vector<8x16xf32>
    %196 = vector.shape_cast %195 : vector<8x16xf32> to vector<8x16x1xf32>
    %197 = tpu.reciprocal %196 {approx = true} : vector<8x16x1xf32> -> vector<8x16x1xf32>
    %198 = vector.broadcast %197 : vector<8x16x1xf32> to vector<8x16x16xf32>
    %199 = arith.mulf %194, %198 : vector<8x16x16xf32>
    %200 = arith.truncf %199 : vector<8x16x16xf32> to vector<8x16x16xbf16>
    "tpu.trace_start"() <{level = 10 : i32, message = "gnm,gmd->gnd"}> : () -> ()
    %cst_59 = arith.constant dense<0.000000e+00> : vector<8x16x32xf32>
    %201 = tpu.matmul %200, %186, %cst_59 {dimension_numbers = #tpu.dot_dimension_numbers<[2], [1], [1], [2], [0, 0, 0, 1, 1, 2], [0], [0]>} : vector<8x16x16xbf16>, vector<8x16x32xbf16>, vector<8x16x32xf32> -> vector<8x16x32xf32>
    "tpu.trace_stop"() : () -> ()
    %202 = vector.shape_cast %201 : vector<8x16x32xf32> to vector<4x32x32xf32>
    %203 = vector.extract_strided_slice %202 {offsets = [0, 0, 0], sizes = [1, 32, 32], strides = [1, 1, 1]} : vector<4x32x32xf32> to vector<1x32x32xf32>
    %204 = vector.shape_cast %203 : vector<1x32x32xf32> to vector<32x32xf32>
    %205 = vector.extract_strided_slice %202 {offsets = [1, 0, 0], sizes = [1, 32, 32], strides = [1, 1, 1]} : vector<4x32x32xf32> to vector<1x32x32xf32>
    %206 = vector.shape_cast %205 : vector<1x32x32xf32> to vector<32x32xf32>
    %207 = vector.extract_strided_slice %202 {offsets = [2, 0, 0], sizes = [1, 32, 32], strides = [1, 1, 1]} : vector<4x32x32xf32> to vector<1x32x32xf32>
    %208 = vector.shape_cast %207 : vector<1x32x32xf32> to vector<32x32xf32>
    %209 = vector.extract_strided_slice %202 {offsets = [3, 0, 0], sizes = [1, 32, 32], strides = [1, 1, 1]} : vector<4x32x32xf32> to vector<1x32x32xf32>
    %210 = vector.shape_cast %209 : vector<1x32x32xf32> to vector<32x32xf32>
    %211 = tpu.concatenate %204, %206, %208, %210 in 1 : vector<32x32xf32>, vector<32x32xf32>, vector<32x32xf32>, vector<32x32xf32> -> vector<32x128xf32>
    %212 = arith.truncf %211 : vector<32x128xf32> to vector<32x128xbf16>
    %c1280 = arith.constant 1280 : index
    %c0_60 = arith.constant 0 : index
    %213 = vector.load %arg2[%c1280, %c0_60] : memref<1792x128xbf16, #tpu.memory_space<vmem>>, vector<128x128xbf16>
    %cst_61 = arith.constant dense<0.000000e+00> : vector<32x128xf32>
    %214 = tpu.matmul %212, %213, %cst_61 {dimension_numbers = #tpu.dot_dimension_numbers<[1], [0], [0], [1], [0, 0, 1, 1], [], []>} : vector<32x128xbf16>, vector<128x128xbf16>, vector<32x128xf32> -> vector<32x128xf32>
    %215 = arith.addf %134, %214 : vector<32x128xf32>
    %c41 = arith.constant 41 : index
    %c0_62 = arith.constant 0 : index
    %216 = vector.load %arg1[%c41, %c0_62] : memref<48x128xf32, #tpu.memory_space<vmem>>, vector<1x128xf32>
    %c42 = arith.constant 42 : index
    %c0_63 = arith.constant 0 : index
    %217 = vector.load %arg1[%c42, %c0_63] : memref<48x128xf32, #tpu.memory_space<vmem>>, vector<1x128xf32>
    %cst_64 = arith.constant dense<0.000000e+00> : vector<32xf32>
    %218 = vector.multi_reduction <add>, %215, %cst_64 [1] : vector<32x128xf32> to vector<32xf32>
    %219 = vector.shape_cast %218 : vector<32xf32> to vector<32x1xf32>
    %cst_65 = arith.constant 1.280000e+02 : f32
    %220 = vector.broadcast %cst_65 : f32 to vector<32x1xf32>
    %221 = arith.divf %219, %220 : vector<32x1xf32>
    %222 = vector.broadcast %221 : vector<32x1xf32> to vector<32x128xf32>
    %223 = arith.subf %215, %222 : vector<32x128xf32>
    %224 = arith.mulf %223, %223 : vector<32x128xf32>
    %cst_66 = arith.constant dense<0.000000e+00> : vector<32xf32>
    %225 = vector.multi_reduction <add>, %224, %cst_66 [1] : vector<32x128xf32> to vector<32xf32>
    %226 = vector.shape_cast %225 : vector<32xf32> to vector<32x1xf32>
    %cst_67 = arith.constant 1.280000e+02 : f32
    %227 = vector.broadcast %cst_67 : f32 to vector<32x1xf32>
    %228 = arith.divf %226, %227 : vector<32x1xf32>
    %229 = vector.broadcast %221 : vector<32x1xf32> to vector<32x128xf32>
    %230 = arith.subf %215, %229 : vector<32x128xf32>
    %cst_68 = arith.constant 9.99999974E-6 : f32
    %231 = vector.broadcast %cst_68 : f32 to vector<32x1xf32>
    %232 = arith.addf %228, %231 : vector<32x1xf32>
    %233 = math.rsqrt %232 : vector<32x1xf32>
    %234 = vector.broadcast %233 : vector<32x1xf32> to vector<32x128xf32>
    %235 = arith.mulf %230, %234 : vector<32x128xf32>
    %236 = vector.broadcast %216 : vector<1x128xf32> to vector<32x128xf32>
    %237 = arith.mulf %235, %236 : vector<32x128xf32>
    %238 = vector.broadcast %217 : vector<1x128xf32> to vector<32x128xf32>
    %239 = arith.addf %237, %238 : vector<32x128xf32>
    %240 = arith.truncf %239 : vector<32x128xf32> to vector<32x128xbf16>
    %c1408 = arith.constant 1408 : index
    %c0_69 = arith.constant 0 : index
    %241 = vector.load %arg2[%c1408, %c0_69] : memref<1792x128xbf16, #tpu.memory_space<vmem>>, vector<128x128xbf16>
    %cst_70 = arith.constant dense<0.000000e+00> : vector<32x128xf32>
    %242 = tpu.matmul %240, %241, %cst_70 {dimension_numbers = #tpu.dot_dimension_numbers<[1], [0], [0], [1], [0, 0, 1, 1], [], []>} : vector<32x128xbf16>, vector<128x128xbf16>, vector<32x128xf32> -> vector<32x128xf32>
    %c43 = arith.constant 43 : index
    %c0_71 = arith.constant 0 : index
    %243 = vector.load %arg1[%c43, %c0_71] : memref<48x128xf32, #tpu.memory_space<vmem>>, vector<1x128xf32>
    %244 = vector.broadcast %243 : vector<1x128xf32> to vector<32x128xf32>
    %245 = arith.addf %242, %244 : vector<32x128xf32>
    %cst_72 = arith.constant 5.000000e-01 : f32
    %246 = vector.broadcast %cst_72 : f32 to vector<32x128xf32>
    %247 = arith.mulf %246, %245 : vector<32x128xf32>
    %cst_73 = arith.constant 0.707106769 : f32
    %248 = vector.broadcast %cst_73 : f32 to vector<32x128xf32>
    %249 = arith.mulf %245, %248 : vector<32x128xf32>
    %250 = math.erf %249 : vector<32x128xf32>
    %cst_74 = arith.constant 1.000000e+00 : f32
    %251 = vector.broadcast %cst_74 : f32 to vector<32x128xf32>
    %252 = arith.addf %251, %250 : vector<32x128xf32>
    %253 = arith.mulf %247, %252 : vector<32x128xf32>
    %254 = arith.truncf %253 : vector<32x128xf32> to vector<32x128xbf16>
    %c1536 = arith.constant 1536 : index
    %c0_75 = arith.constant 0 : index
    %255 = vector.load %arg2[%c1536, %c0_75] : memref<1792x128xbf16, #tpu.memory_space<vmem>>, vector<128x128xbf16>
    %cst_76 = arith.constant dense<0.000000e+00> : vector<32x128xf32>
    %256 = tpu.matmul %254, %255, %cst_76 {dimension_numbers = #tpu.dot_dimension_numbers<[1], [0], [0], [1], [0, 0, 1, 1], [], []>} : vector<32x128xbf16>, vector<128x128xbf16>, vector<32x128xf32> -> vector<32x128xf32>
    %c44 = arith.constant 44 : index
    %c0_77 = arith.constant 0 : index
    %257 = vector.load %arg1[%c44, %c0_77] : memref<48x128xf32, #tpu.memory_space<vmem>>, vector<1x128xf32>
    %258 = vector.broadcast %257 : vector<1x128xf32> to vector<32x128xf32>
    %259 = arith.addf %256, %258 : vector<32x128xf32>
    %260 = arith.addf %215, %259 : vector<32x128xf32>
    %261 = vector.shape_cast %260 : vector<32x128xf32> to vector<2x16x128xf32>
    %cst_78 = arith.constant dense<0.000000e+00> : vector<2x128xf32>
    %262 = vector.multi_reduction <add>, %261, %cst_78 [1] : vector<2x16x128xf32> to vector<2x128xf32>
    %cst_79 = arith.constant 6.250000e-02 : f32
    %263 = vector.broadcast %cst_79 : f32 to vector<2x128xf32>
    %264 = arith.mulf %262, %263 : vector<2x128xf32>
    %c45 = arith.constant 45 : index
    %c0_80 = arith.constant 0 : index
    %265 = vector.load %arg1[%c45, %c0_80] : memref<48x128xf32, #tpu.memory_space<vmem>>, vector<1x128xf32>
    %c46 = arith.constant 46 : index
    %c0_81 = arith.constant 0 : index
    %266 = vector.load %arg1[%c46, %c0_81] : memref<48x128xf32, #tpu.memory_space<vmem>>, vector<1x128xf32>
    %cst_82 = arith.constant dense<0.000000e+00> : vector<2xf32>
    %267 = vector.multi_reduction <add>, %264, %cst_82 [1] : vector<2x128xf32> to vector<2xf32>
    %268 = vector.shape_cast %267 : vector<2xf32> to vector<2x1xf32>
    %cst_83 = arith.constant 1.280000e+02 : f32
    %269 = vector.broadcast %cst_83 : f32 to vector<2x1xf32>
    %270 = arith.divf %268, %269 : vector<2x1xf32>
    %271 = vector.broadcast %270 : vector<2x1xf32> to vector<2x128xf32>
    %272 = arith.subf %264, %271 : vector<2x128xf32>
    %273 = arith.mulf %272, %272 : vector<2x128xf32>
    %cst_84 = arith.constant dense<0.000000e+00> : vector<2xf32>
    %274 = vector.multi_reduction <add>, %273, %cst_84 [1] : vector<2x128xf32> to vector<2xf32>
    %275 = vector.shape_cast %274 : vector<2xf32> to vector<2x1xf32>
    %cst_85 = arith.constant 1.280000e+02 : f32
    %276 = vector.broadcast %cst_85 : f32 to vector<2x1xf32>
    %277 = arith.divf %275, %276 : vector<2x1xf32>
    %278 = vector.broadcast %270 : vector<2x1xf32> to vector<2x128xf32>
    %279 = arith.subf %264, %278 : vector<2x128xf32>
    %cst_86 = arith.constant 9.99999974E-6 : f32
    %280 = vector.broadcast %cst_86 : f32 to vector<2x1xf32>
    %281 = arith.addf %277, %280 : vector<2x1xf32>
    %282 = math.rsqrt %281 : vector<2x1xf32>
    %283 = vector.broadcast %282 : vector<2x1xf32> to vector<2x128xf32>
    %284 = arith.mulf %279, %283 : vector<2x128xf32>
    %285 = vector.broadcast %265 : vector<1x128xf32> to vector<2x128xf32>
    %286 = arith.mulf %284, %285 : vector<2x128xf32>
    %287 = vector.broadcast %266 : vector<1x128xf32> to vector<2x128xf32>
    %288 = arith.addf %286, %287 : vector<2x128xf32>
    %289 = arith.truncf %288 : vector<2x128xf32> to vector<2x128xbf16>
    %c1664 = arith.constant 1664 : index
    %c0_87 = arith.constant 0 : index
    %290 = vector.load %arg2[%c1664, %c0_87] : memref<1792x128xbf16, #tpu.memory_space<vmem>>, vector<128x128xbf16>
    %cst_88 = arith.constant dense<0.000000e+00> : vector<2x128xf32>
    %291 = tpu.matmul %289, %290, %cst_88 {dimension_numbers = #tpu.dot_dimension_numbers<[1], [0], [0], [1], [0, 0, 1, 1], [], []>} : vector<2x128xbf16>, vector<128x128xbf16>, vector<2x128xf32> -> vector<2x128xf32>
    %c47 = arith.constant 47 : index
    %c0_89 = arith.constant 0 : index
    %292 = vector.load %arg1[%c47, %c0_89] : memref<48x128xf32, #tpu.memory_space<vmem>>, vector<1x128xf32>
    %293 = vector.broadcast %292 : vector<1x128xf32> to vector<2x128xf32>
    %294 = arith.addf %291, %293 : vector<2x128xf32>
    %c0_90 = arith.constant 0 : index
    %c0_91 = arith.constant 0 : index
    %295 = vector.load %arg3[%c0_90, %c0_91] : memref<2x128xf32, #tpu.memory_space<vmem>>, vector<2x128xf32>
    tpu.vector_store %arg3[%c0_90, %c0_91], %294 {strides = array<i32>} : memref<2x128xf32, #tpu.memory_space<vmem>>, vector<2x128xf32>,
    return
  }
}

</mosaic_0001>

<llo_original>
// kernel: simple_vit_forward.1
$region0: #{simple_vit_forward.1}
  #allocation0 [shape = 'u32[]', space=smem, size = 0x4, offset = 0x4, fixed_abs, tag = 'smem constant byte address 0x4 - core index']
  #allocation1 [shape = 'u32[144,128]{1,0:T(1,128)}', space=vmem, size = 0x12000, scoped, tag = 'internal scratch']
  %s0 = inlined_call_operand.vmem [shape: f32[32,128], index: 0, kind: input, shape index: {}]
  %s1 = inlined_call_operand.vmem [shape: f32[48,128], index: 1, kind: input, shape index: {}]
  %s2 = inlined_call_operand.vmem [shape: bf16[1792,128], index: 2, kind: input, shape index: {}]
  %s3 = inlined_call_operand.hbm [shape: f32[2,128], index: 3, kind: output, shape index: {}]
  %s4 = sld [smem:[#allocation0]]
  $region22: #{simple_vit_forward.1} parent=0
    _
  %s6 = ssub.s32 1, %s4
  %s7 = scalar_select 0, %s6, %s4
  $region1: #{simple_vit_forward.1} parent=0
    #allocation2 [shape = 'u8[1024]{0}', space=vmem, size = 0x400, scoped, tag = 'output window, operand 0, single buffered']
    #allocation3 [shape = 's32[1]{0}', space=sflag, size = 0x4, scoped, tag = 'scoped memory for simple_vit_forward.1']
    %8 = vsyncpa [#allocation3], 0
    // Predicated region
    $region2: #{simple_vit_forward.1} parent=1 // pred_check
      _
    $region3: #{simple_vit_forward.1} parent=1 // pred_check_branch
      %10 = sbr.rel (0) target = $region5
    $region4: #{simple_vit_forward.1} parent=1 // pred_region
      _
    $region5: #{simple_vit_forward.1} parent=1 // pred_fallthru
      _
    // Predicated region
    $region6: #{simple_vit_forward.1} parent=1 // pred_check
      _
    $region7: #{simple_vit_forward.1} parent=1 // pred_check_branch
      %12 = sbr.rel (0) target = $region9
    $region8: #{simple_vit_forward.1} parent=1 // pred_region
      _
    $region9: #{simple_vit_forward.1} parent=1 // pred_fallthru
      _
    // Predicated region
    $region10: #{simple_vit_forward.1} parent=1 // pred_check
      _
    $region11: #{simple_vit_forward.1} parent=1 // pred_check_branch
      %14 = sbr.rel (0) target = $region13
    $region12: #{simple_vit_forward.1} parent=1 // pred_region
      _
    $region13: #{simple_vit_forward.1} parent=1 // pred_fallthru
      _
    %v16 = vld [vmem:[%s0] sm:$0xff]
    %v17 = vld [vmem:[%s0 + $0x8] sm:$0xff]
    %v18 = vld [vmem:[%s0 + $0x10] sm:$0xff]
    %v19 = vld [vmem:[%s0 + $0x18] sm:$0xff]
    %v20 = vpack.c.bf16 %v17, %v16
    %v21 = vpack.c.bf16 %v19, %v18
    %v22 = vld [vmem:[%s2] sm:$0xf]
    %v23 = vld [vmem:[%s2 + $0x4] sm:$0xf]
    %v24 = vld [vmem:[%s2 + $0x8] sm:$0xf]
    %v25 = vld [vmem:[%s2 + $0xc] sm:$0xf]
    %v26 = vld [vmem:[%s2 + $0x10] sm:$0xf]
    %v27 = vld [vmem:[%s2 + $0x14] sm:$0xf]
    %v28 = vld [vmem:[%s2 + $0x18] sm:$0xf]
    %v29 = vld [vmem:[%s2 + $0x1c] sm:$0xf]
    %v30 = vld [vmem:[%s2 + $0x20] sm:$0xf]
    %v31 = vld [vmem:[%s2 + $0x24] sm:$0xf]
    %v32 = vld [vmem:[%s2 + $0x28] sm:$0xf]
    %v33 = vld [vmem:[%s2 + $0x2c] sm:$0xf]
    %v34 = vld [vmem:[%s2 + $0x30] sm:$0xf]
    %v35 = vld [vmem:[%s2 + $0x34] sm:$0xf]
    %v36 = vld [vmem:[%s2 + $0x38] sm:$0xf]
    %v37 = vld [vmem:[%s2 + $0x3c] sm:$0xf]
    %v38 = vld [vmem:[%s1] sm:$0x1]
    %v39 = vlaneseq
    %v40 = vshrl.u32 %v39, 7
    %v41 = vsub.s32 0, %v40
    %v42 = vrot.slane %v38, %v41
    %v59 = vunpack.c.l.b16 %v22
    %v60 = vunpack.c.l.b16 %v23
    %v61 = vunpack.c.l.b16 %v24
    %v62 = vunpack.c.l.b16 %v25
    %v63 = vunpack.c.l.b16 %v26
    %v64 = vunpack.c.l.b16 %v27
    %v65 = vunpack.c.l.b16 %v28
    %v66 = vunpack.c.l.b16 %v29
    %v67 = vunpack.c.l.b16 %v30
    %v68 = vunpack.c.l.b16 %v31
    %v69 = vunpack.c.l.b16 %v32
    %v70 = vunpack.c.l.b16 %v33
    %v71 = vunpack.c.l.b16 %v34
    %v72 = vunpack.c.l.b16 %v35
    %v73 = vunpack.c.l.b16 %v36
    %v74 = vunpack.c.l.b16 %v37
    %v75 = vpack.c.b16 %v60, %v59
    %v76 = vpack.c.b16 %v62, %v61
    %v77 = vpack.c.b16 %v64, %v63
    %v78 = vpack.c.b16 %v66, %v65
    %v79 = vpack.c.b16 %v68, %v67
    %v80 = vpack.c.b16 %v70, %v69
    %v81 = vpack.c.b16 %v72, %v71
    %v82 = vpack.c.b16 %v74, %v73
    %91 = vmatprep.subr.bf16.mxu0 0
    %92 = vmatpush1.bf16.msra.mxu0 %v82
    %93 = vmatprep.subr.bf16.mxu0 0
    %94 = vmatpush1.bf16.msra.mxu0 %v81
    %95 = vmatprep.subr.bf16.mxu0 0
    %96 = vmatpush1.bf16.msra.mxu0 %v80
    %97 = vmatprep.subr.bf16.mxu0 0
    %98 = vmatpush1.bf16.msra.mxu0 %v79
    %99 = vmatprep.subr.bf16.mxu0 0
    %100 = vmatpush1.bf16.msra.mxu0 %v78
    %101 = vmatprep.subr.bf16.mxu0 0
    %102 = vmatpush1.bf16.msra.mxu0 %v77
    %103 = vmatprep.subr.bf16.mxu0 0
    %104 = vmatpush1.bf16.msra.mxu0 %v76
    %105 = vmatprep.subr.bf16.mxu0 0
    %106 = vmatpush1.bf16.msra.mxu0 %v75
    %107 = vmatprep.subr.bf16.mxu0 0
    %108 = vmatpush2.bf16.msra.mxu0 0
    %109 = vmatprep.subr.bf16.mxu0 0
    %110 = vmatpush2.bf16.msra.mxu0 0
    %111 = vmatprep.subr.bf16.mxu0 0
    %112 = vmatpush2.bf16.msra.mxu0 0
    %113 = vmatprep.subr.bf16.mxu0 0
    %114 = vmatpush2.bf16.msra.mxu0 0
    %115 = vmatprep.subr.bf16.mxu0 0
    %116 = vmatpush2.bf16.msra.mxu0 0
    %117 = vmatprep.subr.bf16.mxu0 0
    %118 = vmatpush2.bf16.msra.mxu0 0
    %119 = vmatprep.subr.bf16.mxu0 0
    %120 = vmatpush2.bf16.msra.mxu0 0
    %121 = vmatprep.subr.bf16.mxu0 0
    %122 = vmatpush2.bf16.msra.mxu0 0
    %123 = vmatprep.mubr.bf16.mxu0 0
    %124 = vmatmul.mubr.bf16.gmra.mxu0 %v20
    %v125 = vpop.f32.mrf.mxu0
    %v126 = vadd.f32 %v42, %v125
    %v127 = vpop.f32.mrf.mxu0
    %v128 = vpop.f32.mrf.mxu0
    %v129 = vadd.f32 %v42, %v128
    %v130 = vpop.f32.mrf.mxu0
    %131 = vmatprep.mubr.bf16.mxu0 0
    %132 = vmatmul.mubr.bf16.gmra.mxu0 %v21
    %v133 = vpop.f32.mrf.mxu0
    %v134 = vadd.f32 %v42, %v133
    %v135 = vpop.f32.mrf.mxu0
    %v136 = vpop.f32.mrf.mxu0
    %v137 = vadd.f32 %v42, %v136
    %v138 = vpop.f32.mrf.mxu0
    %139 = vdwg.mxu0
    %v140 = vld [vmem:[%s1 + $0x1] sm:$0xff]
    %v141 = vld [vmem:[%s1 + $0x9] sm:$0xff]
    %v142 = vld [vmem:[%s1 + $0x11] sm:$0xff]
    %v143 = vld [vmem:[%s1 + $0x19] sm:$0xff]
    %v144 = vadd.f32 %v126, %v140
    %v145 = vadd.f32 %v129, %v141
    %v146 = vadd.f32 %v134, %v142
    %v147 = vadd.f32 %v137, %v143
    %v148 = vld [vmem:[%s1 + $0x21] sm:$0x1]
    %v149 = vld [vmem:[%s1 + $0x22] sm:$0x1]
    %150 = vadd.xlane.f32.xlu0 %v144
    %v151 = vpop.xlane.xlu0 %150
    %152 = vadd.xlane.f32.xlu0 %v145
    %v153 = vpop.xlane.xlu0 %152
    %154 = vadd.xlane.f32.xlu0 %v146
    %v155 = vpop.xlane.xlu0 %154
    %156 = vadd.xlane.f32.xlu0 %v147
    %v157 = vpop.xlane.xlu0 %156
    %v158 = vrcp.pop 128.0
    %v159 = vmul.f32 %v151, %v158
    %v160 = vmul.f32 %v153, %v158
    %v161 = vmul.f32 %v155, %v158
    %v162 = vmul.f32 %v157, %v158
    %v163 = vsub.f32 %v144, %v159
    %v164 = vsub.f32 %v145, %v160
    %v165 = vsub.f32 %v146, %v161
    %v166 = vsub.f32 %v147, %v162
    %v167 = vmul.f32 %v163, %v163
    %v168 = vmul.f32 %v164, %v164
    %v169 = vmul.f32 %v165, %v165
    %v170 = vmul.f32 %v166, %v166
    %171 = vadd.xlane.f32.xlu0 %v167
    %v172 = vpop.xlane.xlu0 %171
    %173 = vadd.xlane.f32.xlu0 %v168
    %v174 = vpop.xlane.xlu0 %173
    %175 = vadd.xlane.f32.xlu0 %v169
    %v176 = vpop.xlane.xlu0 %175
    %177 = vadd.xlane.f32.xlu0 %v170
    %v178 = vpop.xlane.xlu0 %177
    %v179 = vmul.f32 %v172, %v158
    %v180 = vmul.f32 %v174, %v158
    %v181 = vmul.f32 %v176, %v158
    %v182 = vmul.f32 %v178, %v158
    %v183 = vadd.f32 %v179, 1e-05
    %v184 = vadd.f32 %v180, 1e-05
    %v185 = vadd.f32 %v181, 1e-05
    %v186 = vadd.f32 %v182, 1e-05
    %v187 = vrsqrt.pop %v183
    %v188 = vrsqrt.pop %v184
    %v189 = vrsqrt.pop %v185
    %v190 = vrsqrt.pop %v186
    %v191 = vmul.f32 %v163, %v187
    %v192 = vmul.f32 %v164, %v188
    %v193 = vmul.f32 %v165, %v189
    %v194 = vmul.f32 %v166, %v190
    %v195 = vlaneseq
    %v196 = vshrl.u32 %v195, 7
    %v197 = vsub.s32 0, %v196
    %v198 = vrot.slane %v148, %v197
    %v199 = vmul.f32 %v191, %v198
    %v200 = vmul.f32 %v192, %v198
    %v201 = vmul.f32 %v193, %v198
    %v202 = vmul.f32 %v194, %v198
    %v203 = vlaneseq
    %v204 = vshrl.u32 %v203, 7
    %v205 = vsub.s32 0, %v204
    %v206 = vrot.slane %v149, %v205
    %v207 = vadd.f32 %v199, %v206
    %v208 = vadd.f32 %v200, %v206
    %v209 = vadd.f32 %v201, %v206
    %v210 = vadd.f32 %v202, %v206
    %v211 = vpack.c.bf16 %v208, %v207
    %v212 = vpack.c.bf16 %v210, %v209
    %v213 = vld [vmem:[%s2 + $0x40] sm:$0xf]
    %v214 = vld [vmem:[%s2 + $0x44] sm:$0xf]
    %v215 = vld [vmem:[%s2 + $0x48] sm:$0xf]
    %v216 = vld [vmem:[%s2 + $0x4c] sm:$0xf]
    %v217 = vld [vmem:[%s2 + $0x50] sm:$0xf]
    %v218 = vld [vmem:[%s2 + $0x54] sm:$0xf]
    %v219 = vld [vmem:[%s2 + $0x58] sm:$0xf]
    %v220 = vld [vmem:[%s2 + $0x5c] sm:$0xf]
    %v221 = vld [vmem:[%s2 + $0x60] sm:$0xf]
    %v222 = vld [vmem:[%s2 + $0x64] sm:$0xf]
    %v223 = vld [vmem:[%s2 + $0x68] sm:$0xf]
    %v224 = vld [vmem:[%s2 + $0x6c] sm:$0xf]
    %v225 = vld [vmem:[%s2 + $0x70] sm:$0xf]
    %v226 = vld [vmem:[%s2 + $0x74] sm:$0xf]
    %v227 = vld [vmem:[%s2 + $0x78] sm:$0xf]
    %v228 = vld [vmem:[%s2 + $0x7c] sm:$0xf]
    %v245 = vunpack.c.l.b16 %v213
    %v246 = vunpack.c.l.b16 %v214
    %v247 = vunpack.c.l.b16 %v215
    %v248 = vunpack.c.l.b16 %v216
    %v249 = vunpack.c.l.b16 %v217
    %v250 = vunpack.c.l.b16 %v218
    %v251 = vunpack.c.l.b16 %v219
    %v252 = vunpack.c.l.b16 %v220
    %v253 = vunpack.c.l.b16 %v221
    %v254 = vunpack.c.l.b16 %v222
    %v255 = vunpack.c.l.b16 %v223
    %v256 = vunpack.c.l.b16 %v224
    %v257 = vunpack.c.l.b16 %v225
    %v258 = vunpack.c.l.b16 %v226
    %v259 = vunpack.c.l.b16 %v227
    %v260 = vunpack.c.l.b16 %v228
    %v261 = vpack.c.b16 %v246, %v245
    %v262 = vpack.c.b16 %v248, %v247
    %v263 = vpack.c.b16 %v250, %v249
    %v264 = vpack.c.b16 %v252, %v251
    %v265 = vpack.c.b16 %v254, %v253
    %v266 = vpack.c.b16 %v256, %v255
    %v267 = vpack.c.b16 %v258, %v257
    %v268 = vpack.c.b16 %v260, %v259
    %277 = vmatprep.subr.bf16.mxu0 0
    %278 = vmatpush1.bf16.msra.mxu0 %v268
    %279 = vmatprep.subr.bf16.mxu0 0
    %280 = vmatpush1.bf16.msra.mxu0 %v267
    %281 = vmatprep.subr.bf16.mxu0 0
    %282 = vmatpush1.bf16.msra.mxu0 %v266
    %283 = vmatprep.subr.bf16.mxu0 0
    %284 = vmatpush1.bf16.msra.mxu0 %v265
    %285 = vmatprep.subr.bf16.mxu0 0
    %286 = vmatpush1.bf16.msra.mxu0 %v264
    %287 = vmatprep.subr.bf16.mxu0 0
    %288 = vmatpush1.bf16.msra.mxu0 %v263
    %289 = vmatprep.subr.bf16.mxu0 0
    %290 = vmatpush1.bf16.msra.mxu0 %v262
    %291 = vmatprep.subr.bf16.mxu0 0
    %292 = vmatpush1.bf16.msra.mxu0 %v261
    %293 = vmatprep.subr.bf16.mxu0 0
    %294 = vmatpush2.bf16.msra.mxu0 0
    %295 = vmatprep.subr.bf16.mxu0 0
    %296 = vmatpush2.bf16.msra.mxu0 0
    %297 = vmatprep.subr.bf16.mxu0 0
    %298 = vmatpush2.bf16.msra.mxu0 0
    %299 = vmatprep.subr.bf16.mxu0 0
    %300 = vmatpush2.bf16.msra.mxu0 0
    %301 = vmatprep.subr.bf16.mxu0 0
    %302 = vmatpush2.bf16.msra.mxu0 0
    %303 = vmatprep.subr.bf16.mxu0 0
    %304 = vmatpush2.bf16.msra.mxu0 0
    %305 = vmatprep.subr.bf16.mxu0 0
    %306 = vmatpush2.bf16.msra.mxu0 0
    %307 = vmatprep.subr.bf16.mxu0 0
    %308 = vmatpush2.bf16.msra.mxu0 0
    %309 = vmatprep.mubr.bf16.mxu0 0
    %310 = vmatmul.mubr.bf16.gmra.mxu0 %v211
    %v311 = vpop.f32.mrf.mxu0
    %v312 = vadd.f32 0.0, %v311
    %v313 = vpop.f32.mrf.mxu0
    %v314 = vpop.f32.mrf.mxu0
    %v315 = vadd.f32 0.0, %v314
    %v316 = vpop.f32.mrf.mxu0
    %317 = vmatprep.mubr.bf16.mxu0 0
    %318 = vmatmul.mubr.bf16.gmra.mxu0 %v212
    %v319 = vpop.f32.mrf.mxu0
    %v320 = vadd.f32 0.0, %v319
    %v321 = vpop.f32.mrf.mxu0
    %v322 = vpop.f32.mrf.mxu0
    %v323 = vadd.f32 0.0, %v322
    %v324 = vpop.f32.mrf.mxu0
    %325 = vdwg.mxu0
    %v326 = vld [vmem:[%s2 + $0x80] sm:$0xf]
    %v327 = vld [vmem:[%s2 + $0x84] sm:$0xf]
    %v328 = vld [vmem:[%s2 + $0x88] sm:$0xf]
    %v329 = vld [vmem:[%s2 + $0x8c] sm:$0xf]
    %v330 = vld [vmem:[%s2 + $0x90] sm:$0xf]
    %v331 = vld [vmem:[%s2 + $0x94] sm:$0xf]
    %v332 = vld [vmem:[%s2 + $0x98] sm:$0xf]
    %v333 = vld [vmem:[%s2 + $0x9c] sm:$0xf]
    %v334 = vld [vmem:[%s2 + $0xa0] sm:$0xf]
    %v335 = vld [vmem:[%s2 + $0xa4] sm:$0xf]
    %v336 = vld [vmem:[%s2 + $0xa8] sm:$0xf]
    %v337 = vld [vmem:[%s2 + $0xac] sm:$0xf]
    %v338 = vld [vmem:[%s2 + $0xb0] sm:$0xf]
    %v339 = vld [vmem:[%s2 + $0xb4] sm:$0xf]
    %v340 = vld [vmem:[%s2 + $0xb8] sm:$0xf]
    %v341 = vld [vmem:[%s2 + $0xbc] sm:$0xf]
    %v358 = vunpack.c.l.b16 %v326
    %v359 = vunpack.c.l.b16 %v327
    %v360 = vunpack.c.l.b16 %v328
    %v361 = vunpack.c.l.b16 %v329
    %v362 = vunpack.c.l.b16 %v330
    %v363 = vunpack.c.l.b16 %v331
    %v364 = vunpack.c.l.b16 %v332
    %v365 = vunpack.c.l.b16 %v333
    %v366 = vunpack.c.l.b16 %v334
    %v367 = vunpack.c.l.b16 %v335
    %v368 = vunpack.c.l.b16 %v336
    %v369 = vunpack.c.l.b16 %v337
    %v370 = vunpack.c.l.b16 %v338
    %v371 = vunpack.c.l.b16 %v339
    %v372 = vunpack.c.l.b16 %v340
    %v373 = vunpack.c.l.b16 %v341
    %v374 = vpack.c.b16 %v359, %v358
    %v375 = vpack.c.b16 %v361, %v360
    %v376 = vpack.c.b16 %v363, %v362
    %v377 = vpack.c.b16 %v365, %v364
    %v378 = vpack.c.b16 %v367, %v366
    %v379 = vpack.c.b16 %v369, %v368
    %v380 = vpack.c.b16 %v371, %v370
    %v381 = vpack.c.b16 %v373, %v372
    %390 = vmatprep.subr.bf16.mxu0 0
    %391 = vmatpush1.bf16.msra.mxu0 %v381
    %392 = vmatprep.subr.bf16.mxu0 0
    %393 = vmatpush1.bf16.msra.mxu0 %v380
    %394 = vmatprep.subr.bf16.mxu0 0
    %395 = vmatpush1.bf16.msra.mxu0 %v379
    %396 = vmatprep.subr.bf16.mxu0 0
    %397 = vmatpush1.bf16.msra.mxu0 %v378
    %398 = vmatprep.subr.bf16.mxu0 0
    %399 = vmatpush1.bf16.msra.mxu0 %v377
    %400 = vmatprep.subr.bf16.mxu0 0
    %401 = vmatpush1.bf16.msra.mxu0 %v376
    %402 = vmatprep.subr.bf16.mxu0 0
    %403 = vmatpush1.bf16.msra.mxu0 %v375
    %404 = vmatprep.subr.bf16.mxu0 0
    %405 = vmatpush1.bf16.msra.mxu0 %v374
    %406 = vmatprep.subr.bf16.mxu0 0
    %407 = vmatpush2.bf16.msra.mxu0 0
    %408 = vmatprep.subr.bf16.mxu0 0
    %409 = vmatpush2.bf16.msra.mxu0 0
    %410 = vmatprep.subr.bf16.mxu0 0
    %411 = vmatpush2.bf16.msra.mxu0 0
    %412 = vmatprep.subr.bf16.mxu0 0
    %413 = vmatpush2.bf16.msra.mxu0 0
    %414 = vmatprep.subr.bf16.mxu0 0
    %415 = vmatpush2.bf16.msra.mxu0 0
    %416 = vmatprep.subr.bf16.mxu0 0
    %417 = vmatpush2.bf16.msra.mxu0 0
    %418 = vmatprep.subr.bf16.mxu0 0
    %419 = vmatpush2.bf16.msra.mxu0 0
    %420 = vmatprep.subr.bf16.mxu0 0
    %421 = vmatpush2.bf16.msra.mxu0 0
    %422 = vmatprep.mubr.bf16.mxu0 0
    %423 = vmatmul.mubr.bf16.gmra.mxu0 %v211
    %v424 = vpop.f32.mrf.mxu0
    %v425 = vadd.f32 0.0, %v424
    %v426 = vpop.f32.mrf.mxu0
    %v427 = vpop.f32.mrf.mxu0
    %v428 = vadd.f32 0.0, %v427
    %v429 = vpop.f32.mrf.mxu0
    %430 = vmatprep.mubr.bf16.mxu0 0
    %431 = vmatmul.mubr.bf16.gmra.mxu0 %v212
    %v432 = vpop.f32.mrf.mxu0
    %v433 = vadd.f32 0.0, %v432
    %v434 = vpop.f32.mrf.mxu0
    %v435 = vpop.f32.mrf.mxu0
    %v436 = vadd.f32 0.0, %v435
    %v437 = vpop.f32.mrf.mxu0
    %438 = vdwg.mxu0
    %v439 = vld [vmem:[%s2 + $0xc0] sm:$0xf]
    %v440 = vld [vmem:[%s2 + $0xc4] sm:$0xf]
    %v441 = vld [vmem:[%s2 + $0xc8] sm:$0xf]
    %v442 = vld [vmem:[%s2 + $0xcc] sm:$0xf]
    %v443 = vld [vmem:[%s2 + $0xd0] sm:$0xf]
    %v444 = vld [vmem:[%s2 + $0xd4] sm:$0xf]
    %v445 = vld [vmem:[%s2 + $0xd8] sm:$0xf]
    %v446 = vld [vmem:[%s2 + $0xdc] sm:$0xf]
    %v447 = vld [vmem:[%s2 + $0xe0] sm:$0xf]
    %v448 = vld [vmem:[%s2 + $0xe4] sm:$0xf]
    %v449 = vld [vmem:[%s2 + $0xe8] sm:$0xf]
    %v450 = vld [vmem:[%s2 + $0xec] sm:$0xf]
    %v451 = vld [vmem:[%s2 + $0xf0] sm:$0xf]
    %v452 = vld [vmem:[%s2 + $0xf4] sm:$0xf]
    %v453 = vld [vmem:[%s2 + $0xf8] sm:$0xf]
    %v454 = vld [vmem:[%s2 + $0xfc] sm:$0xf]
    %v471 = vunpack.c.l.b16 %v439
    %v472 = vunpack.c.l.b16 %v440
    %v473 = vunpack.c.l.b16 %v441
    %v474 = vunpack.c.l.b16 %v442
    %v475 = vunpack.c.l.b16 %v443
    %v476 = vunpack.c.l.b16 %v444
    %v477 = vunpack.c.l.b16 %v445
    %v478 = vunpack.c.l.b16 %v446
    %v479 = vunpack.c.l.b16 %v447
    %v480 = vunpack.c.l.b16 %v448
    %v481 = vunpack.c.l.b16 %v449
    %v482 = vunpack.c.l.b16 %v450
    %v483 = vunpack.c.l.b16 %v451
    %v484 = vunpack.c.l.b16 %v452
    %v485 = vunpack.c.l.b16 %v453
    %v486 = vunpack.c.l.b16 %v454
    %v487 = vpack.c.b16 %v472, %v471
    %v488 = vpack.c.b16 %v474, %v473
    %v489 = vpack.c.b16 %v476, %v475
    %v490 = vpack.c.b16 %v478, %v477
    %v491 = vpack.c.b16 %v480, %v479
    %v492 = vpack.c.b16 %v482, %v481
    %v493 = vpack.c.b16 %v484, %v483
    %v494 = vpack.c.b16 %v486, %v485
    %503 = vmatprep.subr.bf16.mxu0 0
    %504 = vmatpush1.bf16.msra.mxu0 %v494
    %505 = vmatprep.subr.bf16.mxu0 0
    %506 = vmatpush1.bf16.msra.mxu0 %v493
    %507 = vmatprep.subr.bf16.mxu0 0
    %508 = vmatpush1.bf16.msra.mxu0 %v492
    %509 = vmatprep.subr.bf16.mxu0 0
    %510 = vmatpush1.bf16.msra.mxu0 %v491
    %511 = vmatprep.subr.bf16.mxu0 0
    %512 = vmatpush1.bf16.msra.mxu0 %v490
    %513 = vmatprep.subr.bf16.mxu0 0
    %514 = vmatpush1.bf16.msra.mxu0 %v489
    %515 = vmatprep.subr.bf16.mxu0 0
    %516 = vmatpush1.bf16.msra.mxu0 %v488
    %517 = vmatprep.subr.bf16.mxu0 0
    %518 = vmatpush1.bf16.msra.mxu0 %v487
    %519 = vmatprep.subr.bf16.mxu0 0
    %520 = vmatpush2.bf16.msra.mxu0 0
    %521 = vmatprep.subr.bf16.mxu0 0
    %522 = vmatpush2.bf16.msra.mxu0 0
    %523 = vmatprep.subr.bf16.mxu0 0
    %524 = vmatpush2.bf16.msra.mxu0 0
    %525 = vmatprep.subr.bf16.mxu0 0
    %526 = vmatpush2.bf16.msra.mxu0 0
    %527 = vmatprep.subr.bf16.mxu0 0
    %528 = vmatpush2.bf16.msra.mxu0 0
    %529 = vmatprep.subr.bf16.mxu0 0
    %530 = vmatpush2.bf16.msra.mxu0 0
    %531 = vmatprep.subr.bf16.mxu0 0
    %532 = vmatpush2.bf16.msra.mxu0 0
    %533 = vmatprep.subr.bf16.mxu0 0
    %534 = vmatpush2.bf16.msra.mxu0 0
    %535 = vmatprep.mubr.bf16.mxu0 0
    %536 = vmatmul.mubr.bf16.gmra.mxu0 %v211
    %v537 = vpop.f32.mrf.mxu0
    %v538 = vadd.f32 0.0, %v537
    %v539 = vpop.f32.mrf.mxu0
    %v540 = vpop.f32.mrf.mxu0
    %v541 = vadd.f32 0.0, %v540
    %v542 = vpop.f32.mrf.mxu0
    %543 = vmatprep.mubr.bf16.mxu0 0
    %544 = vmatmul.mubr.bf16.gmra.mxu0 %v212
    %v545 = vpop.f32.mrf.mxu0
    %v546 = vadd.f32 0.0, %v545
    %v547 = vpop.f32.mrf.mxu0
    %v548 = vpop.f32.mrf.mxu0
    %v549 = vadd.f32 0.0, %v548
    %v550 = vpop.f32.mrf.mxu0
    %551 = vdwg.mxu0
    %556 = vrot.lane.b32.xlu0 %v312, 96
    %v557 = vpop.permute.xlu0 %556
    %558 = vrot.lane.b32.xlu0 %v315, 96
    %v559 = vpop.permute.xlu0 %558
    %560 = vrot.lane.b32.xlu0 %v320, 96
    %v561 = vpop.permute.xlu0 %560
    %562 = vrot.lane.b32.xlu0 %v323, 96
    %v563 = vpop.permute.xlu0 %562
    %568 = vrot.lane.b32.xlu0 %v312, 64
    %v569 = vpop.permute.xlu0 %568
    %570 = vrot.lane.b32.xlu0 %v315, 64
    %v571 = vpop.permute.xlu0 %570
    %572 = vrot.lane.b32.xlu0 %v320, 64
    %v573 = vpop.permute.xlu0 %572
    %574 = vrot.lane.b32.xlu0 %v323, 64
    %v575 = vpop.permute.xlu0 %574
    %580 = vrot.lane.b32.xlu0 %v312, 32
    %v581 = vpop.permute.xlu0 %580
    %582 = vrot.lane.b32.xlu0 %v315, 32
    %v583 = vpop.permute.xlu0 %582
    %584 = vrot.lane.b32.xlu0 %v320, 32
    %v585 = vpop.permute.xlu0 %584
    %586 = vrot.lane.b32.xlu0 %v323, 32
    %v587 = vpop.permute.xlu0 %586
    %v592 = vpack.c.bf16 %v315, %v312
    %v593 = vpack.c.bf16 %v323, %v320
    %v594 = vpack.c.bf16 %v559, %v557
    %v595 = vpack.c.bf16 %v563, %v561
    %v596 = vpack.c.bf16 %v571, %v569
    %v597 = vpack.c.bf16 %v575, %v573
    %v598 = vpack.c.bf16 %v583, %v581
    %v599 = vpack.c.bf16 %v587, %v585
    %604 = vrot.lane.b32.xlu0 %v425, 96
    %v605 = vpop.permute.xlu0 %604
    %606 = vrot.lane.b32.xlu0 %v428, 96
    %v607 = vpop.permute.xlu0 %606
    %608 = vrot.lane.b32.xlu0 %v433, 96
    %v609 = vpop.permute.xlu0 %608
    %610 = vrot.lane.b32.xlu0 %v436, 96
    %v611 = vpop.permute.xlu0 %610
    %616 = vrot.lane.b32.xlu0 %v425, 64
    %v617 = vpop.permute.xlu0 %616
    %618 = vrot.lane.b32.xlu0 %v428, 64
    %v619 = vpop.permute.xlu0 %618
    %620 = vrot.lane.b32.xlu0 %v433, 64
    %v621 = vpop.permute.xlu0 %620
    %622 = vrot.lane.b32.xlu0 %v436, 64
    %v623 = vpop.permute.xlu0 %622
    %628 = vrot.lane.b32.xlu0 %v425, 32
    %v629 = vpop.permute.xlu0 %628
    %630 = vrot.lane.b32.xlu0 %v428, 32
    %v631 = vpop.permute.xlu0 %630
    %632 = vrot.lane.b32.xlu0 %v433, 32
    %v633 = vpop.permute.xlu0 %632
    %634 = vrot.lane.b32.xlu0 %v436, 32
    %v635 = vpop.permute.xlu0 %634
    %v640 = vpack.c.bf16 %v428, %v425
    %v641 = vpack.c.bf16 %v436, %v433
    %v642 = vpack.c.bf16 %v607, %v605
    %v643 = vpack.c.bf16 %v611, %v609
    %v644 = vpack.c.bf16 %v619, %v617
    %v645 = vpack.c.bf16 %v623, %v621
    %v646 = vpack.c.bf16 %v631, %v629
    %v647 = vpack.c.bf16 %v635, %v633
    %652 = vrot.lane.b32.xlu0 %v538, 96
    %v653 = vpop.permute.xlu0 %652
    %654 = vrot.lane.b32.xlu0 %v541, 96
    %v655 = vpop.permute.xlu0 %654
    %656 = vrot.lane.b32.xlu0 %v546, 96
    %v657 = vpop.permute.xlu0 %656
    %658 = vrot.lane.b32.xlu0 %v549, 96
    %v659 = vpop.permute.xlu0 %658
    %664 = vrot.lane.b32.xlu0 %v538, 64
    %v665 = vpop.permute.xlu0 %664
    %666 = vrot.lane.b32.xlu0 %v541, 64
    %v667 = vpop.permute.xlu0 %666
    %668 = vrot.lane.b32.xlu0 %v546, 64
    %v669 = vpop.permute.xlu0 %668
    %670 = vrot.lane.b32.xlu0 %v549, 64
    %v671 = vpop.permute.xlu0 %670
    %676 = vrot.lane.b32.xlu0 %v538, 32
    %v677 = vpop.permute.xlu0 %676
    %678 = vrot.lane.b32.xlu0 %v541, 32
    %v679 = vpop.permute.xlu0 %678
    %680 = vrot.lane.b32.xlu0 %v546, 32
    %v681 = vpop.permute.xlu0 %680
    %682 = vrot.lane.b32.xlu0 %v549, 32
    %v683 = vpop.permute.xlu0 %682
    %v688 = vpack.c.bf16 %v541, %v538
    %v689 = vpack.c.bf16 %v549, %v546
    %v690 = vpack.c.bf16 %v655, %v653
    %v691 = vpack.c.bf16 %v659, %v657
    %v692 = vpack.c.bf16 %v667, %v665
    %v693 = vpack.c.bf16 %v671, %v669
    %v694 = vpack.c.bf16 %v679, %v677
    %v695 = vpack.c.bf16 %v683, %v681
    %vm696 = vcmask 261120
    %v698 = vsel %vm696, %v592, 0
    %v701 = vsel %vm696, %v640, 0
    %703 = vmatprep.subr.bf16.mxu0 0
    %704 = vmatpush1.bf16.xpose.msra.mxu0 0
    %705 = vmatprep.subr.bf16.mxu0 0
    %706 = vmatpush1.bf16.xpose.msra.mxu0 0
    %707 = vmatprep.subr.bf16.mxu0 0
    %708 = vmatpush1.bf16.xpose.msra.mxu0 0
    %709 = vmatprep.subr.bf16.mxu0 0
    %710 = vmatpush1.bf16.xpose.msra.mxu0 0
    %711 = vmatprep.subr.bf16.mxu0 0
    %712 = vmatpush1.bf16.xpose.msra.mxu0 0
    %713 = vmatprep.subr.bf16.mxu0 0
    %714 = vmatpush1.bf16.xpose.msra.mxu0 0
    %715 = vmatprep.subr.bf16.mxu0 0
    %716 = vmatpush1.bf16.xpose.msra.mxu0 0
    %717 = vmatprep.subr.bf16.mxu0 0
    %718 = vmatpush1.bf16.xpose.msra.mxu0 %v701
    %719 = vmatprep.subr.bf16.mxu0 0
    %720 = vmatpush2.bf16.xpose.msra.mxu0 0
    %721 = vmatprep.subr.bf16.mxu0 0
    %722 = vmatpush2.bf16.xpose.msra.mxu0 0
    %723 = vmatprep.subr.bf16.mxu0 0
    %724 = vmatpush2.bf16.xpose.msra.mxu0 0
    %725 = vmatprep.subr.bf16.mxu0 0
    %726 = vmatpush2.bf16.xpose.msra.mxu0 0
    %727 = vmatprep.subr.bf16.mxu0 0
    %728 = vmatpush2.bf16.xpose.msra.mxu0 0
    %729 = vmatprep.subr.bf16.mxu0 0
    %730 = vmatpush2.bf16.xpose.msra.mxu0 0
    %731 = vmatprep.subr.bf16.mxu0 0
    %732 = vmatpush2.bf16.xpose.msra.mxu0 0
    %733 = vmatprep.subr.bf16.mxu0 0
    %734 = vmatpush2.bf16.xpose.msra.mxu0 0
    %735 = vmatprep.mubr.bf16.mxu0 0
    %736 = vmatmul.mubr.bf16.gmra.mxu0 %v698
    %v737 = vpop.f32.mrf.mxu0
    %v738 = vadd.f32 0.0, %v737
    %v739 = vpop.f32.mrf.mxu0
    %v740 = vpop.f32.mrf.mxu0
    %v741 = vadd.f32 0.0, %v740
    %v742 = vpop.f32.mrf.mxu0
    %743 = vdwg.mxu0
    %v745 = vsel %vm696, %v593, 0
    %v748 = vsel %vm696, %v641, 0
    %750 = vmatprep.subr.bf16.mxu0 0
    %751 = vmatpush1.bf16.xpose.msra.mxu0 0
    %752 = vmatprep.subr.bf16.mxu0 0
    %753 = vmatpush1.bf16.xpose.msra.mxu0 0
    %754 = vmatprep.subr.bf16.mxu0 0
    %755 = vmatpush1.bf16.xpose.msra.mxu0 0
    %756 = vmatprep.subr.bf16.mxu0 0
    %757 = vmatpush1.bf16.xpose.msra.mxu0 0
    %758 = vmatprep.subr.bf16.mxu0 0
    %759 = vmatpush1.bf16.xpose.msra.mxu0 0
    %760 = vmatprep.subr.bf16.mxu0 0
    %761 = vmatpush1.bf16.xpose.msra.mxu0 0
    %762 = vmatprep.subr.bf16.mxu0 0
    %763 = vmatpush1.bf16.xpose.msra.mxu0 0
    %764 = vmatprep.subr.bf16.mxu0 0
    %765 = vmatpush1.bf16.xpose.msra.mxu0 %v748
    %766 = vmatprep.subr.bf16.mxu0 0
    %767 = vmatpush2.bf16.xpose.msra.mxu0 0
    %768 = vmatprep.subr.bf16.mxu0 0
    %769 = vmatpush2.bf16.xpose.msra.mxu0 0
    %770 = vmatprep.subr.bf16.mxu0 0
    %771 = vmatpush2.bf16.xpose.msra.mxu0 0
    %772 = vmatprep.subr.bf16.mxu0 0
    %773 = vmatpush2.bf16.xpose.msra.mxu0 0
    %774 = vmatprep.subr.bf16.mxu0 0
    %775 = vmatpush2.bf16.xpose.msra.mxu0 0
    %776 = vmatprep.subr.bf16.mxu0 0
    %777 = vmatpush2.bf16.xpose.msra.mxu0 0
    %778 = vmatprep.subr.bf16.mxu0 0
    %779 = vmatpush2.bf16.xpose.msra.mxu0 0
    %780 = vmatprep.subr.bf16.mxu0 0
    %781 = vmatpush2.bf16.xpose.msra.mxu0 0
    %782 = vmatprep.mubr.bf16.mxu0 0
    %783 = vmatmul.mubr.bf16.gmra.mxu0 %v745
    %v784 = vpop.f32.mrf.mxu0
    %v785 = vadd.f32 0.0, %v784
    %v786 = vpop.f32.mrf.mxu0
    %v787 = vpop.f32.mrf.mxu0
    %v788 = vadd.f32 0.0, %v787
    %v789 = vpop.f32.mrf.mxu0
    %790 = vdwg.mxu0
    %v792 = vsel %vm696, %v594, 0
    %v795 = vsel %vm696, %v642, 0
    %797 = vmatprep.subr.bf16.mxu0 0
    %798 = vmatpush1.bf16.xpose.msra.mxu0 0
    %799 = vmatprep.subr.bf16.mxu0 0
    %800 = vmatpush1.bf16.xpose.msra.mxu0 0
    %801 = vmatprep.subr.bf16.mxu0 0
    %802 = vmatpush1.bf16.xpose.msra.mxu0 0
    %803 = vmatprep.subr.bf16.mxu0 0
    %804 = vmatpush1.bf16.xpose.msra.mxu0 0
    %805 = vmatprep.subr.bf16.mxu0 0
    %806 = vmatpush1.bf16.xpose.msra.mxu0 0
    %807 = vmatprep.subr.bf16.mxu0 0
    %808 = vmatpush1.bf16.xpose.msra.mxu0 0
    %809 = vmatprep.subr.bf16.mxu0 0
    %810 = vmatpush1.bf16.xpose.msra.mxu0 0
    %811 = vmatprep.subr.bf16.mxu0 0
    %812 = vmatpush1.bf16.xpose.msra.mxu0 %v795
    %813 = vmatprep.subr.bf16.mxu0 0
    %814 = vmatpush2.bf16.xpose.msra.mxu0 0
    %815 = vmatprep.subr.bf16.mxu0 0
    %816 = vmatpush2.bf16.xpose.msra.mxu0 0
    %817 = vmatprep.subr.bf16.mxu0 0
    %818 = vmatpush2.bf16.xpose.msra.mxu0 0
    %819 = vmatprep.subr.bf16.mxu0 0
    %820 = vmatpush2.bf16.xpose.msra.mxu0 0
    %821 = vmatprep.subr.bf16.mxu0 0
    %822 = vmatpush2.bf16.xpose.msra.mxu0 0
    %823 = vmatprep.subr.bf16.mxu0 0
    %824 = vmatpush2.bf16.xpose.msra.mxu0 0
    %825 = vmatprep.subr.bf16.mxu0 0
    %826 = vmatpush2.bf16.xpose.msra.mxu0 0
    %827 = vmatprep.subr.bf16.mxu0 0
    %828 = vmatpush2.bf16.xpose.msra.mxu0 0
    %829 = vmatprep.mubr.bf16.mxu0 0
    %830 = vmatmul.mubr.bf16.gmra.mxu0 %v792
    %v831 = vpop.f32.mrf.mxu0
    %v832 = vadd.f32 0.0, %v831
    %v833 = vpop.f32.mrf.mxu0
    %v834 = vpop.f32.mrf.mxu0
    %v835 = vadd.f32 0.0, %v834
    %v836 = vpop.f32.mrf.mxu0
    %837 = vdwg.mxu0
    %v839 = vsel %vm696, %v595, 0
    %v842 = vsel %vm696, %v643, 0
    %844 = vmatprep.subr.bf16.mxu0 0
    %845 = vmatpush1.bf16.xpose.msra.mxu0 0
    %846 = vmatprep.subr.bf16.mxu0 0
    %847 = vmatpush1.bf16.xpose.msra.mxu0 0
    %848 = vmatprep.subr.bf16.mxu0 0
    %849 = vmatpush1.bf16.xpose.msra.mxu0 0
    %850 = vmatprep.subr.bf16.mxu0 0
    %851 = vmatpush1.bf16.xpose.msra.mxu0 0
    %852 = vmatprep.subr.bf16.mxu0 0
    %853 = vmatpush1.bf16.xpose.msra.mxu0 0
    %854 = vmatprep.subr.bf16.mxu0 0
    %855 = vmatpush1.bf16.xpose.msra.mxu0 0
    %856 = vmatprep.subr.bf16.mxu0 0
    %857 = vmatpush1.bf16.xpose.msra.mxu0 0
    %858 = vmatprep.subr.bf16.mxu0 0
    %859 = vmatpush1.bf16.xpose.msra.mxu0 %v842
    %860 = vmatprep.subr.bf16.mxu0 0
    %861 = vmatpush2.bf16.xpose.msra.mxu0 0
    %862 = vmatprep.subr.bf16.mxu0 0
    %863 = vmatpush2.bf16.xpose.msra.mxu0 0
    %864 = vmatprep.subr.bf16.mxu0 0
    %865 = vmatpush2.bf16.xpose.msra.mxu0 0
    %866 = vmatprep.subr.bf16.mxu0 0
    %867 = vmatpush2.bf16.xpose.msra.mxu0 0
    %868 = vmatprep.subr.bf16.mxu0 0
    %869 = vmatpush2.bf16.xpose.msra.mxu0 0
    %870 = vmatprep.subr.bf16.mxu0 0
    %871 = vmatpush2.bf16.xpose.msra.mxu0 0
    %872 = vmatprep.subr.bf16.mxu0 0
    %873 = vmatpush2.bf16.xpose.msra.mxu0 0
    %874 = vmatprep.subr.bf16.mxu0 0
    %875 = vmatpush2.bf16.xpose.msra.mxu0 0
    %876 = vmatprep.mubr.bf16.mxu0 0
    %877 = vmatmul.mubr.bf16.gmra.mxu0 %v839
    %v878 = vpop.f32.mrf.mxu0
    %v879 = vadd.f32 0.0, %v878
    %v880 = vpop.f32.mrf.mxu0
    %v881 = vpop.f32.mrf.mxu0
    %v882 = vadd.f32 0.0, %v881
    %v883 = vpop.f32.mrf.mxu0
    %884 = vdwg.mxu0
    %v886 = vsel %vm696, %v596, 0
    %v889 = vsel %vm696, %v644, 0
    %891 = vmatprep.subr.bf16.mxu0 0
    %892 = vmatpush1.bf16.xpose.msra.mxu0 0
    %893 = vmatprep.subr.bf16.mxu0 0
    %894 = vmatpush1.bf16.xpose.msra.mxu0 0
    %895 = vmatprep.subr.bf16.mxu0 0
    %896 = vmatpush1.bf16.xpose.msra.mxu0 0
    %897 = vmatprep.subr.bf16.mxu0 0
    %898 = vmatpush1.bf16.xpose.msra.mxu0 0
    %899 = vmatprep.subr.bf16.mxu0 0
    %900 = vmatpush1.bf16.xpose.msra.mxu0 0
    %901 = vmatprep.subr.bf16.mxu0 0
    %902 = vmatpush1.bf16.xpose.msra.mxu0 0
    %903 = vmatprep.subr.bf16.mxu0 0
    %904 = vmatpush1.bf16.xpose.msra.mxu0 0
    %905 = vmatprep.subr.bf16.mxu0 0
    %906 = vmatpush1.bf16.xpose.msra.mxu0 %v889
    %907 = vmatprep.subr.bf16.mxu0 0
    %908 = vmatpush2.bf16.xpose.msra.mxu0 0
    %909 = vmatprep.subr.bf16.mxu0 0
    %910 = vmatpush2.bf16.xpose.msra.mxu0 0
    %911 = vmatprep.subr.bf16.mxu0 0
    %912 = vmatpush2.bf16.xpose.msra.mxu0 0
    %913 = vmatprep.subr.bf16.mxu0 0
    %914 = vmatpush2.bf16.xpose.msra.mxu0 0
    %915 = vmatprep.subr.bf16.mxu0 0
    %916 = vmatpush2.bf16.xpose.msra.mxu0 0
    %917 = vmatprep.subr.bf16.mxu0 0
    %918 = vmatpush2.bf16.xpose.msra.mxu0 0
    %919 = vmatprep.subr.bf16.mxu0 0
    %920 = vmatpush2.bf16.xpose.msra.mxu0 0
    %921 = vmatprep.subr.bf16.mxu0 0
    %922 = vmatpush2.bf16.xpose.msra.mxu0 0
    %923 = vmatprep.mubr.bf16.mxu0 0
    %924 = vmatmul.mubr.bf16.gmra.mxu0 %v886
    %v925 = vpop.f32.mrf.mxu0
    %v926 = vadd.f32 0.0, %v925
    %v927 = vpop.f32.mrf.mxu0
    %v928 = vpop.f32.mrf.mxu0
    %v929 = vadd.f32 0.0, %v928
    %v930 = vpop.f32.mrf.mxu0
    %931 = vdwg.mxu0
    %v933 = vsel %vm696, %v597, 0
    %v936 = vsel %vm696, %v645, 0
    %938 = vmatprep.subr.bf16.mxu0 0
    %939 = vmatpush1.bf16.xpose.msra.mxu0 0
    %940 = vmatprep.subr.bf16.mxu0 0
    %941 = vmatpush1.bf16.xpose.msra.mxu0 0
    %942 = vmatprep.subr.bf16.mxu0 0
    %943 = vmatpush1.bf16.xpose.msra.mxu0 0
    %944 = vmatprep.subr.bf16.mxu0 0
    %945 = vmatpush1.bf16.xpose.msra.mxu0 0
    %946 = vmatprep.subr.bf16.mxu0 0
    %947 = vmatpush1.bf16.xpose.msra.mxu0 0
    %948 = vmatprep.subr.bf16.mxu0 0
    %949 = vmatpush1.bf16.xpose.msra.mxu0 0
    %950 = vmatprep.subr.bf16.mxu0 0
    %951 = vmatpush1.bf16.xpose.msra.mxu0 0
    %952 = vmatprep.subr.bf16.mxu0 0
    %953 = vmatpush1.bf16.xpose.msra.mxu0 %v936
    %954 = vmatprep.subr.bf16.mxu0 0
    %955 = vmatpush2.bf16.xpose.msra.mxu0 0
    %956 = vmatprep.subr.bf16.mxu0 0
    %957 = vmatpush2.bf16.xpose.msra.mxu0 0
    %958 = vmatprep.subr.bf16.mxu0 0
    %959 = vmatpush2.bf16.xpose.msra.mxu0 0
    %960 = vmatprep.subr.bf16.mxu0 0
    %961 = vmatpush2.bf16.xpose.msra.mxu0 0
    %962 = vmatprep.subr.bf16.mxu0 0
    %963 = vmatpush2.bf16.xpose.msra.mxu0 0
    %964 = vmatprep.subr.bf16.mxu0 0
    %965 = vmatpush2.bf16.xpose.msra.mxu0 0
    %966 = vmatprep.subr.bf16.mxu0 0
    %967 = vmatpush2.bf16.xpose.msra.mxu0 0
    %968 = vmatprep.subr.bf16.mxu0 0
    %969 = vmatpush2.bf16.xpose.msra.mxu0 0
    %970 = vmatprep.mubr.bf16.mxu0 0
    %971 = vmatmul.mubr.bf16.gmra.mxu0 %v933
    %v972 = vpop.f32.mrf.mxu0
    %v973 = vadd.f32 0.0, %v972
    %v974 = vpop.f32.mrf.mxu0
    %v975 = vpop.f32.mrf.mxu0
    %v976 = vadd.f32 0.0, %v975
    %v977 = vpop.f32.mrf.mxu0
    %978 = vdwg.mxu0
    %v980 = vsel %vm696, %v598, 0
    %v983 = vsel %vm696, %v646, 0
    %985 = vmatprep.subr.bf16.mxu0 0
    %986 = vmatpush1.bf16.xpose.msra.mxu0 0
    %987 = vmatprep.subr.bf16.mxu0 0
    %988 = vmatpush1.bf16.xpose.msra.mxu0 0
    %989 = vmatprep.subr.bf16.mxu0 0
    %990 = vmatpush1.bf16.xpose.msra.mxu0 0
    %991 = vmatprep.subr.bf16.mxu0 0
    %992 = vmatpush1.bf16.xpose.msra.mxu0 0
    %993 = vmatprep.subr.bf16.mxu0 0
    %994 = vmatpush1.bf16.xpose.msra.mxu0 0
    %995 = vmatprep.subr.bf16.mxu0 0
    %996 = vmatpush1.bf16.xpose.msra.mxu0 0
    %997 = vmatprep.subr.bf16.mxu0 0
    %998 = vmatpush1.bf16.xpose.msra.mxu0 0
    %999 = vmatprep.subr.bf16.mxu0 0
    %1000 = vmatpush1.bf16.xpose.msra.mxu0 %v983
    %1001 = vmatprep.subr.bf16.mxu0 0
    %1002 = vmatpush2.bf16.xpose.msra.mxu0 0
    %1003 = vmatprep.subr.bf16.mxu0 0
    %1004 = vmatpush2.bf16.xpose.msra.mxu0 0
    %1005 = vmatprep.subr.bf16.mxu0 0
    %1006 = vmatpush2.bf16.xpose.msra.mxu0 0
    %1007 = vmatprep.subr.bf16.mxu0 0
    %1008 = vmatpush2.bf16.xpose.msra.mxu0 0
    %1009 = vmatprep.subr.bf16.mxu0 0
    %1010 = vmatpush2.bf16.xpose.msra.mxu0 0
    %1011 = vmatprep.subr.bf16.mxu0 0
    %1012 = vmatpush2.bf16.xpose.msra.mxu0 0
    %1013 = vmatprep.subr.bf16.mxu0 0
    %1014 = vmatpush2.bf16.xpose.msra.mxu0 0
    %1015 = vmatprep.subr.bf16.mxu0 0
    %1016 = vmatpush2.bf16.xpose.msra.mxu0 0
    %1017 = vmatprep.mubr.bf16.mxu0 0
    %1018 = vmatmul.mubr.bf16.gmra.mxu0 %v980
    %v1019 = vpop.f32.mrf.mxu0
    %v1020 = vadd.f32 0.0, %v1019
    %v1021 = vpop.f32.mrf.mxu0
    %v1022 = vpop.f32.mrf.mxu0
    %v1023 = vadd.f32 0.0, %v1022
    %v1024 = vpop.f32.mrf.mxu0
    %1025 = vdwg.mxu0
    %v1027 = vsel %vm696, %v599, 0
    %v1030 = vsel %vm696, %v647, 0
    %1032 = vmatprep.subr.bf16.mxu0 0
    %1033 = vmatpush1.bf16.xpose.msra.mxu0 0
    %1034 = vmatprep.subr.bf16.mxu0 0
    %1035 = vmatpush1.bf16.xpose.msra.mxu0 0
    %1036 = vmatprep.subr.bf16.mxu0 0
    %1037 = vmatpush1.bf16.xpose.msra.mxu0 0
    %1038 = vmatprep.subr.bf16.mxu0 0
    %1039 = vmatpush1.bf16.xpose.msra.mxu0 0
    %1040 = vmatprep.subr.bf16.mxu0 0
    %1041 = vmatpush1.bf16.xpose.msra.mxu0 0
    %1042 = vmatprep.subr.bf16.mxu0 0
    %1043 = vmatpush1.bf16.xpose.msra.mxu0 0
    %1044 = vmatprep.subr.bf16.mxu0 0
    %1045 = vmatpush1.bf16.xpose.msra.mxu0 0
    %1046 = vmatprep.subr.bf16.mxu0 0
    %1047 = vmatpush1.bf16.xpose.msra.mxu0 %v1030
    %1048 = vmatprep.subr.bf16.mxu0 0
    %1049 = vmatpush2.bf16.xpose.msra.mxu0 0
    %1050 = vmatprep.subr.bf16.mxu0 0
    %1051 = vmatpush2.bf16.xpose.msra.mxu0 0
    %1052 = vmatprep.subr.bf16.mxu0 0
    %1053 = vmatpush2.bf16.xpose.msra.mxu0 0
    %1054 = vmatprep.subr.bf16.mxu0 0
    %1055 = vmatpush2.bf16.xpose.msra.mxu0 0
    %1056 = vmatprep.subr.bf16.mxu0 0
    %1057 = vmatpush2.bf16.xpose.msra.mxu0 0
    %1058 = vmatprep.subr.bf16.mxu0 0
    %1059 = vmatpush2.bf16.xpose.msra.mxu0 0
    %1060 = vmatprep.subr.bf16.mxu0 0
    %1061 = vmatpush2.bf16.xpose.msra.mxu0 0
    %1062 = vmatprep.subr.bf16.mxu0 0
    %1063 = vmatpush2.bf16.xpose.msra.mxu0 0
    %1064 = vmatprep.mubr.bf16.mxu0 0
    %1065 = vmatmul.mubr.bf16.gmra.mxu0 %v1027
    %v1066 = vpop.f32.mrf.mxu0
    %v1067 = vadd.f32 0.0, %v1066
    %v1068 = vpop.f32.mrf.mxu0
    %v1069 = vpop.f32.mrf.mxu0
    %v1070 = vadd.f32 0.0, %v1069
    %v1071 = vpop.f32.mrf.mxu0
    %1072 = vdwg.mxu0
    %v1073 = vmul.f32 %v738, 0.17677669
    %v1074 = vmul.f32 %v741, 0.17677669
    %v1075 = vmul.f32 %v785, 0.17677669
    %v1076 = vmul.f32 %v788, 0.17677669
    %v1077 = vmul.f32 %v832, 0.17677669
    %v1078 = vmul.f32 %v835, 0.17677669
    %v1079 = vmul.f32 %v879, 0.17677669
    %v1080 = vmul.f32 %v882, 0.17677669
    %v1081 = vmul.f32 %v926, 0.17677669
    %v1082 = vmul.f32 %v929, 0.17677669
    %v1083 = vmul.f32 %v973, 0.17677669
    %v1084 = vmul.f32 %v976, 0.17677669
    %v1085 = vmul.f32 %v1020, 0.17677669
    %v1086 = vmul.f32 %v1023, 0.17677669
    %v1087 = vmul.f32 %v1067, 0.17677669
    %v1088 = vmul.f32 %v1070, 0.17677669
    %vm1089 = vcmask 130048
    %v1090 = vsel %vm1089, %v1073, -inf
    %1091 = vmax.xlane.f32.xlu0 %v1090
    %v1092 = vpop.xlane.xlu0 %1091
    %v1093 = vsel %vm1089, %v1074, -inf
    %1094 = vmax.xlane.f32.xlu0 %v1093
    %v1095 = vpop.xlane.xlu0 %1094
    %v1096 = vsel %vm1089, %v1075, -inf
    %1097 = vmax.xlane.f32.xlu0 %v1096
    %v1098 = vpop.xlane.xlu0 %1097
    %v1099 = vsel %vm1089, %v1076, -inf
    %1100 = vmax.xlane.f32.xlu0 %v1099
    %v1101 = vpop.xlane.xlu0 %1100
    %v1102 = vsel %vm1089, %v1077, -inf
    %1103 = vmax.xlane.f32.xlu0 %v1102
    %v1104 = vpop.xlane.xlu0 %1103
    %v1105 = vsel %vm1089, %v1078, -inf
    %1106 = vmax.xlane.f32.xlu0 %v1105
    %v1107 = vpop.xlane.xlu0 %1106
    %v1108 = vsel %vm1089, %v1079, -inf
    %1109 = vmax.xlane.f32.xlu0 %v1108
    %v1110 = vpop.xlane.xlu0 %1109
    %v1111 = vsel %vm1089, %v1080, -inf
    %1112 = vmax.xlane.f32.xlu0 %v1111
    %v1113 = vpop.xlane.xlu0 %1112
    %v1114 = vsel %vm1089, %v1081, -inf
    %1115 = vmax.xlane.f32.xlu0 %v1114
    %v1116 = vpop.xlane.xlu0 %1115
    %v1117 = vsel %vm1089, %v1082, -inf
    %1118 = vmax.xlane.f32.xlu0 %v1117
    %v1119 = vpop.xlane.xlu0 %1118
    %v1120 = vsel %vm1089, %v1083, -inf
    %1121 = vmax.xlane.f32.xlu0 %v1120
    %v1122 = vpop.xlane.xlu0 %1121
    %v1123 = vsel %vm1089, %v1084, -inf
    %1124 = vmax.xlane.f32.xlu0 %v1123
    %v1125 = vpop.xlane.xlu0 %1124
    %v1126 = vsel %vm1089, %v1085, -inf
    %1127 = vmax.xlane.f32.xlu0 %v1126
    %v1128 = vpop.xlane.xlu0 %1127
    %v1129 = vsel %vm1089, %v1086, -inf
    %1130 = vmax.xlane.f32.xlu0 %v1129
    %v1131 = vpop.xlane.xlu0 %1130
    %v1132 = vsel %vm1089, %v1087, -inf
    %1133 = vmax.xlane.f32.xlu0 %v1132
    %v1134 = vpop.xlane.xlu0 %1133
    %v1135 = vsel %vm1089, %v1088, -inf
    %1136 = vmax.xlane.f32.xlu0 %v1135
    %v1137 = vpop.xlane.xlu0 %1136
    %v1138 = vsub.f32 %v1073, %v1092
    %v1139 = vsub.f32 %v1074, %v1095
    %v1140 = vsub.f32 %v1075, %v1098
    %v1141 = vsub.f32 %v1076, %v1101
    %v1142 = vsub.f32 %v1077, %v1104
    %v1143 = vsub.f32 %v1078, %v1107
    %v1144 = vsub.f32 %v1079, %v1110
    %v1145 = vsub.f32 %v1080, %v1113
    %v1146 = vsub.f32 %v1081, %v1116
    %v1147 = vsub.f32 %v1082, %v1119
    %v1148 = vsub.f32 %v1083, %v1122
    %v1149 = vsub.f32 %v1084, %v1125
    %v1150 = vsub.f32 %v1085, %v1128
    %v1151 = vsub.f32 %v1086, %v1131
    %v1152 = vsub.f32 %v1087, %v1134
    %v1153 = vsub.f32 %v1088, %v1137
    %v1154 = vmul.f32 %v1138, 1.442695
    %v1155 = vpow.pop %v1154
    %v1156 = vmul.f32 %v1139, 1.442695
    %v1157 = vpow.pop %v1156
    %v1158 = vmul.f32 %v1140, 1.442695
    %v1159 = vpow.pop %v1158
    %v1160 = vmul.f32 %v1141, 1.442695
    %v1161 = vpow.pop %v1160
    %v1162 = vmul.f32 %v1142, 1.442695
    %v1163 = vpow.pop %v1162
    %v1164 = vmul.f32 %v1143, 1.442695
    %v1165 = vpow.pop %v1164
    %v1166 = vmul.f32 %v1144, 1.442695
    %v1167 = vpow.pop %v1166
    %v1168 = vmul.f32 %v1145, 1.442695
    %v1169 = vpow.pop %v1168
    %v1170 = vmul.f32 %v1146, 1.442695
    %v1171 = vpow.pop %v1170
    %v1172 = vmul.f32 %v1147, 1.442695
    %v1173 = vpow.pop %v1172
    %v1174 = vmul.f32 %v1148, 1.442695
    %v1175 = vpow.pop %v1174
    %v1176 = vmul.f32 %v1149, 1.442695
    %v1177 = vpow.pop %v1176
    %v1178 = vmul.f32 %v1150, 1.442695
    %v1179 = vpow.pop %v1178
    %v1180 = vmul.f32 %v1151, 1.442695
    %v1181 = vpow.pop %v1180
    %v1182 = vmul.f32 %v1152, 1.442695
    %v1183 = vpow.pop %v1182
    %v1184 = vmul.f32 %v1153, 1.442695
    %v1185 = vpow.pop %v1184
    %v1186 = vsel %vm1089, %v1155, 0.0
    %1187 = vadd.xlane.f32.xlu0 %v1186
    %v1188 = vpop.xlane.xlu0 %1187
    %v1189 = vsel %vm1089, %v1157, 0.0
    %1190 = vadd.xlane.f32.xlu0 %v1189
    %v1191 = vpop.xlane.xlu0 %1190
    %v1192 = vsel %vm1089, %v1159, 0.0
    %1193 = vadd.xlane.f32.xlu0 %v1192
    %v1194 = vpop.xlane.xlu0 %1193
    %v1195 = vsel %vm1089, %v1161, 0.0
    %1196 = vadd.xlane.f32.xlu0 %v1195
    %v1197 = vpop.xlane.xlu0 %1196
    %v1198 = vsel %vm1089, %v1163, 0.0
    %1199 = vadd.xlane.f32.xlu0 %v1198
    %v1200 = vpop.xlane.xlu0 %1199
    %v1201 = vsel %vm1089, %v1165, 0.0
    %1202 = vadd.xlane.f32.xlu0 %v1201
    %v1203 = vpop.xlane.xlu0 %1202
    %v1204 = vsel %vm1089, %v1167, 0.0
    %1205 = vadd.xlane.f32.xlu0 %v1204
    %v1206 = vpop.xlane.xlu0 %1205
    %v1207 = vsel %vm1089, %v1169, 0.0
    %1208 = vadd.xlane.f32.xlu0 %v1207
    %v1209 = vpop.xlane.xlu0 %1208
    %v1210 = vsel %vm1089, %v1171, 0.0
    %1211 = vadd.xlane.f32.xlu0 %v1210
    %v1212 = vpop.xlane.xlu0 %1211
    %v1213 = vsel %vm1089, %v1173, 0.0
    %1214 = vadd.xlane.f32.xlu0 %v1213
    %v1215 = vpop.xlane.xlu0 %1214
    %v1216 = vsel %vm1089, %v1175, 0.0
    %1217 = vadd.xlane.f32.xlu0 %v1216
    %v1218 = vpop.xlane.xlu0 %1217
    %v1219 = vsel %vm1089, %v1177, 0.0
    %1220 = vadd.xlane.f32.xlu0 %v1219
    %v1221 = vpop.xlane.xlu0 %1220
    %v1222 = vsel %vm1089, %v1179, 0.0
    %1223 = vadd.xlane.f32.xlu0 %v1222
    %v1224 = vpop.xlane.xlu0 %1223
    %v1225 = vsel %vm1089, %v1181, 0.0
    %1226 = vadd.xlane.f32.xlu0 %v1225
    %v1227 = vpop.xlane.xlu0 %1226
    %v1228 = vsel %vm1089, %v1183, 0.0
    %1229 = vadd.xlane.f32.xlu0 %v1228
    %v1230 = vpop.xlane.xlu0 %1229
    %v1231 = vsel %vm1089, %v1185, 0.0
    %1232 = vadd.xlane.f32.xlu0 %v1231
    %v1233 = vpop.xlane.xlu0 %1232
    %v1234 = vrcp.pop %v1188
    %v1235 = vrcp.pop %v1191
    %v1236 = vrcp.pop %v1194
    %v1237 = vrcp.pop %v1197
    %v1238 = vrcp.pop %v1200
    %v1239 = vrcp.pop %v1203
    %v1240 = vrcp.pop %v1206
    %v1241 = vrcp.pop %v1209
    %v1242 = vrcp.pop %v1212
    %v1243 = vrcp.pop %v1215
    %v1244 = vrcp.pop %v1218
    %v1245 = vrcp.pop %v1221
    %v1246 = vrcp.pop %v1224
    %v1247 = vrcp.pop %v1227
    %v1248 = vrcp.pop %v1230
    %v1249 = vrcp.pop %v1233
    %v1250 = vmul.f32 %v1155, %v1234
    %v1251 = vmul.f32 %v1157, %v1235
    %v1252 = vmul.f32 %v1159, %v1236
    %v1253 = vmul.f32 %v1161, %v1237
    %v1254 = vmul.f32 %v1163, %v1238
    %v1255 = vmul.f32 %v1165, %v1239
    %v1256 = vmul.f32 %v1167, %v1240
    %v1257 = vmul.f32 %v1169, %v1241
    %v1258 = vmul.f32 %v1171, %v1242
    %v1259 = vmul.f32 %v1173, %v1243
    %v1260 = vmul.f32 %v1175, %v1244
    %v1261 = vmul.f32 %v1177, %v1245
    %v1262 = vmul.f32 %v1179, %v1246
    %v1263 = vmul.f32 %v1181, %v1247
    %v1264 = vmul.f32 %v1183, %v1248
    %v1265 = vmul.f32 %v1185, %v1249
    %v1266 = vpack.c.bf16 %v1251, %v1250
    %v1267 = vpack.c.bf16 %v1253, %v1252
    %v1268 = vpack.c.bf16 %v1255, %v1254
    %v1269 = vpack.c.bf16 %v1257, %v1256
    %v1270 = vpack.c.bf16 %v1259, %v1258
    %v1271 = vpack.c.bf16 %v1261, %v1260
    %v1272 = vpack.c.bf16 %v1263, %v1262
    %v1273 = vpack.c.bf16 %v1265, %v1264
    %v1275 = vsel %vm1089, %v1266, 0
    %1277 = vmatprep.subr.bf16.mxu0 0
    %1278 = vmatpush1.bf16.msra.mxu0 0
    %1279 = vmatprep.subr.bf16.mxu0 0
    %1280 = vmatpush1.bf16.msra.mxu0 0
    %1281 = vmatprep.subr.bf16.mxu0 0
    %1282 = vmatpush1.bf16.msra.mxu0 0
    %1283 = vmatprep.subr.bf16.mxu0 0
    %1284 = vmatpush1.bf16.msra.mxu0 0
    %1285 = vmatprep.subr.bf16.mxu0 0
    %1286 = vmatpush1.bf16.msra.mxu0 0
    %1287 = vmatprep.subr.bf16.mxu0 0
    %1288 = vmatpush1.bf16.msra.mxu0 0
    %1289 = vmatprep.subr.bf16.mxu0 0
    %1290 = vmatpush1.bf16.msra.mxu0 0
    %1291 = vmatprep.subr.bf16.mxu0 0
    %1292 = vmatpush1.bf16.msra.mxu0 %v688
    %1293 = vmatprep.subr.bf16.mxu0 0
    %1294 = vmatpush2.bf16.msra.mxu0 0
    %1295 = vmatprep.subr.bf16.mxu0 0
    %1296 = vmatpush2.bf16.msra.mxu0 0
    %1297 = vmatprep.subr.bf16.mxu0 0
    %1298 = vmatpush2.bf16.msra.mxu0 0
    %1299 = vmatprep.subr.bf16.mxu0 0
    %1300 = vmatpush2.bf16.msra.mxu0 0
    %1301 = vmatprep.subr.bf16.mxu0 0
    %1302 = vmatpush2.bf16.msra.mxu0 0
    %1303 = vmatprep.subr.bf16.mxu0 0
    %1304 = vmatpush2.bf16.msra.mxu0 0
    %1305 = vmatprep.subr.bf16.mxu0 0
    %1306 = vmatpush2.bf16.msra.mxu0 0
    %1307 = vmatprep.subr.bf16.mxu0 0
    %1308 = vmatpush2.bf16.msra.mxu0 0
    %1309 = vmatprep.mubr.bf16.mxu0 0
    %1310 = vmatmul.mubr.bf16.gmra.mxu0 %v1275
    %v1311 = vpop.f32.mrf.mxu0
    %v1312 = vadd.f32 0.0, %v1311
    %v1313 = vpop.f32.mrf.mxu0
    %v1314 = vpop.f32.mrf.mxu0
    %v1315 = vadd.f32 0.0, %v1314
    %v1316 = vpop.f32.mrf.mxu0
    %1317 = vdwg.mxu0
    %v1319 = vsel %vm1089, %v1267, 0
    %1321 = vmatprep.subr.bf16.mxu0 0
    %1322 = vmatpush1.bf16.msra.mxu0 0
    %1323 = vmatprep.subr.bf16.mxu0 0
    %1324 = vmatpush1.bf16.msra.mxu0 0
    %1325 = vmatprep.subr.bf16.mxu0 0
    %1326 = vmatpush1.bf16.msra.mxu0 0
    %1327 = vmatprep.subr.bf16.mxu0 0
    %1328 = vmatpush1.bf16.msra.mxu0 0
    %1329 = vmatprep.subr.bf16.mxu0 0
    %1330 = vmatpush1.bf16.msra.mxu0 0
    %1331 = vmatprep.subr.bf16.mxu0 0
    %1332 = vmatpush1.bf16.msra.mxu0 0
    %1333 = vmatprep.subr.bf16.mxu0 0
    %1334 = vmatpush1.bf16.msra.mxu0 0
    %1335 = vmatprep.subr.bf16.mxu0 0
    %1336 = vmatpush1.bf16.msra.mxu0 %v689
    %1337 = vmatprep.subr.bf16.mxu0 0
    %1338 = vmatpush2.bf16.msra.mxu0 0
    %1339 = vmatprep.subr.bf16.mxu0 0
    %1340 = vmatpush2.bf16.msra.mxu0 0
    %1341 = vmatprep.subr.bf16.mxu0 0
    %1342 = vmatpush2.bf16.msra.mxu0 0
    %1343 = vmatprep.subr.bf16.mxu0 0
    %1344 = vmatpush2.bf16.msra.mxu0 0
    %1345 = vmatprep.subr.bf16.mxu0 0
    %1346 = vmatpush2.bf16.msra.mxu0 0
    %1347 = vmatprep.subr.bf16.mxu0 0
    %1348 = vmatpush2.bf16.msra.mxu0 0
    %1349 = vmatprep.subr.bf16.mxu0 0
    %1350 = vmatpush2.bf16.msra.mxu0 0
    %1351 = vmatprep.subr.bf16.mxu0 0
    %1352 = vmatpush2.bf16.msra.mxu0 0
    %1353 = vmatprep.mubr.bf16.mxu0 0
    %1354 = vmatmul.mubr.bf16.gmra.mxu0 %v1319
    %v1355 = vpop.f32.mrf.mxu0
    %v1356 = vadd.f32 0.0, %v1355
    %v1357 = vpop.f32.mrf.mxu0
    %v1358 = vpop.f32.mrf.mxu0
    %v1359 = vadd.f32 0.0, %v1358
    %v1360 = vpop.f32.mrf.mxu0
    %1361 = vdwg.mxu0
    %v1363 = vsel %vm1089, %v1268, 0
    %1365 = vmatprep.subr.bf16.mxu0 0
    %1366 = vmatpush1.bf16.msra.mxu0 0
    %1367 = vmatprep.subr.bf16.mxu0 0
    %1368 = vmatpush1.bf16.msra.mxu0 0
    %1369 = vmatprep.subr.bf16.mxu0 0
    %1370 = vmatpush1.bf16.msra.mxu0 0
    %1371 = vmatprep.subr.bf16.mxu0 0
    %1372 = vmatpush1.bf16.msra.mxu0 0
    %1373 = vmatprep.subr.bf16.mxu0 0
    %1374 = vmatpush1.bf16.msra.mxu0 0
    %1375 = vmatprep.subr.bf16.mxu0 0
    %1376 = vmatpush1.bf16.msra.mxu0 0
    %1377 = vmatprep.subr.bf16.mxu0 0
    %1378 = vmatpush1.bf16.msra.mxu0 0
    %1379 = vmatprep.subr.bf16.mxu0 0
    %1380 = vmatpush1.bf16.msra.mxu0 %v690
    %1381 = vmatprep.subr.bf16.mxu0 0
    %1382 = vmatpush2.bf16.msra.mxu0 0
    %1383 = vmatprep.subr.bf16.mxu0 0
    %1384 = vmatpush2.bf16.msra.mxu0 0
    %1385 = vmatprep.subr.bf16.mxu0 0
    %1386 = vmatpush2.bf16.msra.mxu0 0
    %1387 = vmatprep.subr.bf16.mxu0 0
    %1388 = vmatpush2.bf16.msra.mxu0 0
    %1389 = vmatprep.subr.bf16.mxu0 0
    %1390 = vmatpush2.bf16.msra.mxu0 0
    %1391 = vmatprep.subr.bf16.mxu0 0
    %1392 = vmatpush2.bf16.msra.mxu0 0
    %1393 = vmatprep.subr.bf16.mxu0 0
    %1394 = vmatpush2.bf16.msra.mxu0 0
    %1395 = vmatprep.subr.bf16.mxu0 0
    %1396 = vmatpush2.bf16.msra.mxu0 0
    %1397 = vmatprep.mubr.bf16.mxu0 0
    %1398 = vmatmul.mubr.bf16.gmra.mxu0 %v1363
    %v1399 = vpop.f32.mrf.mxu0
    %v1400 = vadd.f32 0.0, %v1399
    %v1401 = vpop.f32.mrf.mxu0
    %v1402 = vpop.f32.mrf.mxu0
    %v1403 = vadd.f32 0.0, %v1402
    %v1404 = vpop.f32.mrf.mxu0
    %1405 = vdwg.mxu0
    %v1407 = vsel %vm1089, %v1269, 0
    %1409 = vmatprep.subr.bf16.mxu0 0
    %1410 = vmatpush1.bf16.msra.mxu0 0
    %1411 = vmatprep.subr.bf16.mxu0 0
    %1412 = vmatpush1.bf16.msra.mxu0 0
    %1413 = vmatprep.subr.bf16.mxu0 0
    %1414 = vmatpush1.bf16.msra.mxu0 0
    %1415 = vmatprep.subr.bf16.mxu0 0
    %1416 = vmatpush1.bf16.msra.mxu0 0
    %1417 = vmatprep.subr.bf16.mxu0 0
    %1418 = vmatpush1.bf16.msra.mxu0 0
    %1419 = vmatprep.subr.bf16.mxu0 0
    %1420 = vmatpush1.bf16.msra.mxu0 0
    %1421 = vmatprep.subr.bf16.mxu0 0
    %1422 = vmatpush1.bf16.msra.mxu0 0
    %1423 = vmatprep.subr.bf16.mxu0 0
    %1424 = vmatpush1.bf16.msra.mxu0 %v691
    %1425 = vmatprep.subr.bf16.mxu0 0
    %1426 = vmatpush2.bf16.msra.mxu0 0
    %1427 = vmatprep.subr.bf16.mxu0 0
    %1428 = vmatpush2.bf16.msra.mxu0 0
    %1429 = vmatprep.subr.bf16.mxu0 0
    %1430 = vmatpush2.bf16.msra.mxu0 0
    %1431 = vmatprep.subr.bf16.mxu0 0
    %1432 = vmatpush2.bf16.msra.mxu0 0
    %1433 = vmatprep.subr.bf16.mxu0 0
    %1434 = vmatpush2.bf16.msra.mxu0 0
    %1435 = vmatprep.subr.bf16.mxu0 0
    %1436 = vmatpush2.bf16.msra.mxu0 0
    %1437 = vmatprep.subr.bf16.mxu0 0
    %1438 = vmatpush2.bf16.msra.mxu0 0
    %1439 = vmatprep.subr.bf16.mxu0 0
    %1440 = vmatpush2.bf16.msra.mxu0 0
    %1441 = vmatprep.mubr.bf16.mxu0 0
    %1442 = vmatmul.mubr.bf16.gmra.mxu0 %v1407
    %v1443 = vpop.f32.mrf.mxu0
    %v1444 = vadd.f32 0.0, %v1443
    %v1445 = vpop.f32.mrf.mxu0
    %v1446 = vpop.f32.mrf.mxu0
    %v1447 = vadd.f32 0.0, %v1446
    %v1448 = vpop.f32.mrf.mxu0
    %1449 = vdwg.mxu0
    %v1451 = vsel %vm1089, %v1270, 0
    %1453 = vmatprep.subr.bf16.mxu0 0
    %1454 = vmatpush1.bf16.msra.mxu0 0
    %1455 = vmatprep.subr.bf16.mxu0 0
    %1456 = vmatpush1.bf16.msra.mxu0 0
    %1457 = vmatprep.subr.bf16.mxu0 0
    %1458 = vmatpush1.bf16.msra.mxu0 0
    %1459 = vmatprep.subr.bf16.mxu0 0
    %1460 = vmatpush1.bf16.msra.mxu0 0
    %1461 = vmatprep.subr.bf16.mxu0 0
    %1462 = vmatpush1.bf16.msra.mxu0 0
    %1463 = vmatprep.subr.bf16.mxu0 0
    %1464 = vmatpush1.bf16.msra.mxu0 0
    %1465 = vmatprep.subr.bf16.mxu0 0
    %1466 = vmatpush1.bf16.msra.mxu0 0
    %1467 = vmatprep.subr.bf16.mxu0 0
    %1468 = vmatpush1.bf16.msra.mxu0 %v692
    %1469 = vmatprep.subr.bf16.mxu0 0
    %1470 = vmatpush2.bf16.msra.mxu0 0
    %1471 = vmatprep.subr.bf16.mxu0 0
    %1472 = vmatpush2.bf16.msra.mxu0 0
    %1473 = vmatprep.subr.bf16.mxu0 0
    %1474 = vmatpush2.bf16.msra.mxu0 0
    %1475 = vmatprep.subr.bf16.mxu0 0
    %1476 = vmatpush2.bf16.msra.mxu0 0
    %1477 = vmatprep.subr.bf16.mxu0 0
    %1478 = vmatpush2.bf16.msra.mxu0 0
    %1479 = vmatprep.subr.bf16.mxu0 0
    %1480 = vmatpush2.bf16.msra.mxu0 0
    %1481 = vmatprep.subr.bf16.mxu0 0
    %1482 = vmatpush2.bf16.msra.mxu0 0
    %1483 = vmatprep.subr.bf16.mxu0 0
    %1484 = vmatpush2.bf16.msra.mxu0 0
    %1485 = vmatprep.mubr.bf16.mxu0 0
    %1486 = vmatmul.mubr.bf16.gmra.mxu0 %v1451
    %v1487 = vpop.f32.mrf.mxu0
    %v1488 = vadd.f32 0.0, %v1487
    %v1489 = vpop.f32.mrf.mxu0
    %v1490 = vpop.f32.mrf.mxu0
    %v1491 = vadd.f32 0.0, %v1490
    %v1492 = vpop.f32.mrf.mxu0
    %1493 = vdwg.mxu0
    %v1495 = vsel %vm1089, %v1271, 0
    %1497 = vmatprep.subr.bf16.mxu0 0
    %1498 = vmatpush1.bf16.msra.mxu0 0
    %1499 = vmatprep.subr.bf16.mxu0 0
    %1500 = vmatpush1.bf16.msra.mxu0 0
    %1501 = vmatprep.subr.bf16.mxu0 0
    %1502 = vmatpush1.bf16.msra.mxu0 0
    %1503 = vmatprep.subr.bf16.mxu0 0
    %1504 = vmatpush1.bf16.msra.mxu0 0
    %1505 = vmatprep.subr.bf16.mxu0 0
    %1506 = vmatpush1.bf16.msra.mxu0 0
    %1507 = vmatprep.subr.bf16.mxu0 0
    %1508 = vmatpush1.bf16.msra.mxu0 0
    %1509 = vmatprep.subr.bf16.mxu0 0
    %1510 = vmatpush1.bf16.msra.mxu0 0
    %1511 = vmatprep.subr.bf16.mxu0 0
    %1512 = vmatpush1.bf16.msra.mxu0 %v693
    %1513 = vmatprep.subr.bf16.mxu0 0
    %1514 = vmatpush2.bf16.msra.mxu0 0
    %1515 = vmatprep.subr.bf16.mxu0 0
    %1516 = vmatpush2.bf16.msra.mxu0 0
    %1517 = vmatprep.subr.bf16.mxu0 0
    %1518 = vmatpush2.bf16.msra.mxu0 0
    %1519 = vmatprep.subr.bf16.mxu0 0
    %1520 = vmatpush2.bf16.msra.mxu0 0
    %1521 = vmatprep.subr.bf16.mxu0 0
    %1522 = vmatpush2.bf16.msra.mxu0 0
    %1523 = vmatprep.subr.bf16.mxu0 0
    %1524 = vmatpush2.bf16.msra.mxu0 0
    %1525 = vmatprep.subr.bf16.mxu0 0
    %1526 = vmatpush2.bf16.msra.mxu0 0
    %1527 = vmatprep.subr.bf16.mxu0 0
    %1528 = vmatpush2.bf16.msra.mxu0 0
    %1529 = vmatprep.mubr.bf16.mxu0 0
    %1530 = vmatmul.mubr.bf16.gmra.mxu0 %v1495
    %v1531 = vpop.f32.mrf.mxu0
    %v1532 = vadd.f32 0.0, %v1531
    %v1533 = vpop.f32.mrf.mxu0
    %v1534 = vpop.f32.mrf.mxu0
    %v1535 = vadd.f32 0.0, %v1534
    %v1536 = vpop.f32.mrf.mxu0
    %1537 = vdwg.mxu0
    %v1539 = vsel %vm1089, %v1272, 0
    %1541 = vmatprep.subr.bf16.mxu0 0
    %1542 = vmatpush1.bf16.msra.mxu0 0
    %1543 = vmatprep.subr.bf16.mxu0 0
    %1544 = vmatpush1.bf16.msra.mxu0 0
    %1545 = vmatprep.subr.bf16.mxu0 0
    %1546 = vmatpush1.bf16.msra.mxu0 0
    %1547 = vmatprep.subr.bf16.mxu0 0
    %1548 = vmatpush1.bf16.msra.mxu0 0
    %1549 = vmatprep.subr.bf16.mxu0 0
    %1550 = vmatpush1.bf16.msra.mxu0 0
    %1551 = vmatprep.subr.bf16.mxu0 0
    %1552 = vmatpush1.bf16.msra.mxu0 0
    %1553 = vmatprep.subr.bf16.mxu0 0
    %1554 = vmatpush1.bf16.msra.mxu0 0
    %1555 = vmatprep.subr.bf16.mxu0 0
    %1556 = vmatpush1.bf16.msra.mxu0 %v694
    %1557 = vmatprep.subr.bf16.mxu0 0
    %1558 = vmatpush2.bf16.msra.mxu0 0
    %1559 = vmatprep.subr.bf16.mxu0 0
    %1560 = vmatpush2.bf16.msra.mxu0 0
    %1561 = vmatprep.subr.bf16.mxu0 0
    %1562 = vmatpush2.bf16.msra.mxu0 0
    %1563 = vmatprep.subr.bf16.mxu0 0
    %1564 = vmatpush2.bf16.msra.mxu0 0
    %1565 = vmatprep.subr.bf16.mxu0 0
    %1566 = vmatpush2.bf16.msra.mxu0 0
    %1567 = vmatprep.subr.bf16.mxu0 0
    %1568 = vmatpush2.bf16.msra.mxu0 0
    %1569 = vmatprep.subr.bf16.mxu0 0
    %1570 = vmatpush2.bf16.msra.mxu0 0
    %1571 = vmatprep.subr.bf16.mxu0 0
    %1572 = vmatpush2.bf16.msra.mxu0 0
    %1573 = vmatprep.mubr.bf16.mxu0 0
    %1574 = vmatmul.mubr.bf16.gmra.mxu0 %v1539
    %v1575 = vpop.f32.mrf.mxu0
    %v1576 = vadd.f32 0.0, %v1575
    %v1577 = vpop.f32.mrf.mxu0
    %v1578 = vpop.f32.mrf.mxu0
    %v1579 = vadd.f32 0.0, %v1578
    %v1580 = vpop.f32.mrf.mxu0
    %1581 = vdwg.mxu0
    %v1583 = vsel %vm1089, %v1273, 0
    %1585 = vmatprep.subr.bf16.mxu0 0
    %1586 = vmatpush1.bf16.msra.mxu0 0
    %1587 = vmatprep.subr.bf16.mxu0 0
    %1588 = vmatpush1.bf16.msra.mxu0 0
    %1589 = vmatprep.subr.bf16.mxu0 0
    %1590 = vmatpush1.bf16.msra.mxu0 0
    %1591 = vmatprep.subr.bf16.mxu0 0
    %1592 = vmatpush1.bf16.msra.mxu0 0
    %1593 = vmatprep.subr.bf16.mxu0 0
    %1594 = vmatpush1.bf16.msra.mxu0 0
    %1595 = vmatprep.subr.bf16.mxu0 0
    %1596 = vmatpush1.bf16.msra.mxu0 0
    %1597 = vmatprep.subr.bf16.mxu0 0
    %1598 = vmatpush1.bf16.msra.mxu0 0
    %1599 = vmatprep.subr.bf16.mxu0 0
    %1600 = vmatpush1.bf16.msra.mxu0 %v695
    %1601 = vmatprep.subr.bf16.mxu0 0
    %1602 = vmatpush2.bf16.msra.mxu0 0
    %1603 = vmatprep.subr.bf16.mxu0 0
    %1604 = vmatpush2.bf16.msra.mxu0 0
    %1605 = vmatprep.subr.bf16.mxu0 0
    %1606 = vmatpush2.bf16.msra.mxu0 0
    %1607 = vmatprep.subr.bf16.mxu0 0
    %1608 = vmatpush2.bf16.msra.mxu0 0
    %1609 = vmatprep.subr.bf16.mxu0 0
    %1610 = vmatpush2.bf16.msra.mxu0 0
    %1611 = vmatprep.subr.bf16.mxu0 0
    %1612 = vmatpush2.bf16.msra.mxu0 0
    %1613 = vmatprep.subr.bf16.mxu0 0
    %1614 = vmatpush2.bf16.msra.mxu0 0
    %1615 = vmatprep.subr.bf16.mxu0 0
    %1616 = vmatpush2.bf16.msra.mxu0 0
    %1617 = vmatprep.mubr.bf16.mxu0 0
    %1618 = vmatmul.mubr.bf16.gmra.mxu0 %v1583
    %v1619 = vpop.f32.mrf.mxu0
    %v1620 = vadd.f32 0.0, %v1619
    %v1621 = vpop.f32.mrf.mxu0
    %v1622 = vpop.f32.mrf.mxu0
    %v1623 = vadd.f32 0.0, %v1622
    %v1624 = vpop.f32.mrf.mxu0
    %1625 = vdwg.mxu0
    %1630 = vrot.lane.b32.xlu0 %v1400, 32
    %v1631 = vpop.permute.xlu0 %1630
    %1632 = vrot.lane.b32.xlu0 %v1403, 32
    %v1633 = vpop.permute.xlu0 %1632
    %1634 = vrot.lane.b32.xlu0 %v1444, 32
    %v1635 = vpop.permute.xlu0 %1634
    %1636 = vrot.lane.b32.xlu0 %v1447, 32
    %v1637 = vpop.permute.xlu0 %1636
    %1646 = vrot.lane.b32.xlu0 %v1488, 64
    %v1647 = vpop.permute.xlu0 %1646
    %1648 = vrot.lane.b32.xlu0 %v1491, 64
    %v1649 = vpop.permute.xlu0 %1648
    %1650 = vrot.lane.b32.xlu0 %v1532, 64
    %v1651 = vpop.permute.xlu0 %1650
    %1652 = vrot.lane.b32.xlu0 %v1535, 64
    %v1653 = vpop.permute.xlu0 %1652
    %1662 = vrot.lane.b32.xlu0 %v1576, 96
    %v1663 = vpop.permute.xlu0 %1662
    %1664 = vrot.lane.b32.xlu0 %v1579, 96
    %v1665 = vpop.permute.xlu0 %1664
    %1666 = vrot.lane.b32.xlu0 %v1620, 96
    %v1667 = vpop.permute.xlu0 %1666
    %1668 = vrot.lane.b32.xlu0 %v1623, 96
    %v1669 = vpop.permute.xlu0 %1668
    %v1674 = vsel %vm696, %v1312, %v1631
    %v1675 = vsel %vm696, %v1315, %v1633
    %v1676 = vsel %vm696, %v1356, %v1635
    %v1677 = vsel %vm696, %v1359, %v1637
    %vm1678 = vcmask 523264
    %v1679 = vsel %vm1678, %v1674, %v1647
    %v1680 = vsel %vm1678, %v1675, %v1649
    %v1681 = vsel %vm1678, %v1676, %v1651
    %v1682 = vsel %vm1678, %v1677, %v1653
    %vm1683 = vcmask 785408
    %v1684 = vsel %vm1683, %v1679, %v1663
    %v1685 = vsel %vm1683, %v1680, %v1665
    %v1686 = vsel %vm1683, %v1681, %v1667
    %v1687 = vsel %vm1683, %v1682, %v1669
    %v1688 = vpack.c.bf16 %v1685, %v1684
    %v1689 = vpack.c.bf16 %v1687, %v1686
    %v1690 = vld [vmem:[%s2 + $0x100] sm:$0xf]
    %v1691 = vld [vmem:[%s2 + $0x104] sm:$0xf]
    %v1692 = vld [vmem:[%s2 + $0x108] sm:$0xf]
    %v1693 = vld [vmem:[%s2 + $0x10c] sm:$0xf]
    %v1694 = vld [vmem:[%s2 + $0x110] sm:$0xf]
    %v1695 = vld [vmem:[%s2 + $0x114] sm:$0xf]
    %v1696 = vld [vmem:[%s2 + $0x118] sm:$0xf]
    %v1697 = vld [vmem:[%s2 + $0x11c] sm:$0xf]
    %v1698 = vld [vmem:[%s2 + $0x120] sm:$0xf]
    %v1699 = vld [vmem:[%s2 + $0x124] sm:$0xf]
    %v1700 = vld [vmem:[%s2 + $0x128] sm:$0xf]
    %v1701 = vld [vmem:[%s2 + $0x12c] sm:$0xf]
    %v1702 = vld [vmem:[%s2 + $0x130] sm:$0xf]
    %v1703 = vld [vmem:[%s2 + $0x134] sm:$0xf]
    %v1704 = vld [vmem:[%s2 + $0x138] sm:$0xf]
    %v1705 = vld [vmem:[%s2 + $0x13c] sm:$0xf]
    %v1722 = vunpack.c.l.b16 %v1690
    %v1723 = vunpack.c.l.b16 %v1691
    %v1724 = vunpack.c.l.b16 %v1692
    %v1725 = vunpack.c.l.b16 %v1693
    %v1726 = vunpack.c.l.b16 %v1694
    %v1727 = vunpack.c.l.b16 %v1695
    %v1728 = vunpack.c.l.b16 %v1696
    %v1729 = vunpack.c.l.b16 %v1697
    %v1730 = vunpack.c.l.b16 %v1698
    %v1731 = vunpack.c.l.b16 %v1699
    %v1732 = vunpack.c.l.b16 %v1700
    %v1733 = vunpack.c.l.b16 %v1701
    %v1734 = vunpack.c.l.b16 %v1702
    %v1735 = vunpack.c.l.b16 %v1703
    %v1736 = vunpack.c.l.b16 %v1704
    %v1737 = vunpack.c.l.b16 %v1705
    %v1738 = vpack.c.b16 %v1723, %v1722
    %v1739 = vpack.c.b16 %v1725, %v1724
    %v1740 = vpack.c.b16 %v1727, %v1726
    %v1741 = vpack.c.b16 %v1729, %v1728
    %v1742 = vpack.c.b16 %v1731, %v1730
    %v1743 = vpack.c.b16 %v1733, %v1732
    %v1744 = vpack.c.b16 %v1735, %v1734
    %v1745 = vpack.c.b16 %v1737, %v1736
    %1754 = vmatprep.subr.bf16.mxu0 0
    %1755 = vmatpush1.bf16.msra.mxu0 %v1745
    %1756 = vmatprep.subr.bf16.mxu0 0
    %1757 = vmatpush1.bf16.msra.mxu0 %v1744
    %1758 = vmatprep.subr.bf16.mxu0 0
    %1759 = vmatpush1.bf16.msra.mxu0 %v1743
    %1760 = vmatprep.subr.bf16.mxu0 0
    %1761 = vmatpush1.bf16.msra.mxu0 %v1742
    %1762 = vmatprep.subr.bf16.mxu0 0
    %1763 = vmatpush1.bf16.msra.mxu0 %v1741
    %1764 = vmatprep.subr.bf16.mxu0 0
    %1765 = vmatpush1.bf16.msra.mxu0 %v1740
    %1766 = vmatprep.subr.bf16.mxu0 0
    %1767 = vmatpush1.bf16.msra.mxu0 %v1739
    %1768 = vmatprep.subr.bf16.mxu0 0
    %1769 = vmatpush1.bf16.msra.mxu0 %v1738
    %1770 = vmatprep.subr.bf16.mxu0 0
    %1771 = vmatpush2.bf16.msra.mxu0 0
    %1772 = vmatprep.subr.bf16.mxu0 0
    %1773 = vmatpush2.bf16.msra.mxu0 0
    %1774 = vmatprep.subr.bf16.mxu0 0
    %1775 = vmatpush2.bf16.msra.mxu0 0
    %1776 = vmatprep.subr.bf16.mxu0 0
    %1777 = vmatpush2.bf16.msra.mxu0 0
    %1778 = vmatprep.subr.bf16.mxu0 0
    %1779 = vmatpush2.bf16.msra.mxu0 0
    %1780 = vmatprep.subr.bf16.mxu0 0
    %1781 = vmatpush2.bf16.msra.mxu0 0
    %1782 = vmatprep.subr.bf16.mxu0 0
    %1783 = vmatpush2.bf16.msra.mxu0 0
    %1784 = vmatprep.subr.bf16.mxu0 0
    %1785 = vmatpush2.bf16.msra.mxu0 0
    %1786 = vmatprep.mubr.bf16.mxu0 0
    %1787 = vmatmul.mubr.bf16.gmra.mxu0 %v1688
    %v1788 = vpop.f32.mrf.mxu0
    %v1789 = vadd.f32 0.0, %v1788
    %v1790 = vpop.f32.mrf.mxu0
    %v1791 = vpop.f32.mrf.mxu0
    %v1792 = vadd.f32 0.0, %v1791
    %v1793 = vpop.f32.mrf.mxu0
    %1794 = vmatprep.mubr.bf16.mxu0 0
    %1795 = vmatmul.mubr.bf16.gmra.mxu0 %v1689
    %v1796 = vpop.f32.mrf.mxu0
    %v1797 = vadd.f32 0.0, %v1796
    %v1798 = vpop.f32.mrf.mxu0
    %v1799 = vpop.f32.mrf.mxu0
    %v1800 = vadd.f32 0.0, %v1799
    %v1801 = vpop.f32.mrf.mxu0
    %1802 = vdwg.mxu0
    %v1803 = vadd.f32 %v144, %v1789
    %v1804 = vadd.f32 %v145, %v1792
    %v1805 = vadd.f32 %v146, %v1797
    %v1806 = vadd.f32 %v147, %v1800
    %v1807 = vld [vmem:[%s1 + $0x23] sm:$0x1]
    %v1808 = vld [vmem:[%s1 + $0x24] sm:$0x1]
    %1809 = vadd.xlane.f32.xlu0 %v1803
    %v1810 = vpop.xlane.xlu0 %1809
    %1811 = vadd.xlane.f32.xlu0 %v1804
    %v1812 = vpop.xlane.xlu0 %1811
    %1813 = vadd.xlane.f32.xlu0 %v1805
    %v1814 = vpop.xlane.xlu0 %1813
    %1815 = vadd.xlane.f32.xlu0 %v1806
    %v1816 = vpop.xlane.xlu0 %1815
    %v1817 = vmul.f32 %v1810, %v158
    %v1818 = vmul.f32 %v1812, %v158
    %v1819 = vmul.f32 %v1814, %v158
    %v1820 = vmul.f32 %v1816, %v158
    %v1821 = vsub.f32 %v1803, %v1817
    %v1822 = vsub.f32 %v1804, %v1818
    %v1823 = vsub.f32 %v1805, %v1819
    %v1824 = vsub.f32 %v1806, %v1820
    %v1825 = vmul.f32 %v1821, %v1821
    %v1826 = vmul.f32 %v1822, %v1822
    %v1827 = vmul.f32 %v1823, %v1823
    %v1828 = vmul.f32 %v1824, %v1824
    %1829 = vadd.xlane.f32.xlu0 %v1825
    %v1830 = vpop.xlane.xlu0 %1829
    %1831 = vadd.xlane.f32.xlu0 %v1826
    %v1832 = vpop.xlane.xlu0 %1831
    %1833 = vadd.xlane.f32.xlu0 %v1827
    %v1834 = vpop.xlane.xlu0 %1833
    %1835 = vadd.xlane.f32.xlu0 %v1828
    %v1836 = vpop.xlane.xlu0 %1835
    %v1837 = vmul.f32 %v1830, %v158
    %v1838 = vmul.f32 %v1832, %v158
    %v1839 = vmul.f32 %v1834, %v158
    %v1840 = vmul.f32 %v1836, %v158
    %v1841 = vadd.f32 %v1837, 1e-05
    %v1842 = vadd.f32 %v1838, 1e-05
    %v1843 = vadd.f32 %v1839, 1e-05
    %v1844 = vadd.f32 %v1840, 1e-05
    %v1845 = vrsqrt.pop %v1841
    %v1846 = vrsqrt.pop %v1842
    %v1847 = vrsqrt.pop %v1843
    %v1848 = vrsqrt.pop %v1844
    %v1849 = vmul.f32 %v1821, %v1845
    %v1850 = vmul.f32 %v1822, %v1846
    %v1851 = vmul.f32 %v1823, %v1847
    %v1852 = vmul.f32 %v1824, %v1848
    %v1853 = vlaneseq
    %v1854 = vshrl.u32 %v1853, 7
    %v1855 = vsub.s32 0, %v1854
    %v1856 = vrot.slane %v1807, %v1855
    %v1857 = vmul.f32 %v1849, %v1856
    %v1858 = vmul.f32 %v1850, %v1856
    %v1859 = vmul.f32 %v1851, %v1856
    %v1860 = vmul.f32 %v1852, %v1856
    %v1861 = vlaneseq
    %v1862 = vshrl.u32 %v1861, 7
    %v1863 = vsub.s32 0, %v1862
    %v1864 = vrot.slane %v1808, %v1863
    %v1865 = vadd.f32 %v1857, %v1864
    %v1866 = vadd.f32 %v1858, %v1864
    %v1867 = vadd.f32 %v1859, %v1864
    %v1868 = vadd.f32 %v1860, %v1864
    %v1869 = vpack.c.bf16 %v1866, %v1865
    %v1870 = vpack.c.bf16 %v1868, %v1867
    %v1871 = vld [vmem:[%s2 + $0x140] sm:$0xf]
    %v1872 = vld [vmem:[%s2 + $0x144] sm:$0xf]
    %v1873 = vld [vmem:[%s2 + $0x148] sm:$0xf]
    %v1874 = vld [vmem:[%s2 + $0x14c] sm:$0xf]
    %v1875 = vld [vmem:[%s2 + $0x150] sm:$0xf]
    %v1876 = vld [vmem:[%s2 + $0x154] sm:$0xf]
    %v1877 = vld [vmem:[%s2 + $0x158] sm:$0xf]
    %v1878 = vld [vmem:[%s2 + $0x15c] sm:$0xf]
    %v1879 = vld [vmem:[%s2 + $0x160] sm:$0xf]
    %v1880 = vld [vmem:[%s2 + $0x164] sm:$0xf]
    %v1881 = vld [vmem:[%s2 + $0x168] sm:$0xf]
    %v1882 = vld [vmem:[%s2 + $0x16c] sm:$0xf]
    %v1883 = vld [vmem:[%s2 + $0x170] sm:$0xf]
    %v1884 = vld [vmem:[%s2 + $0x174] sm:$0xf]
    %v1885 = vld [vmem:[%s2 + $0x178] sm:$0xf]
    %v1886 = vld [vmem:[%s2 + $0x17c] sm:$0xf]
    %v1887 = vld [vmem:[%s1 + $0x25] sm:$0x1]
    %v1888 = vlaneseq
    %v1889 = vshrl.u32 %v1888, 7
    %v1890 = vsub.s32 0, %v1889
    %v1891 = vrot.slane %v1887, %v1890
    %v1908 = vunpack.c.l.b16 %v1871
    %v1909 = vunpack.c.l.b16 %v1872
    %v1910 = vunpack.c.l.b16 %v1873
    %v1911 = vunpack.c.l.b16 %v1874
    %v1912 = vunpack.c.l.b16 %v1875
    %v1913 = vunpack.c.l.b16 %v1876
    %v1914 = vunpack.c.l.b16 %v1877
    %v1915 = vunpack.c.l.b16 %v1878
    %v1916 = vunpack.c.l.b16 %v1879
    %v1917 = vunpack.c.l.b16 %v1880
    %v1918 = vunpack.c.l.b16 %v1881
    %v1919 = vunpack.c.l.b16 %v1882
    %v1920 = vunpack.c.l.b16 %v1883
    %v1921 = vunpack.c.l.b16 %v1884
    %v1922 = vunpack.c.l.b16 %v1885
    %v1923 = vunpack.c.l.b16 %v1886
    %v1924 = vpack.c.b16 %v1909, %v1908
    %v1925 = vpack.c.b16 %v1911, %v1910
    %v1926 = vpack.c.b16 %v1913, %v1912
    %v1927 = vpack.c.b16 %v1915, %v1914
    %v1928 = vpack.c.b16 %v1917, %v1916
    %v1929 = vpack.c.b16 %v1919, %v1918
    %v1930 = vpack.c.b16 %v1921, %v1920
    %v1931 = vpack.c.b16 %v1923, %v1922
    %1940 = vmatprep.subr.bf16.mxu0 0
    %1941 = vmatpush1.bf16.msra.mxu0 %v1931
    %1942 = vmatprep.subr.bf16.mxu0 0
    %1943 = vmatpush1.bf16.msra.mxu0 %v1930
    %1944 = vmatprep.subr.bf16.mxu0 0
    %1945 = vmatpush1.bf16.msra.mxu0 %v1929
    %1946 = vmatprep.subr.bf16.mxu0 0
    %1947 = vmatpush1.bf16.msra.mxu0 %v1928
    %1948 = vmatprep.subr.bf16.mxu0 0
    %1949 = vmatpush1.bf16.msra.mxu0 %v1927
    %1950 = vmatprep.subr.bf16.mxu0 0
    %1951 = vmatpush1.bf16.msra.mxu0 %v1926
    %1952 = vmatprep.subr.bf16.mxu0 0
    %1953 = vmatpush1.bf16.msra.mxu0 %v1925
    %1954 = vmatprep.subr.bf16.mxu0 0
    %1955 = vmatpush1.bf16.msra.mxu0 %v1924
    %1956 = vmatprep.subr.bf16.mxu0 0
    %1957 = vmatpush2.bf16.msra.mxu0 0
    %1958 = vmatprep.subr.bf16.mxu0 0
    %1959 = vmatpush2.bf16.msra.mxu0 0
    %1960 = vmatprep.subr.bf16.mxu0 0
    %1961 = vmatpush2.bf16.msra.mxu0 0
    %1962 = vmatprep.subr.bf16.mxu0 0
    %1963 = vmatpush2.bf16.msra.mxu0 0
    %1964 = vmatprep.subr.bf16.mxu0 0
    %1965 = vmatpush2.bf16.msra.mxu0 0
    %1966 = vmatprep.subr.bf16.mxu0 0
    %1967 = vmatpush2.bf16.msra.mxu0 0
    %1968 = vmatprep.subr.bf16.mxu0 0
    %1969 = vmatpush2.bf16.msra.mxu0 0
    %1970 = vmatprep.subr.bf16.mxu0 0
    %1971 = vmatpush2.bf16.msra.mxu0 0
    %1972 = vmatprep.mubr.bf16.mxu0 0
    %1973 = vmatmul.mubr.bf16.gmra.mxu0 %v1869
    %v1974 = vpop.f32.mrf.mxu0
    %v1975 = vadd.f32 %v1891, %v1974
    %v1976 = vpop.f32.mrf.mxu0
    %v1977 = vpop.f32.mrf.mxu0
    %v1978 = vadd.f32 %v1891, %v1977
    %v1979 = vpop.f32.mrf.mxu0
    %1980 = vmatprep.mubr.bf16.mxu0 0
    %1981 = vmatmul.mubr.bf16.gmra.mxu0 %v1870
    %v1982 = vpop.f32.mrf.mxu0
    %v1983 = vadd.f32 %v1891, %v1982
    %v1984 = vpop.f32.mrf.mxu0
    %v1985 = vpop.f32.mrf.mxu0
    %v1986 = vadd.f32 %v1891, %v1985
    %v1987 = vpop.f32.mrf.mxu0
    %1988 = vdwg.mxu0
    %v1989 = vmul.f32 %v1975, 0.5
    %v1990 = vmul.f32 %v1978, 0.5
    %v1991 = vmul.f32 %v1983, 0.5
    %v1992 = vmul.f32 %v1986, 0.5
    %v1993 = vmul.f32 %v1975, 0.70710677
    %v1994 = vmul.f32 %v1978, 0.70710677
    %v1995 = vmul.f32 %v1983, 0.70710677
    %v1996 = vmul.f32 %v1986, 0.70710677
    %v1997 = verf.f32.pop %v1993
    %v1998 = verf.f32.pop %v1994
    %v1999 = verf.f32.pop %v1995
    %v2000 = verf.f32.pop %v1996
    %v2001 = vadd.f32 %v1997, 1.0
    %v2002 = vadd.f32 %v1998, 1.0
    %v2003 = vadd.f32 %v1999, 1.0
    %v2004 = vadd.f32 %v2000, 1.0
    %v2005 = vmul.f32 %v1989, %v2001
    %v2006 = vmul.f32 %v1990, %v2002
    %v2007 = vmul.f32 %v1991, %v2003
    %v2008 = vmul.f32 %v1992, %v2004
    %v2009 = vpack.c.bf16 %v2006, %v2005
    %v2010 = vpack.c.bf16 %v2008, %v2007
    %v2011 = vld [vmem:[%s2 + $0x180] sm:$0xf]
    %v2012 = vld [vmem:[%s2 + $0x184] sm:$0xf]
    %v2013 = vld [vmem:[%s2 + $0x188] sm:$0xf]
    %v2014 = vld [vmem:[%s2 + $0x18c] sm:$0xf]
    %v2015 = vld [vmem:[%s2 + $0x190] sm:$0xf]
    %v2016 = vld [vmem:[%s2 + $0x194] sm:$0xf]
    %v2017 = vld [vmem:[%s2 + $0x198] sm:$0xf]
    %v2018 = vld [vmem:[%s2 + $0x19c] sm:$0xf]
    %v2019 = vld [vmem:[%s2 + $0x1a0] sm:$0xf]
    %v2020 = vld [vmem:[%s2 + $0x1a4] sm:$0xf]
    %v2021 = vld [vmem:[%s2 + $0x1a8] sm:$0xf]
    %v2022 = vld [vmem:[%s2 + $0x1ac] sm:$0xf]
    %v2023 = vld [vmem:[%s2 + $0x1b0] sm:$0xf]
    %v2024 = vld [vmem:[%s2 + $0x1b4] sm:$0xf]
    %v2025 = vld [vmem:[%s2 + $0x1b8] sm:$0xf]
    %v2026 = vld [vmem:[%s2 + $0x1bc] sm:$0xf]
    %v2027 = vld [vmem:[%s1 + $0x26] sm:$0x1]
    %v2028 = vlaneseq
    %v2029 = vshrl.u32 %v2028, 7
    %v2030 = vsub.s32 0, %v2029
    %v2031 = vrot.slane %v2027, %v2030
    %v2048 = vunpack.c.l.b16 %v2011
    %v2049 = vunpack.c.l.b16 %v2012
    %v2050 = vunpack.c.l.b16 %v2013
    %v2051 = vunpack.c.l.b16 %v2014
    %v2052 = vunpack.c.l.b16 %v2015
    %v2053 = vunpack.c.l.b16 %v2016
    %v2054 = vunpack.c.l.b16 %v2017
    %v2055 = vunpack.c.l.b16 %v2018
    %v2056 = vunpack.c.l.b16 %v2019
    %v2057 = vunpack.c.l.b16 %v2020
    %v2058 = vunpack.c.l.b16 %v2021
    %v2059 = vunpack.c.l.b16 %v2022
    %v2060 = vunpack.c.l.b16 %v2023
    %v2061 = vunpack.c.l.b16 %v2024
    %v2062 = vunpack.c.l.b16 %v2025
    %v2063 = vunpack.c.l.b16 %v2026
    %v2064 = vpack.c.b16 %v2049, %v2048
    %v2065 = vpack.c.b16 %v2051, %v2050
    %v2066 = vpack.c.b16 %v2053, %v2052
    %v2067 = vpack.c.b16 %v2055, %v2054
    %v2068 = vpack.c.b16 %v2057, %v2056
    %v2069 = vpack.c.b16 %v2059, %v2058
    %v2070 = vpack.c.b16 %v2061, %v2060
    %v2071 = vpack.c.b16 %v2063, %v2062
    %2080 = vmatprep.subr.bf16.mxu0 0
    %2081 = vmatpush1.bf16.msra.mxu0 %v2071
    %2082 = vmatprep.subr.bf16.mxu0 0
    %2083 = vmatpush1.bf16.msra.mxu0 %v2070
    %2084 = vmatprep.subr.bf16.mxu0 0
    %2085 = vmatpush1.bf16.msra.mxu0 %v2069
    %2086 = vmatprep.subr.bf16.mxu0 0
    %2087 = vmatpush1.bf16.msra.mxu0 %v2068
    %2088 = vmatprep.subr.bf16.mxu0 0
    %2089 = vmatpush1.bf16.msra.mxu0 %v2067
    %2090 = vmatprep.subr.bf16.mxu0 0
    %2091 = vmatpush1.bf16.msra.mxu0 %v2066
    %2092 = vmatprep.subr.bf16.mxu0 0
    %2093 = vmatpush1.bf16.msra.mxu0 %v2065
    %2094 = vmatprep.subr.bf16.mxu0 0
    %2095 = vmatpush1.bf16.msra.mxu0 %v2064
    %2096 = vmatprep.subr.bf16.mxu0 0
    %2097 = vmatpush2.bf16.msra.mxu0 0
    %2098 = vmatprep.subr.bf16.mxu0 0
    %2099 = vmatpush2.bf16.msra.mxu0 0
    %2100 = vmatprep.subr.bf16.mxu0 0
    %2101 = vmatpush2.bf16.msra.mxu0 0
    %2102 = vmatprep.subr.bf16.mxu0 0
    %2103 = vmatpush2.bf16.msra.mxu0 0
    %2104 = vmatprep.subr.bf16.mxu0 0
    %2105 = vmatpush2.bf16.msra.mxu0 0
    %2106 = vmatprep.subr.bf16.mxu0 0
    %2107 = vmatpush2.bf16.msra.mxu0 0
    %2108 = vmatprep.subr.bf16.mxu0 0
    %2109 = vmatpush2.bf16.msra.mxu0 0
    %2110 = vmatprep.subr.bf16.mxu0 0
    %2111 = vmatpush2.bf16.msra.mxu0 0
    %2112 = vmatprep.mubr.bf16.mxu0 0
    %2113 = vmatmul.mubr.bf16.gmra.mxu0 %v2009
    %v2114 = vpop.f32.mrf.mxu0
    %v2115 = vadd.f32 %v2031, %v2114
    %v2116 = vpop.f32.mrf.mxu0
    %v2117 = vpop.f32.mrf.mxu0
    %v2118 = vadd.f32 %v2031, %v2117
    %v2119 = vpop.f32.mrf.mxu0
    %2120 = vmatprep.mubr.bf16.mxu0 0
    %2121 = vmatmul.mubr.bf16.gmra.mxu0 %v2010
    %v2122 = vpop.f32.mrf.mxu0
    %v2123 = vadd.f32 %v2031, %v2122
    %v2124 = vpop.f32.mrf.mxu0
    %v2125 = vpop.f32.mrf.mxu0
    %v2126 = vadd.f32 %v2031, %v2125
    %v2127 = vpop.f32.mrf.mxu0
    %2128 = vdwg.mxu0
    %v2129 = vadd.f32 %v1803, %v2115
    %v2130 = vadd.f32 %v1804, %v2118
    %v2131 = vadd.f32 %v1805, %v2123
    %v2132 = vadd.f32 %v1806, %v2126
    %v2133 = vld [vmem:[%s1 + $0x27] sm:$0x1]
    %v2134 = vld [vmem:[%s1 + $0x28] sm:$0x1]
    %2135 = vadd.xlane.f32.xlu0 %v2129
    %v2136 = vpop.xlane.xlu0 %2135
    %2137 = vadd.xlane.f32.xlu0 %v2130
    %v2138 = vpop.xlane.xlu0 %2137
    %2139 = vadd.xlane.f32.xlu0 %v2131
    %v2140 = vpop.xlane.xlu0 %2139
    %2141 = vadd.xlane.f32.xlu0 %v2132
    %v2142 = vpop.xlane.xlu0 %2141
    %v2143 = vmul.f32 %v2136, %v158
    %v2144 = vmul.f32 %v2138, %v158
    %v2145 = vmul.f32 %v2140, %v158
    %v2146 = vmul.f32 %v2142, %v158
    %v2147 = vsub.f32 %v2129, %v2143
    %v2148 = vsub.f32 %v2130, %v2144
    %v2149 = vsub.f32 %v2131, %v2145
    %v2150 = vsub.f32 %v2132, %v2146
    %v2151 = vmul.f32 %v2147, %v2147
    %v2152 = vmul.f32 %v2148, %v2148
    %v2153 = vmul.f32 %v2149, %v2149
    %v2154 = vmul.f32 %v2150, %v2150
    %2155 = vadd.xlane.f32.xlu0 %v2151
    %v2156 = vpop.xlane.xlu0 %2155
    %2157 = vadd.xlane.f32.xlu0 %v2152
    %v2158 = vpop.xlane.xlu0 %2157
    %2159 = vadd.xlane.f32.xlu0 %v2153
    %v2160 = vpop.xlane.xlu0 %2159
    %2161 = vadd.xlane.f32.xlu0 %v2154
    %v2162 = vpop.xlane.xlu0 %2161
    %v2163 = vmul.f32 %v2156, %v158
    %v2164 = vmul.f32 %v2158, %v158
    %v2165 = vmul.f32 %v2160, %v158
    %v2166 = vmul.f32 %v2162, %v158
    %v2167 = vadd.f32 %v2163, 1e-05
    %v2168 = vadd.f32 %v2164, 1e-05
    %v2169 = vadd.f32 %v2165, 1e-05
    %v2170 = vadd.f32 %v2166, 1e-05
    %v2171 = vrsqrt.pop %v2167
    %v2172 = vrsqrt.pop %v2168
    %v2173 = vrsqrt.pop %v2169
    %v2174 = vrsqrt.pop %v2170
    %v2175 = vmul.f32 %v2147, %v2171
    %v2176 = vmul.f32 %v2148, %v2172
    %v2177 = vmul.f32 %v2149, %v2173
    %v2178 = vmul.f32 %v2150, %v2174
    %v2179 = vlaneseq
    %v2180 = vshrl.u32 %v2179, 7
    %v2181 = vsub.s32 0, %v2180
    %v2182 = vrot.slane %v2133, %v2181
    %v2183 = vmul.f32 %v2175, %v2182
    %v2184 = vmul.f32 %v2176, %v2182
    %v2185 = vmul.f32 %v2177, %v2182
    %v2186 = vmul.f32 %v2178, %v2182
    %v2187 = vlaneseq
    %v2188 = vshrl.u32 %v2187, 7
    %v2189 = vsub.s32 0, %v2188
    %v2190 = vrot.slane %v2134, %v2189
    %v2191 = vadd.f32 %v2183, %v2190
    %v2192 = vadd.f32 %v2184, %v2190
    %v2193 = vadd.f32 %v2185, %v2190
    %v2194 = vadd.f32 %v2186, %v2190
    %v2195 = vpack.c.bf16 %v2192, %v2191
    %v2196 = vpack.c.bf16 %v2194, %v2193
    %v2197 = vld [vmem:[%s2 + $0x1c0] sm:$0xf]
    %v2198 = vld [vmem:[%s2 + $0x1c4] sm:$0xf]
    %v2199 = vld [vmem:[%s2 + $0x1c8] sm:$0xf]
    %v2200 = vld [vmem:[%s2 + $0x1cc] sm:$0xf]
    %v2201 = vld [vmem:[%s2 + $0x1d0] sm:$0xf]
    %v2202 = vld [vmem:[%s2 + $0x1d4] sm:$0xf]
    %v2203 = vld [vmem:[%s2 + $0x1d8] sm:$0xf]
    %v2204 = vld [vmem:[%s2 + $0x1dc] sm:$0xf]
    %v2205 = vld [vmem:[%s2 + $0x1e0] sm:$0xf]
    %v2206 = vld [vmem:[%s2 + $0x1e4] sm:$0xf]
    %v2207 = vld [vmem:[%s2 + $0x1e8] sm:$0xf]
    %v2208 = vld [vmem:[%s2 + $0x1ec] sm:$0xf]
    %v2209 = vld [vmem:[%s2 + $0x1f0] sm:$0xf]
    %v2210 = vld [vmem:[%s2 + $0x1f4] sm:$0xf]
    %v2211 = vld [vmem:[%s2 + $0x1f8] sm:$0xf]
    %v2212 = vld [vmem:[%s2 + $0x1fc] sm:$0xf]
    %v2229 = vunpack.c.l.b16 %v2197
    %v2230 = vunpack.c.l.b16 %v2198
    %v2231 = vunpack.c.l.b16 %v2199
    %v2232 = vunpack.c.l.b16 %v2200
    %v2233 = vunpack.c.l.b16 %v2201
    %v2234 = vunpack.c.l.b16 %v2202
    %v2235 = vunpack.c.l.b16 %v2203
    %v2236 = vunpack.c.l.b16 %v2204
    %v2237 = vunpack.c.l.b16 %v2205
    %v2238 = vunpack.c.l.b16 %v2206
    %v2239 = vunpack.c.l.b16 %v2207
    %v2240 = vunpack.c.l.b16 %v2208
    %v2241 = vunpack.c.l.b16 %v2209
    %v2242 = vunpack.c.l.b16 %v2210
    %v2243 = vunpack.c.l.b16 %v2211
    %v2244 = vunpack.c.l.b16 %v2212
    %v2245 = vpack.c.b16 %v2230, %v2229
    %v2246 = vpack.c.b16 %v2232, %v2231
    %v2247 = vpack.c.b16 %v2234, %v2233
    %v2248 = vpack.c.b16 %v2236, %v2235
    %v2249 = vpack.c.b16 %v2238, %v2237
    %v2250 = vpack.c.b16 %v2240, %v2239
    %v2251 = vpack.c.b16 %v2242, %v2241
    %v2252 = vpack.c.b16 %v2244, %v2243
    %2261 = vmatprep.subr.bf16.mxu0 0
    %2262 = vmatpush1.bf16.msra.mxu0 %v2252
    %2263 = vmatprep.subr.bf16.mxu0 0
    %2264 = vmatpush1.bf16.msra.mxu0 %v2251
    %2265 = vmatprep.subr.bf16.mxu0 0
    %2266 = vmatpush1.bf16.msra.mxu0 %v2250
    %2267 = vmatprep.subr.bf16.mxu0 0
    %2268 = vmatpush1.bf16.msra.mxu0 %v2249
    %2269 = vmatprep.subr.bf16.mxu0 0
    %2270 = vmatpush1.bf16.msra.mxu0 %v2248
    %2271 = vmatprep.subr.bf16.mxu0 0
    %2272 = vmatpush1.bf16.msra.mxu0 %v2247
    %2273 = vmatprep.subr.bf16.mxu0 0
    %2274 = vmatpush1.bf16.msra.mxu0 %v2246
    %2275 = vmatprep.subr.bf16.mxu0 0
    %2276 = vmatpush1.bf16.msra.mxu0 %v2245
    %2277 = vmatprep.subr.bf16.mxu0 0
    %2278 = vmatpush2.bf16.msra.mxu0 0
    %2279 = vmatprep.subr.bf16.mxu0 0
    %2280 = vmatpush2.bf16.msra.mxu0 0
    %2281 = vmatprep.subr.bf16.mxu0 0
    %2282 = vmatpush2.bf16.msra.mxu0 0
    %2283 = vmatprep.subr.bf16.mxu0 0
    %2284 = vmatpush2.bf16.msra.mxu0 0
    %2285 = vmatprep.subr.bf16.mxu0 0
    %2286 = vmatpush2.bf16.msra.mxu0 0
    %2287 = vmatprep.subr.bf16.mxu0 0
    %2288 = vmatpush2.bf16.msra.mxu0 0
    %2289 = vmatprep.subr.bf16.mxu0 0
    %2290 = vmatpush2.bf16.msra.mxu0 0
    %2291 = vmatprep.subr.bf16.mxu0 0
    %2292 = vmatpush2.bf16.msra.mxu0 0
    %2293 = vmatprep.mubr.bf16.mxu0 0
    %2294 = vmatmul.mubr.bf16.gmra.mxu0 %v2195
    %v2295 = vpop.f32.mrf.mxu0
    %v2296 = vadd.f32 0.0, %v2295
    %v2297 = vpop.f32.mrf.mxu0
    %v2298 = vpop.f32.mrf.mxu0
    %v2299 = vadd.f32 0.0, %v2298
    %v2300 = vpop.f32.mrf.mxu0
    %2301 = vmatprep.mubr.bf16.mxu0 0
    %2302 = vmatmul.mubr.bf16.gmra.mxu0 %v2196
    %v2303 = vpop.f32.mrf.mxu0
    %v2304 = vadd.f32 0.0, %v2303
    %v2305 = vpop.f32.mrf.mxu0
    %v2306 = vpop.f32.mrf.mxu0
    %v2307 = vadd.f32 0.0, %v2306
    %v2308 = vpop.f32.mrf.mxu0
    %2309 = vdwg.mxu0
    %v2310 = vld [vmem:[%s2 + $0x200] sm:$0xf]
    %v2311 = vld [vmem:[%s2 + $0x204] sm:$0xf]
    %v2312 = vld [vmem:[%s2 + $0x208] sm:$0xf]
    %v2313 = vld [vmem:[%s2 + $0x20c] sm:$0xf]
    %v2314 = vld [vmem:[%s2 + $0x210] sm:$0xf]
    %v2315 = vld [vmem:[%s2 + $0x214] sm:$0xf]
    %v2316 = vld [vmem:[%s2 + $0x218] sm:$0xf]
    %v2317 = vld [vmem:[%s2 + $0x21c] sm:$0xf]
    %v2318 = vld [vmem:[%s2 + $0x220] sm:$0xf]
    %v2319 = vld [vmem:[%s2 + $0x224] sm:$0xf]
    %v2320 = vld [vmem:[%s2 + $0x228] sm:$0xf]
    %v2321 = vld [vmem:[%s2 + $0x22c] sm:$0xf]
    %v2322 = vld [vmem:[%s2 + $0x230] sm:$0xf]
    %v2323 = vld [vmem:[%s2 + $0x234] sm:$0xf]
    %v2324 = vld [vmem:[%s2 + $0x238] sm:$0xf]
    %v2325 = vld [vmem:[%s2 + $0x23c] sm:$0xf]
    %v2342 = vunpack.c.l.b16 %v2310
    %v2343 = vunpack.c.l.b16 %v2311
    %v2344 = vunpack.c.l.b16 %v2312
    %v2345 = vunpack.c.l.b16 %v2313
    %v2346 = vunpack.c.l.b16 %v2314
    %v2347 = vunpack.c.l.b16 %v2315
    %v2348 = vunpack.c.l.b16 %v2316
    %v2349 = vunpack.c.l.b16 %v2317
    %v2350 = vunpack.c.l.b16 %v2318
    %v2351 = vunpack.c.l.b16 %v2319
    %v2352 = vunpack.c.l.b16 %v2320
    %v2353 = vunpack.c.l.b16 %v2321
    %v2354 = vunpack.c.l.b16 %v2322
    %v2355 = vunpack.c.l.b16 %v2323
    %v2356 = vunpack.c.l.b16 %v2324
    %v2357 = vunpack.c.l.b16 %v2325
    %v2358 = vpack.c.b16 %v2343, %v2342
    %v2359 = vpack.c.b16 %v2345, %v2344
    %v2360 = vpack.c.b16 %v2347, %v2346
    %v2361 = vpack.c.b16 %v2349, %v2348
    %v2362 = vpack.c.b16 %v2351, %v2350
    %v2363 = vpack.c.b16 %v2353, %v2352
    %v2364 = vpack.c.b16 %v2355, %v2354
    %v2365 = vpack.c.b16 %v2357, %v2356
    %2374 = vmatprep.subr.bf16.mxu0 0
    %2375 = vmatpush1.bf16.msra.mxu0 %v2365
    %2376 = vmatprep.subr.bf16.mxu0 0
    %2377 = vmatpush1.bf16.msra.mxu0 %v2364
    %2378 = vmatprep.subr.bf16.mxu0 0
    %2379 = vmatpush1.bf16.msra.mxu0 %v2363
    %2380 = vmatprep.subr.bf16.mxu0 0
    %2381 = vmatpush1.bf16.msra.mxu0 %v2362
    %2382 = vmatprep.subr.bf16.mxu0 0
    %2383 = vmatpush1.bf16.msra.mxu0 %v2361
    %2384 = vmatprep.subr.bf16.mxu0 0
    %2385 = vmatpush1.bf16.msra.mxu0 %v2360
    %2386 = vmatprep.subr.bf16.mxu0 0
    %2387 = vmatpush1.bf16.msra.mxu0 %v2359
    %2388 = vmatprep.subr.bf16.mxu0 0
    %2389 = vmatpush1.bf16.msra.mxu0 %v2358
    %2390 = vmatprep.subr.bf16.mxu0 0
    %2391 = vmatpush2.bf16.msra.mxu0 0
    %2392 = vmatprep.subr.bf16.mxu0 0
    %2393 = vmatpush2.bf16.msra.mxu0 0
    %2394 = vmatprep.subr.bf16.mxu0 0
    %2395 = vmatpush2.bf16.msra.mxu0 0
    %2396 = vmatprep.subr.bf16.mxu0 0
    %2397 = vmatpush2.bf16.msra.mxu0 0
    %2398 = vmatprep.subr.bf16.mxu0 0
    %2399 = vmatpush2.bf16.msra.mxu0 0
    %2400 = vmatprep.subr.bf16.mxu0 0
    %2401 = vmatpush2.bf16.msra.mxu0 0
    %2402 = vmatprep.subr.bf16.mxu0 0
    %2403 = vmatpush2.bf16.msra.mxu0 0
    %2404 = vmatprep.subr.bf16.mxu0 0
    %2405 = vmatpush2.bf16.msra.mxu0 0
    %2406 = vmatprep.mubr.bf16.mxu0 0
    %2407 = vmatmul.mubr.bf16.gmra.mxu0 %v2195
    %v2408 = vpop.f32.mrf.mxu0
    %v2409 = vadd.f32 0.0, %v2408
    %v2410 = vpop.f32.mrf.mxu0
    %v2411 = vpop.f32.mrf.mxu0
    %v2412 = vadd.f32 0.0, %v2411
    %v2413 = vpop.f32.mrf.mxu0
    %2414 = vmatprep.mubr.bf16.mxu0 0
    %2415 = vmatmul.mubr.bf16.gmra.mxu0 %v2196
    %v2416 = vpop.f32.mrf.mxu0
    %v2417 = vadd.f32 0.0, %v2416
    %v2418 = vpop.f32.mrf.mxu0
    %v2419 = vpop.f32.mrf.mxu0
    %v2420 = vadd.f32 0.0, %v2419
    %v2421 = vpop.f32.mrf.mxu0
    %2422 = vdwg.mxu0
    %v2423 = vld [vmem:[%s2 + $0x240] sm:$0xf]
    %v2424 = vld [vmem:[%s2 + $0x244] sm:$0xf]
    %v2425 = vld [vmem:[%s2 + $0x248] sm:$0xf]
    %v2426 = vld [vmem:[%s2 + $0x24c] sm:$0xf]
    %v2427 = vld [vmem:[%s2 + $0x250] sm:$0xf]
    %v2428 = vld [vmem:[%s2 + $0x254] sm:$0xf]
    %v2429 = vld [vmem:[%s2 + $0x258] sm:$0xf]
    %v2430 = vld [vmem:[%s2 + $0x25c] sm:$0xf]
    %v2431 = vld [vmem:[%s2 + $0x260] sm:$0xf]
    %v2432 = vld [vmem:[%s2 + $0x264] sm:$0xf]
    %v2433 = vld [vmem:[%s2 + $0x268] sm:$0xf]
    %v2434 = vld [vmem:[%s2 + $0x26c] sm:$0xf]
    %v2435 = vld [vmem:[%s2 + $0x270] sm:$0xf]
    %v2436 = vld [vmem:[%s2 + $0x274] sm:$0xf]
    %v2437 = vld [vmem:[%s2 + $0x278] sm:$0xf]
    %v2438 = vld [vmem:[%s2 + $0x27c] sm:$0xf]
    %v2455 = vunpack.c.l.b16 %v2423
    %v2456 = vunpack.c.l.b16 %v2424
    %v2457 = vunpack.c.l.b16 %v2425
    %v2458 = vunpack.c.l.b16 %v2426
    %v2459 = vunpack.c.l.b16 %v2427
    %v2460 = vunpack.c.l.b16 %v2428
    %v2461 = vunpack.c.l.b16 %v2429
    %v2462 = vunpack.c.l.b16 %v2430
    %v2463 = vunpack.c.l.b16 %v2431
    %v2464 = vunpack.c.l.b16 %v2432
    %v2465 = vunpack.c.l.b16 %v2433
    %v2466 = vunpack.c.l.b16 %v2434
    %v2467 = vunpack.c.l.b16 %v2435
    %v2468 = vunpack.c.l.b16 %v2436
    %v2469 = vunpack.c.l.b16 %v2437
    %v2470 = vunpack.c.l.b16 %v2438
    %v2471 = vpack.c.b16 %v2456, %v2455
    %v2472 = vpack.c.b16 %v2458, %v2457
    %v2473 = vpack.c.b16 %v2460, %v2459
    %v2474 = vpack.c.b16 %v2462, %v2461
    %v2475 = vpack.c.b16 %v2464, %v2463
    %v2476 = vpack.c.b16 %v2466, %v2465
    %v2477 = vpack.c.b16 %v2468, %v2467
    %v2478 = vpack.c.b16 %v2470, %v2469
    %2487 = vmatprep.subr.bf16.mxu0 0
    %2488 = vmatpush1.bf16.msra.mxu0 %v2478
    %2489 = vmatprep.subr.bf16.mxu0 0
    %2490 = vmatpush1.bf16.msra.mxu0 %v2477
    %2491 = vmatprep.subr.bf16.mxu0 0
    %2492 = vmatpush1.bf16.msra.mxu0 %v2476
    %2493 = vmatprep.subr.bf16.mxu0 0
    %2494 = vmatpush1.bf16.msra.mxu0 %v2475
    %2495 = vmatprep.subr.bf16.mxu0 0
    %2496 = vmatpush1.bf16.msra.mxu0 %v2474
    %2497 = vmatprep.subr.bf16.mxu0 0
    %2498 = vmatpush1.bf16.msra.mxu0 %v2473
    %2499 = vmatprep.subr.bf16.mxu0 0
    %2500 = vmatpush1.bf16.msra.mxu0 %v2472
    %2501 = vmatprep.subr.bf16.mxu0 0
    %2502 = vmatpush1.bf16.msra.mxu0 %v2471
    %2503 = vmatprep.subr.bf16.mxu0 0
    %2504 = vmatpush2.bf16.msra.mxu0 0
    %2505 = vmatprep.subr.bf16.mxu0 0
    %2506 = vmatpush2.bf16.msra.mxu0 0
    %2507 = vmatprep.subr.bf16.mxu0 0
    %2508 = vmatpush2.bf16.msra.mxu0 0
    %2509 = vmatprep.subr.bf16.mxu0 0
    %2510 = vmatpush2.bf16.msra.mxu0 0
    %2511 = vmatprep.subr.bf16.mxu0 0
    %2512 = vmatpush2.bf16.msra.mxu0 0
    %2513 = vmatprep.subr.bf16.mxu0 0
    %2514 = vmatpush2.bf16.msra.mxu0 0
    %2515 = vmatprep.subr.bf16.mxu0 0
    %2516 = vmatpush2.bf16.msra.mxu0 0
    %2517 = vmatprep.subr.bf16.mxu0 0
    %2518 = vmatpush2.bf16.msra.mxu0 0
    %2519 = vmatprep.mubr.bf16.mxu0 0
    %2520 = vmatmul.mubr.bf16.gmra.mxu0 %v2195
    %v2521 = vpop.f32.mrf.mxu0
    %v2522 = vadd.f32 0.0, %v2521
    %v2523 = vpop.f32.mrf.mxu0
    %v2524 = vpop.f32.mrf.mxu0
    %v2525 = vadd.f32 0.0, %v2524
    %v2526 = vpop.f32.mrf.mxu0
    %2527 = vmatprep.mubr.bf16.mxu0 0
    %2528 = vmatmul.mubr.bf16.gmra.mxu0 %v2196
    %v2529 = vpop.f32.mrf.mxu0
    %v2530 = vadd.f32 0.0, %v2529
    %v2531 = vpop.f32.mrf.mxu0
    %v2532 = vpop.f32.mrf.mxu0
    %v2533 = vadd.f32 0.0, %v2532
    %v2534 = vpop.f32.mrf.mxu0
    %2535 = vdwg.mxu0
    %2540 = vrot.lane.b32.xlu0 %v2296, 96
    %v2541 = vpop.permute.xlu0 %2540
    %2542 = vrot.lane.b32.xlu0 %v2299, 96
    %v2543 = vpop.permute.xlu0 %2542
    %2544 = vrot.lane.b32.xlu0 %v2304, 96
    %v2545 = vpop.permute.xlu0 %2544
    %2546 = vrot.lane.b32.xlu0 %v2307, 96
    %v2547 = vpop.permute.xlu0 %2546
    %2552 = vrot.lane.b32.xlu0 %v2296, 64
    %v2553 = vpop.permute.xlu0 %2552
    %2554 = vrot.lane.b32.xlu0 %v2299, 64
    %v2555 = vpop.permute.xlu0 %2554
    %2556 = vrot.lane.b32.xlu0 %v2304, 64
    %v2557 = vpop.permute.xlu0 %2556
    %2558 = vrot.lane.b32.xlu0 %v2307, 64
    %v2559 = vpop.permute.xlu0 %2558
    %2564 = vrot.lane.b32.xlu0 %v2296, 32
    %v2565 = vpop.permute.xlu0 %2564
    %2566 = vrot.lane.b32.xlu0 %v2299, 32
    %v2567 = vpop.permute.xlu0 %2566
    %2568 = vrot.lane.b32.xlu0 %v2304, 32
    %v2569 = vpop.permute.xlu0 %2568
    %2570 = vrot.lane.b32.xlu0 %v2307, 32
    %v2571 = vpop.permute.xlu0 %2570
    %v2576 = vpack.c.bf16 %v2299, %v2296
    %v2577 = vpack.c.bf16 %v2307, %v2304
    %v2578 = vpack.c.bf16 %v2543, %v2541
    %v2579 = vpack.c.bf16 %v2547, %v2545
    %v2580 = vpack.c.bf16 %v2555, %v2553
    %v2581 = vpack.c.bf16 %v2559, %v2557
    %v2582 = vpack.c.bf16 %v2567, %v2565
    %v2583 = vpack.c.bf16 %v2571, %v2569
    %2588 = vrot.lane.b32.xlu0 %v2409, 96
    %v2589 = vpop.permute.xlu0 %2588
    %2590 = vrot.lane.b32.xlu0 %v2412, 96
    %v2591 = vpop.permute.xlu0 %2590
    %2592 = vrot.lane.b32.xlu0 %v2417, 96
    %v2593 = vpop.permute.xlu0 %2592
    %2594 = vrot.lane.b32.xlu0 %v2420, 96
    %v2595 = vpop.permute.xlu0 %2594
    %2600 = vrot.lane.b32.xlu0 %v2409, 64
    %v2601 = vpop.permute.xlu0 %2600
    %2602 = vrot.lane.b32.xlu0 %v2412, 64
    %v2603 = vpop.permute.xlu0 %2602
    %2604 = vrot.lane.b32.xlu0 %v2417, 64
    %v2605 = vpop.permute.xlu0 %2604
    %2606 = vrot.lane.b32.xlu0 %v2420, 64
    %v2607 = vpop.permute.xlu0 %2606
    %2612 = vrot.lane.b32.xlu0 %v2409, 32
    %v2613 = vpop.permute.xlu0 %2612
    %2614 = vrot.lane.b32.xlu0 %v2412, 32
    %v2615 = vpop.permute.xlu0 %2614
    %2616 = vrot.lane.b32.xlu0 %v2417, 32
    %v2617 = vpop.permute.xlu0 %2616
    %2618 = vrot.lane.b32.xlu0 %v2420, 32
    %v2619 = vpop.permute.xlu0 %2618
    %v2624 = vpack.c.bf16 %v2412, %v2409
    %v2625 = vpack.c.bf16 %v2420, %v2417
    %v2626 = vpack.c.bf16 %v2591, %v2589
    %v2627 = vpack.c.bf16 %v2595, %v2593
    %v2628 = vpack.c.bf16 %v2603, %v2601
    %v2629 = vpack.c.bf16 %v2607, %v2605
    %v2630 = vpack.c.bf16 %v2615, %v2613
    %v2631 = vpack.c.bf16 %v2619, %v2617
    %2636 = vrot.lane.b32.xlu0 %v2522, 96
    %v2637 = vpop.permute.xlu0 %2636
    %2638 = vrot.lane.b32.xlu0 %v2525, 96
    %v2639 = vpop.permute.xlu0 %2638
    %2640 = vrot.lane.b32.xlu0 %v2530, 96
    %v2641 = vpop.permute.xlu0 %2640
    %2642 = vrot.lane.b32.xlu0 %v2533, 96
    %v2643 = vpop.permute.xlu0 %2642
    %2648 = vrot.lane.b32.xlu0 %v2522, 64
    %v2649 = vpop.permute.xlu0 %2648
    %2650 = vrot.lane.b32.xlu0 %v2525, 64
    %v2651 = vpop.permute.xlu0 %2650
    %2652 = vrot.lane.b32.xlu0 %v2530, 64
    %v2653 = vpop.permute.xlu0 %2652
    %2654 = vrot.lane.b32.xlu0 %v2533, 64
    %v2655 = vpop.permute.xlu0 %2654
    %2660 = vrot.lane.b32.xlu0 %v2522, 32
    %v2661 = vpop.permute.xlu0 %2660
    %2662 = vrot.lane.b32.xlu0 %v2525, 32
    %v2663 = vpop.permute.xlu0 %2662
    %2664 = vrot.lane.b32.xlu0 %v2530, 32
    %v2665 = vpop.permute.xlu0 %2664
    %2666 = vrot.lane.b32.xlu0 %v2533, 32
    %v2667 = vpop.permute.xlu0 %2666
    %v2672 = vpack.c.bf16 %v2525, %v2522
    %v2673 = vpack.c.bf16 %v2533, %v2530
    %v2674 = vpack.c.bf16 %v2639, %v2637
    %v2675 = vpack.c.bf16 %v2643, %v2641
    %v2676 = vpack.c.bf16 %v2651, %v2649
    %v2677 = vpack.c.bf16 %v2655, %v2653
    %v2678 = vpack.c.bf16 %v2663, %v2661
    %v2679 = vpack.c.bf16 %v2667, %v2665
    %v2681 = vsel %vm696, %v2576, 0
    %v2684 = vsel %vm696, %v2624, 0
    %2686 = vmatprep.subr.bf16.mxu0 0
    %2687 = vmatpush1.bf16.xpose.msra.mxu0 0
    %2688 = vmatprep.subr.bf16.mxu0 0
    %2689 = vmatpush1.bf16.xpose.msra.mxu0 0
    %2690 = vmatprep.subr.bf16.mxu0 0
    %2691 = vmatpush1.bf16.xpose.msra.mxu0 0
    %2692 = vmatprep.subr.bf16.mxu0 0
    %2693 = vmatpush1.bf16.xpose.msra.mxu0 0
    %2694 = vmatprep.subr.bf16.mxu0 0
    %2695 = vmatpush1.bf16.xpose.msra.mxu0 0
    %2696 = vmatprep.subr.bf16.mxu0 0
    %2697 = vmatpush1.bf16.xpose.msra.mxu0 0
    %2698 = vmatprep.subr.bf16.mxu0 0
    %2699 = vmatpush1.bf16.xpose.msra.mxu0 0
    %2700 = vmatprep.subr.bf16.mxu0 0
    %2701 = vmatpush1.bf16.xpose.msra.mxu0 %v2684
    %2702 = vmatprep.subr.bf16.mxu0 0
    %2703 = vmatpush2.bf16.xpose.msra.mxu0 0
    %2704 = vmatprep.subr.bf16.mxu0 0
    %2705 = vmatpush2.bf16.xpose.msra.mxu0 0
    %2706 = vmatprep.subr.bf16.mxu0 0
    %2707 = vmatpush2.bf16.xpose.msra.mxu0 0
    %2708 = vmatprep.subr.bf16.mxu0 0
    %2709 = vmatpush2.bf16.xpose.msra.mxu0 0
    %2710 = vmatprep.subr.bf16.mxu0 0
    %2711 = vmatpush2.bf16.xpose.msra.mxu0 0
    %2712 = vmatprep.subr.bf16.mxu0 0
    %2713 = vmatpush2.bf16.xpose.msra.mxu0 0
    %2714 = vmatprep.subr.bf16.mxu0 0
    %2715 = vmatpush2.bf16.xpose.msra.mxu0 0
    %2716 = vmatprep.subr.bf16.mxu0 0
    %2717 = vmatpush2.bf16.xpose.msra.mxu0 0
    %2718 = vmatprep.mubr.bf16.mxu0 0
    %2719 = vmatmul.mubr.bf16.gmra.mxu0 %v2681
    %v2720 = vpop.f32.mrf.mxu0
    %v2721 = vadd.f32 0.0, %v2720
    %v2722 = vpop.f32.mrf.mxu0
    %v2723 = vpop.f32.mrf.mxu0
    %v2724 = vadd.f32 0.0, %v2723
    %v2725 = vpop.f32.mrf.mxu0
    %2726 = vdwg.mxu0
    %v2728 = vsel %vm696, %v2577, 0
    %v2731 = vsel %vm696, %v2625, 0
    %2733 = vmatprep.subr.bf16.mxu0 0
    %2734 = vmatpush1.bf16.xpose.msra.mxu0 0
    %2735 = vmatprep.subr.bf16.mxu0 0
    %2736 = vmatpush1.bf16.xpose.msra.mxu0 0
    %2737 = vmatprep.subr.bf16.mxu0 0
    %2738 = vmatpush1.bf16.xpose.msra.mxu0 0
    %2739 = vmatprep.subr.bf16.mxu0 0
    %2740 = vmatpush1.bf16.xpose.msra.mxu0 0
    %2741 = vmatprep.subr.bf16.mxu0 0
    %2742 = vmatpush1.bf16.xpose.msra.mxu0 0
    %2743 = vmatprep.subr.bf16.mxu0 0
    %2744 = vmatpush1.bf16.xpose.msra.mxu0 0
    %2745 = vmatprep.subr.bf16.mxu0 0
    %2746 = vmatpush1.bf16.xpose.msra.mxu0 0
    %2747 = vmatprep.subr.bf16.mxu0 0
    %2748 = vmatpush1.bf16.xpose.msra.mxu0 %v2731
    %2749 = vmatprep.subr.bf16.mxu0 0
    %2750 = vmatpush2.bf16.xpose.msra.mxu0 0
    %2751 = vmatprep.subr.bf16.mxu0 0
    %2752 = vmatpush2.bf16.xpose.msra.mxu0 0
    %2753 = vmatprep.subr.bf16.mxu0 0
    %2754 = vmatpush2.bf16.xpose.msra.mxu0 0
    %2755 = vmatprep.subr.bf16.mxu0 0
    %2756 = vmatpush2.bf16.xpose.msra.mxu0 0
    %2757 = vmatprep.subr.bf16.mxu0 0
    %2758 = vmatpush2.bf16.xpose.msra.mxu0 0
    %2759 = vmatprep.subr.bf16.mxu0 0
    %2760 = vmatpush2.bf16.xpose.msra.mxu0 0
    %2761 = vmatprep.subr.bf16.mxu0 0
    %2762 = vmatpush2.bf16.xpose.msra.mxu0 0
    %2763 = vmatprep.subr.bf16.mxu0 0
    %2764 = vmatpush2.bf16.xpose.msra.mxu0 0
    %2765 = vmatprep.mubr.bf16.mxu0 0
    %2766 = vmatmul.mubr.bf16.gmra.mxu0 %v2728
    %v2767 = vpop.f32.mrf.mxu0
    %v2768 = vadd.f32 0.0, %v2767
    %v2769 = vpop.f32.mrf.mxu0
    %v2770 = vpop.f32.mrf.mxu0
    %v2771 = vadd.f32 0.0, %v2770
    %v2772 = vpop.f32.mrf.mxu0
    %2773 = vdwg.mxu0
    %v2775 = vsel %vm696, %v2578, 0
    %v2778 = vsel %vm696, %v2626, 0
    %2780 = vmatprep.subr.bf16.mxu0 0
    %2781 = vmatpush1.bf16.xpose.msra.mxu0 0
    %2782 = vmatprep.subr.bf16.mxu0 0
    %2783 = vmatpush1.bf16.xpose.msra.mxu0 0
    %2784 = vmatprep.subr.bf16.mxu0 0
    %2785 = vmatpush1.bf16.xpose.msra.mxu0 0
    %2786 = vmatprep.subr.bf16.mxu0 0
    %2787 = vmatpush1.bf16.xpose.msra.mxu0 0
    %2788 = vmatprep.subr.bf16.mxu0 0
    %2789 = vmatpush1.bf16.xpose.msra.mxu0 0
    %2790 = vmatprep.subr.bf16.mxu0 0
    %2791 = vmatpush1.bf16.xpose.msra.mxu0 0
    %2792 = vmatprep.subr.bf16.mxu0 0
    %2793 = vmatpush1.bf16.xpose.msra.mxu0 0
    %2794 = vmatprep.subr.bf16.mxu0 0
    %2795 = vmatpush1.bf16.xpose.msra.mxu0 %v2778
    %2796 = vmatprep.subr.bf16.mxu0 0
    %2797 = vmatpush2.bf16.xpose.msra.mxu0 0
    %2798 = vmatprep.subr.bf16.mxu0 0
    %2799 = vmatpush2.bf16.xpose.msra.mxu0 0
    %2800 = vmatprep.subr.bf16.mxu0 0
    %2801 = vmatpush2.bf16.xpose.msra.mxu0 0
    %2802 = vmatprep.subr.bf16.mxu0 0
    %2803 = vmatpush2.bf16.xpose.msra.mxu0 0
    %2804 = vmatprep.subr.bf16.mxu0 0
    %2805 = vmatpush2.bf16.xpose.msra.mxu0 0
    %2806 = vmatprep.subr.bf16.mxu0 0
    %2807 = vmatpush2.bf16.xpose.msra.mxu0 0
    %2808 = vmatprep.subr.bf16.mxu0 0
    %2809 = vmatpush2.bf16.xpose.msra.mxu0 0
    %2810 = vmatprep.subr.bf16.mxu0 0
    %2811 = vmatpush2.bf16.xpose.msra.mxu0 0
    %2812 = vmatprep.mubr.bf16.mxu0 0
    %2813 = vmatmul.mubr.bf16.gmra.mxu0 %v2775
    %v2814 = vpop.f32.mrf.mxu0
    %v2815 = vadd.f32 0.0, %v2814
    %v2816 = vpop.f32.mrf.mxu0
    %v2817 = vpop.f32.mrf.mxu0
    %v2818 = vadd.f32 0.0, %v2817
    %v2819 = vpop.f32.mrf.mxu0
    %2820 = vdwg.mxu0
    %v2822 = vsel %vm696, %v2579, 0
    %v2825 = vsel %vm696, %v2627, 0
    %2827 = vmatprep.subr.bf16.mxu0 0
    %2828 = vmatpush1.bf16.xpose.msra.mxu0 0
    %2829 = vmatprep.subr.bf16.mxu0 0
    %2830 = vmatpush1.bf16.xpose.msra.mxu0 0
    %2831 = vmatprep.subr.bf16.mxu0 0
    %2832 = vmatpush1.bf16.xpose.msra.mxu0 0
    %2833 = vmatprep.subr.bf16.mxu0 0
    %2834 = vmatpush1.bf16.xpose.msra.mxu0 0
    %2835 = vmatprep.subr.bf16.mxu0 0
    %2836 = vmatpush1.bf16.xpose.msra.mxu0 0
    %2837 = vmatprep.subr.bf16.mxu0 0
    %2838 = vmatpush1.bf16.xpose.msra.mxu0 0
    %2839 = vmatprep.subr.bf16.mxu0 0
    %2840 = vmatpush1.bf16.xpose.msra.mxu0 0
    %2841 = vmatprep.subr.bf16.mxu0 0
    %2842 = vmatpush1.bf16.xpose.msra.mxu0 %v2825
    %2843 = vmatprep.subr.bf16.mxu0 0
    %2844 = vmatpush2.bf16.xpose.msra.mxu0 0
    %2845 = vmatprep.subr.bf16.mxu0 0
    %2846 = vmatpush2.bf16.xpose.msra.mxu0 0
    %2847 = vmatprep.subr.bf16.mxu0 0
    %2848 = vmatpush2.bf16.xpose.msra.mxu0 0
    %2849 = vmatprep.subr.bf16.mxu0 0
    %2850 = vmatpush2.bf16.xpose.msra.mxu0 0
    %2851 = vmatprep.subr.bf16.mxu0 0
    %2852 = vmatpush2.bf16.xpose.msra.mxu0 0
    %2853 = vmatprep.subr.bf16.mxu0 0
    %2854 = vmatpush2.bf16.xpose.msra.mxu0 0
    %2855 = vmatprep.subr.bf16.mxu0 0
    %2856 = vmatpush2.bf16.xpose.msra.mxu0 0
    %2857 = vmatprep.subr.bf16.mxu0 0
    %2858 = vmatpush2.bf16.xpose.msra.mxu0 0
    %2859 = vmatprep.mubr.bf16.mxu0 0
    %2860 = vmatmul.mubr.bf16.gmra.mxu0 %v2822
    %v2861 = vpop.f32.mrf.mxu0
    %v2862 = vadd.f32 0.0, %v2861
    %v2863 = vpop.f32.mrf.mxu0
    %v2864 = vpop.f32.mrf.mxu0
    %v2865 = vadd.f32 0.0, %v2864
    %v2866 = vpop.f32.mrf.mxu0
    %2867 = vdwg.mxu0
    %v2869 = vsel %vm696, %v2580, 0
    %v2872 = vsel %vm696, %v2628, 0
    %2874 = vmatprep.subr.bf16.mxu0 0
    %2875 = vmatpush1.bf16.xpose.msra.mxu0 0
    %2876 = vmatprep.subr.bf16.mxu0 0
    %2877 = vmatpush1.bf16.xpose.msra.mxu0 0
    %2878 = vmatprep.subr.bf16.mxu0 0
    %2879 = vmatpush1.bf16.xpose.msra.mxu0 0
    %2880 = vmatprep.subr.bf16.mxu0 0
    %2881 = vmatpush1.bf16.xpose.msra.mxu0 0
    %2882 = vmatprep.subr.bf16.mxu0 0
    %2883 = vmatpush1.bf16.xpose.msra.mxu0 0
    %2884 = vmatprep.subr.bf16.mxu0 0
    %2885 = vmatpush1.bf16.xpose.msra.mxu0 0
    %2886 = vmatprep.subr.bf16.mxu0 0
    %2887 = vmatpush1.bf16.xpose.msra.mxu0 0
    %2888 = vmatprep.subr.bf16.mxu0 0
    %2889 = vmatpush1.bf16.xpose.msra.mxu0 %v2872
    %2890 = vmatprep.subr.bf16.mxu0 0
    %2891 = vmatpush2.bf16.xpose.msra.mxu0 0
    %2892 = vmatprep.subr.bf16.mxu0 0
    %2893 = vmatpush2.bf16.xpose.msra.mxu0 0
    %2894 = vmatprep.subr.bf16.mxu0 0
    %2895 = vmatpush2.bf16.xpose.msra.mxu0 0
    %2896 = vmatprep.subr.bf16.mxu0 0
    %2897 = vmatpush2.bf16.xpose.msra.mxu0 0
    %2898 = vmatprep.subr.bf16.mxu0 0
    %2899 = vmatpush2.bf16.xpose.msra.mxu0 0
    %2900 = vmatprep.subr.bf16.mxu0 0
    %2901 = vmatpush2.bf16.xpose.msra.mxu0 0
    %2902 = vmatprep.subr.bf16.mxu0 0
    %2903 = vmatpush2.bf16.xpose.msra.mxu0 0
    %2904 = vmatprep.subr.bf16.mxu0 0
    %2905 = vmatpush2.bf16.xpose.msra.mxu0 0
    %2906 = vmatprep.mubr.bf16.mxu0 0
    %2907 = vmatmul.mubr.bf16.gmra.mxu0 %v2869
    %v2908 = vpop.f32.mrf.mxu0
    %v2909 = vadd.f32 0.0, %v2908
    %v2910 = vpop.f32.mrf.mxu0
    %v2911 = vpop.f32.mrf.mxu0
    %v2912 = vadd.f32 0.0, %v2911
    %v2913 = vpop.f32.mrf.mxu0
    %2914 = vdwg.mxu0
    %v2916 = vsel %vm696, %v2581, 0
    %v2919 = vsel %vm696, %v2629, 0
    %2921 = vmatprep.subr.bf16.mxu0 0
    %2922 = vmatpush1.bf16.xpose.msra.mxu0 0
    %2923 = vmatprep.subr.bf16.mxu0 0
    %2924 = vmatpush1.bf16.xpose.msra.mxu0 0
    %2925 = vmatprep.subr.bf16.mxu0 0
    %2926 = vmatpush1.bf16.xpose.msra.mxu0 0
    %2927 = vmatprep.subr.bf16.mxu0 0
    %2928 = vmatpush1.bf16.xpose.msra.mxu0 0
    %2929 = vmatprep.subr.bf16.mxu0 0
    %2930 = vmatpush1.bf16.xpose.msra.mxu0 0
    %2931 = vmatprep.subr.bf16.mxu0 0
    %2932 = vmatpush1.bf16.xpose.msra.mxu0 0
    %2933 = vmatprep.subr.bf16.mxu0 0
    %2934 = vmatpush1.bf16.xpose.msra.mxu0 0
    %2935 = vmatprep.subr.bf16.mxu0 0
    %2936 = vmatpush1.bf16.xpose.msra.mxu0 %v2919
    %2937 = vmatprep.subr.bf16.mxu0 0
    %2938 = vmatpush2.bf16.xpose.msra.mxu0 0
    %2939 = vmatprep.subr.bf16.mxu0 0
    %2940 = vmatpush2.bf16.xpose.msra.mxu0 0
    %2941 = vmatprep.subr.bf16.mxu0 0
    %2942 = vmatpush2.bf16.xpose.msra.mxu0 0
    %2943 = vmatprep.subr.bf16.mxu0 0
    %2944 = vmatpush2.bf16.xpose.msra.mxu0 0
    %2945 = vmatprep.subr.bf16.mxu0 0
    %2946 = vmatpush2.bf16.xpose.msra.mxu0 0
    %2947 = vmatprep.subr.bf16.mxu0 0
    %2948 = vmatpush2.bf16.xpose.msra.mxu0 0
    %2949 = vmatprep.subr.bf16.mxu0 0
    %2950 = vmatpush2.bf16.xpose.msra.mxu0 0
    %2951 = vmatprep.subr.bf16.mxu0 0
    %2952 = vmatpush2.bf16.xpose.msra.mxu0 0
    %2953 = vmatprep.mubr.bf16.mxu0 0
    %2954 = vmatmul.mubr.bf16.gmra.mxu0 %v2916
    %v2955 = vpop.f32.mrf.mxu0
    %v2956 = vadd.f32 0.0, %v2955
    %v2957 = vpop.f32.mrf.mxu0
    %v2958 = vpop.f32.mrf.mxu0
    %v2959 = vadd.f32 0.0, %v2958
    %v2960 = vpop.f32.mrf.mxu0
    %2961 = vdwg.mxu0
    %v2963 = vsel %vm696, %v2582, 0
    %v2966 = vsel %vm696, %v2630, 0
    %2968 = vmatprep.subr.bf16.mxu0 0
    %2969 = vmatpush1.bf16.xpose.msra.mxu0 0
    %2970 = vmatprep.subr.bf16.mxu0 0
    %2971 = vmatpush1.bf16.xpose.msra.mxu0 0
    %2972 = vmatprep.subr.bf16.mxu0 0
    %2973 = vmatpush1.bf16.xpose.msra.mxu0 0
    %2974 = vmatprep.subr.bf16.mxu0 0
    %2975 = vmatpush1.bf16.xpose.msra.mxu0 0
    %2976 = vmatprep.subr.bf16.mxu0 0
    %2977 = vmatpush1.bf16.xpose.msra.mxu0 0
    %2978 = vmatprep.subr.bf16.mxu0 0
    %2979 = vmatpush1.bf16.xpose.msra.mxu0 0
    %2980 = vmatprep.subr.bf16.mxu0 0
    %2981 = vmatpush1.bf16.xpose.msra.mxu0 0
    %2982 = vmatprep.subr.bf16.mxu0 0
    %2983 = vmatpush1.bf16.xpose.msra.mxu0 %v2966
    %2984 = vmatprep.subr.bf16.mxu0 0
    %2985 = vmatpush2.bf16.xpose.msra.mxu0 0
    %2986 = vmatprep.subr.bf16.mxu0 0
    %2987 = vmatpush2.bf16.xpose.msra.mxu0 0
    %2988 = vmatprep.subr.bf16.mxu0 0
    %2989 = vmatpush2.bf16.xpose.msra.mxu0 0
    %2990 = vmatprep.subr.bf16.mxu0 0
    %2991 = vmatpush2.bf16.xpose.msra.mxu0 0
    %2992 = vmatprep.subr.bf16.mxu0 0
    %2993 = vmatpush2.bf16.xpose.msra.mxu0 0
    %2994 = vmatprep.subr.bf16.mxu0 0
    %2995 = vmatpush2.bf16.xpose.msra.mxu0 0
    %2996 = vmatprep.subr.bf16.mxu0 0
    %2997 = vmatpush2.bf16.xpose.msra.mxu0 0
    %2998 = vmatprep.subr.bf16.mxu0 0
    %2999 = vmatpush2.bf16.xpose.msra.mxu0 0
    %3000 = vmatprep.mubr.bf16.mxu0 0
    %3001 = vmatmul.mubr.bf16.gmra.mxu0 %v2963
    %v3002 = vpop.f32.mrf.mxu0
    %v3003 = vadd.f32 0.0, %v3002
    %v3004 = vpop.f32.mrf.mxu0
    %v3005 = vpop.f32.mrf.mxu0
    %v3006 = vadd.f32 0.0, %v3005
    %v3007 = vpop.f32.mrf.mxu0
    %3008 = vdwg.mxu0
    %v3010 = vsel %vm696, %v2583, 0
    %v3013 = vsel %vm696, %v2631, 0
    %3015 = vmatprep.subr.bf16.mxu0 0
    %3016 = vmatpush1.bf16.xpose.msra.mxu0 0
    %3017 = vmatprep.subr.bf16.mxu0 0
    %3018 = vmatpush1.bf16.xpose.msra.mxu0 0
    %3019 = vmatprep.subr.bf16.mxu0 0
    %3020 = vmatpush1.bf16.xpose.msra.mxu0 0
    %3021 = vmatprep.subr.bf16.mxu0 0
    %3022 = vmatpush1.bf16.xpose.msra.mxu0 0
    %3023 = vmatprep.subr.bf16.mxu0 0
    %3024 = vmatpush1.bf16.xpose.msra.mxu0 0
    %3025 = vmatprep.subr.bf16.mxu0 0
    %3026 = vmatpush1.bf16.xpose.msra.mxu0 0
    %3027 = vmatprep.subr.bf16.mxu0 0
    %3028 = vmatpush1.bf16.xpose.msra.mxu0 0
    %3029 = vmatprep.subr.bf16.mxu0 0
    %3030 = vmatpush1.bf16.xpose.msra.mxu0 %v3013
    %3031 = vmatprep.subr.bf16.mxu0 0
    %3032 = vmatpush2.bf16.xpose.msra.mxu0 0
    %3033 = vmatprep.subr.bf16.mxu0 0
    %3034 = vmatpush2.bf16.xpose.msra.mxu0 0
    %3035 = vmatprep.subr.bf16.mxu0 0
    %3036 = vmatpush2.bf16.xpose.msra.mxu0 0
    %3037 = vmatprep.subr.bf16.mxu0 0
    %3038 = vmatpush2.bf16.xpose.msra.mxu0 0
    %3039 = vmatprep.subr.bf16.mxu0 0
    %3040 = vmatpush2.bf16.xpose.msra.mxu0 0
    %3041 = vmatprep.subr.bf16.mxu0 0
    %3042 = vmatpush2.bf16.xpose.msra.mxu0 0
    %3043 = vmatprep.subr.bf16.mxu0 0
    %3044 = vmatpush2.bf16.xpose.msra.mxu0 0
    %3045 = vmatprep.subr.bf16.mxu0 0
    %3046 = vmatpush2.bf16.xpose.msra.mxu0 0
    %3047 = vmatprep.mubr.bf16.mxu0 0
    %3048 = vmatmul.mubr.bf16.gmra.mxu0 %v3010
    %v3049 = vpop.f32.mrf.mxu0
    %v3050 = vadd.f32 0.0, %v3049
    %v3051 = vpop.f32.mrf.mxu0
    %v3052 = vpop.f32.mrf.mxu0
    %v3053 = vadd.f32 0.0, %v3052
    %v3054 = vpop.f32.mrf.mxu0
    %3055 = vdwg.mxu0
    %v3056 = vmul.f32 %v2721, 0.17677669
    %v3057 = vmul.f32 %v2724, 0.17677669
    %v3058 = vmul.f32 %v2768, 0.17677669
    %v3059 = vmul.f32 %v2771, 0.17677669
    %v3060 = vmul.f32 %v2815, 0.17677669
    %v3061 = vmul.f32 %v2818, 0.17677669
    %v3062 = vmul.f32 %v2862, 0.17677669
    %v3063 = vmul.f32 %v2865, 0.17677669
    %v3064 = vmul.f32 %v2909, 0.17677669
    %v3065 = vmul.f32 %v2912, 0.17677669
    %v3066 = vmul.f32 %v2956, 0.17677669
    %v3067 = vmul.f32 %v2959, 0.17677669
    %v3068 = vmul.f32 %v3003, 0.17677669
    %v3069 = vmul.f32 %v3006, 0.17677669
    %v3070 = vmul.f32 %v3050, 0.17677669
    %v3071 = vmul.f32 %v3053, 0.17677669
    %v3072 = vsel %vm1089, %v3056, -inf
    %3073 = vmax.xlane.f32.xlu0 %v3072
    %v3074 = vpop.xlane.xlu0 %3073
    %v3075 = vsel %vm1089, %v3057, -inf
    %3076 = vmax.xlane.f32.xlu0 %v3075
    %v3077 = vpop.xlane.xlu0 %3076
    %v3078 = vsel %vm1089, %v3058, -inf
    %3079 = vmax.xlane.f32.xlu0 %v3078
    %v3080 = vpop.xlane.xlu0 %3079
    %v3081 = vsel %vm1089, %v3059, -inf
    %3082 = vmax.xlane.f32.xlu0 %v3081
    %v3083 = vpop.xlane.xlu0 %3082
    %v3084 = vsel %vm1089, %v3060, -inf
    %3085 = vmax.xlane.f32.xlu0 %v3084
    %v3086 = vpop.xlane.xlu0 %3085
    %v3087 = vsel %vm1089, %v3061, -inf
    %3088 = vmax.xlane.f32.xlu0 %v3087
    %v3089 = vpop.xlane.xlu0 %3088
    %v3090 = vsel %vm1089, %v3062, -inf
    %3091 = vmax.xlane.f32.xlu0 %v3090
    %v3092 = vpop.xlane.xlu0 %3091
    %v3093 = vsel %vm1089, %v3063, -inf
    %3094 = vmax.xlane.f32.xlu0 %v3093
    %v3095 = vpop.xlane.xlu0 %3094
    %v3096 = vsel %vm1089, %v3064, -inf
    %3097 = vmax.xlane.f32.xlu0 %v3096
    %v3098 = vpop.xlane.xlu0 %3097
    %v3099 = vsel %vm1089, %v3065, -inf
    %3100 = vmax.xlane.f32.xlu0 %v3099
    %v3101 = vpop.xlane.xlu0 %3100
    %v3102 = vsel %vm1089, %v3066, -inf
    %3103 = vmax.xlane.f32.xlu0 %v3102
    %v3104 = vpop.xlane.xlu0 %3103
    %v3105 = vsel %vm1089, %v3067, -inf
    %3106 = vmax.xlane.f32.xlu0 %v3105
    %v3107 = vpop.xlane.xlu0 %3106
    %v3108 = vsel %vm1089, %v3068, -inf
    %3109 = vmax.xlane.f32.xlu0 %v3108
    %v3110 = vpop.xlane.xlu0 %3109
    %v3111 = vsel %vm1089, %v3069, -inf
    %3112 = vmax.xlane.f32.xlu0 %v3111
    %v3113 = vpop.xlane.xlu0 %3112
    %v3114 = vsel %vm1089, %v3070, -inf
    %3115 = vmax.xlane.f32.xlu0 %v3114
    %v3116 = vpop.xlane.xlu0 %3115
    %v3117 = vsel %vm1089, %v3071, -inf
    %3118 = vmax.xlane.f32.xlu0 %v3117
    %v3119 = vpop.xlane.xlu0 %3118
    %v3120 = vsub.f32 %v3056, %v3074
    %v3121 = vsub.f32 %v3057, %v3077
    %v3122 = vsub.f32 %v3058, %v3080
    %v3123 = vsub.f32 %v3059, %v3083
    %v3124 = vsub.f32 %v3060, %v3086
    %v3125 = vsub.f32 %v3061, %v3089
    %v3126 = vsub.f32 %v3062, %v3092
    %v3127 = vsub.f32 %v3063, %v3095
    %v3128 = vsub.f32 %v3064, %v3098
    %v3129 = vsub.f32 %v3065, %v3101
    %v3130 = vsub.f32 %v3066, %v3104
    %v3131 = vsub.f32 %v3067, %v3107
    %v3132 = vsub.f32 %v3068, %v3110
    %v3133 = vsub.f32 %v3069, %v3113
    %v3134 = vsub.f32 %v3070, %v3116
    %v3135 = vsub.f32 %v3071, %v3119
    %v3136 = vmul.f32 %v3120, 1.442695
    %v3137 = vpow.pop %v3136
    %v3138 = vmul.f32 %v3121, 1.442695
    %v3139 = vpow.pop %v3138
    %v3140 = vmul.f32 %v3122, 1.442695
    %v3141 = vpow.pop %v3140
    %v3142 = vmul.f32 %v3123, 1.442695
    %v3143 = vpow.pop %v3142
    %v3144 = vmul.f32 %v3124, 1.442695
    %v3145 = vpow.pop %v3144
    %v3146 = vmul.f32 %v3125, 1.442695
    %v3147 = vpow.pop %v3146
    %v3148 = vmul.f32 %v3126, 1.442695
    %v3149 = vpow.pop %v3148
    %v3150 = vmul.f32 %v3127, 1.442695
    %v3151 = vpow.pop %v3150
    %v3152 = vmul.f32 %v3128, 1.442695
    %v3153 = vpow.pop %v3152
    %v3154 = vmul.f32 %v3129, 1.442695
    %v3155 = vpow.pop %v3154
    %v3156 = vmul.f32 %v3130, 1.442695
    %v3157 = vpow.pop %v3156
    %v3158 = vmul.f32 %v3131, 1.442695
    %v3159 = vpow.pop %v3158
    %v3160 = vmul.f32 %v3132, 1.442695
    %v3161 = vpow.pop %v3160
    %v3162 = vmul.f32 %v3133, 1.442695
    %v3163 = vpow.pop %v3162
    %v3164 = vmul.f32 %v3134, 1.442695
    %v3165 = vpow.pop %v3164
    %v3166 = vmul.f32 %v3135, 1.442695
    %v3167 = vpow.pop %v3166
    %v3168 = vsel %vm1089, %v3137, 0.0
    %3169 = vadd.xlane.f32.xlu0 %v3168
    %v3170 = vpop.xlane.xlu0 %3169
    %v3171 = vsel %vm1089, %v3139, 0.0
    %3172 = vadd.xlane.f32.xlu0 %v3171
    %v3173 = vpop.xlane.xlu0 %3172
    %v3174 = vsel %vm1089, %v3141, 0.0
    %3175 = vadd.xlane.f32.xlu0 %v3174
    %v3176 = vpop.xlane.xlu0 %3175
    %v3177 = vsel %vm1089, %v3143, 0.0
    %3178 = vadd.xlane.f32.xlu0 %v3177
    %v3179 = vpop.xlane.xlu0 %3178
    %v3180 = vsel %vm1089, %v3145, 0.0
    %3181 = vadd.xlane.f32.xlu0 %v3180
    %v3182 = vpop.xlane.xlu0 %3181
    %v3183 = vsel %vm1089, %v3147, 0.0
    %3184 = vadd.xlane.f32.xlu0 %v3183
    %v3185 = vpop.xlane.xlu0 %3184
    %v3186 = vsel %vm1089, %v3149, 0.0
    %3187 = vadd.xlane.f32.xlu0 %v3186
    %v3188 = vpop.xlane.xlu0 %3187
    %v3189 = vsel %vm1089, %v3151, 0.0
    %3190 = vadd.xlane.f32.xlu0 %v3189
    %v3191 = vpop.xlane.xlu0 %3190
    %v3192 = vsel %vm1089, %v3153, 0.0
    %3193 = vadd.xlane.f32.xlu0 %v3192
    %v3194 = vpop.xlane.xlu0 %3193
    %v3195 = vsel %vm1089, %v3155, 0.0
    %3196 = vadd.xlane.f32.xlu0 %v3195
    %v3197 = vpop.xlane.xlu0 %3196
    %v3198 = vsel %vm1089, %v3157, 0.0
    %3199 = vadd.xlane.f32.xlu0 %v3198
    %v3200 = vpop.xlane.xlu0 %3199
    %v3201 = vsel %vm1089, %v3159, 0.0
    %3202 = vadd.xlane.f32.xlu0 %v3201
    %v3203 = vpop.xlane.xlu0 %3202
    %v3204 = vsel %vm1089, %v3161, 0.0
    %3205 = vadd.xlane.f32.xlu0 %v3204
    %v3206 = vpop.xlane.xlu0 %3205
    %v3207 = vsel %vm1089, %v3163, 0.0
    %3208 = vadd.xlane.f32.xlu0 %v3207
    %v3209 = vpop.xlane.xlu0 %3208
    %v3210 = vsel %vm1089, %v3165, 0.0
    %3211 = vadd.xlane.f32.xlu0 %v3210
    %v3212 = vpop.xlane.xlu0 %3211
    %v3213 = vsel %vm1089, %v3167, 0.0
    %3214 = vadd.xlane.f32.xlu0 %v3213
    %v3215 = vpop.xlane.xlu0 %3214
    %v3216 = vrcp.pop %v3170
    %v3217 = vrcp.pop %v3173
    %v3218 = vrcp.pop %v3176
    %v3219 = vrcp.pop %v3179
    %v3220 = vrcp.pop %v3182
    %v3221 = vrcp.pop %v3185
    %v3222 = vrcp.pop %v3188
    %v3223 = vrcp.pop %v3191
    %v3224 = vrcp.pop %v3194
    %v3225 = vrcp.pop %v3197
    %v3226 = vrcp.pop %v3200
    %v3227 = vrcp.pop %v3203
    %v3228 = vrcp.pop %v3206
    %v3229 = vrcp.pop %v3209
    %v3230 = vrcp.pop %v3212
    %v3231 = vrcp.pop %v3215
    %v3232 = vmul.f32 %v3137, %v3216
    %v3233 = vmul.f32 %v3139, %v3217
    %v3234 = vmul.f32 %v3141, %v3218
    %v3235 = vmul.f32 %v3143, %v3219
    %v3236 = vmul.f32 %v3145, %v3220
    %v3237 = vmul.f32 %v3147, %v3221
    %v3238 = vmul.f32 %v3149, %v3222
    %v3239 = vmul.f32 %v3151, %v3223
    %v3240 = vmul.f32 %v3153, %v3224
    %v3241 = vmul.f32 %v3155, %v3225
    %v3242 = vmul.f32 %v3157, %v3226
    %v3243 = vmul.f32 %v3159, %v3227
    %v3244 = vmul.f32 %v3161, %v3228
    %v3245 = vmul.f32 %v3163, %v3229
    %v3246 = vmul.f32 %v3165, %v3230
    %v3247 = vmul.f32 %v3167, %v3231
    %v3248 = vpack.c.bf16 %v3233, %v3232
    %v3249 = vpack.c.bf16 %v3235, %v3234
    %v3250 = vpack.c.bf16 %v3237, %v3236
    %v3251 = vpack.c.bf16 %v3239, %v3238
    %v3252 = vpack.c.bf16 %v3241, %v3240
    %v3253 = vpack.c.bf16 %v3243, %v3242
    %v3254 = vpack.c.bf16 %v3245, %v3244
    %v3255 = vpack.c.bf16 %v3247, %v3246
    %v3257 = vsel %vm1089, %v3248, 0
    %3259 = vmatprep.subr.bf16.mxu0 0
    %3260 = vmatpush1.bf16.msra.mxu0 0
    %3261 = vmatprep.subr.bf16.mxu0 0
    %3262 = vmatpush1.bf16.msra.mxu0 0
    %3263 = vmatprep.subr.bf16.mxu0 0
    %3264 = vmatpush1.bf16.msra.mxu0 0
    %3265 = vmatprep.subr.bf16.mxu0 0
    %3266 = vmatpush1.bf16.msra.mxu0 0
    %3267 = vmatprep.subr.bf16.mxu0 0
    %3268 = vmatpush1.bf16.msra.mxu0 0
    %3269 = vmatprep.subr.bf16.mxu0 0
    %3270 = vmatpush1.bf16.msra.mxu0 0
    %3271 = vmatprep.subr.bf16.mxu0 0
    %3272 = vmatpush1.bf16.msra.mxu0 0
    %3273 = vmatprep.subr.bf16.mxu0 0
    %3274 = vmatpush1.bf16.msra.mxu0 %v2672
    %3275 = vmatprep.subr.bf16.mxu0 0
    %3276 = vmatpush2.bf16.msra.mxu0 0
    %3277 = vmatprep.subr.bf16.mxu0 0
    %3278 = vmatpush2.bf16.msra.mxu0 0
    %3279 = vmatprep.subr.bf16.mxu0 0
    %3280 = vmatpush2.bf16.msra.mxu0 0
    %3281 = vmatprep.subr.bf16.mxu0 0
    %3282 = vmatpush2.bf16.msra.mxu0 0
    %3283 = vmatprep.subr.bf16.mxu0 0
    %3284 = vmatpush2.bf16.msra.mxu0 0
    %3285 = vmatprep.subr.bf16.mxu0 0
    %3286 = vmatpush2.bf16.msra.mxu0 0
    %3287 = vmatprep.subr.bf16.mxu0 0
    %3288 = vmatpush2.bf16.msra.mxu0 0
    %3289 = vmatprep.subr.bf16.mxu0 0
    %3290 = vmatpush2.bf16.msra.mxu0 0
    %3291 = vmatprep.mubr.bf16.mxu0 0
    %3292 = vmatmul.mubr.bf16.gmra.mxu0 %v3257
    %v3293 = vpop.f32.mrf.mxu0
    %v3294 = vadd.f32 0.0, %v3293
    %v3295 = vpop.f32.mrf.mxu0
    %v3296 = vpop.f32.mrf.mxu0
    %v3297 = vadd.f32 0.0, %v3296
    %v3298 = vpop.f32.mrf.mxu0
    %3299 = vdwg.mxu0
    %v3301 = vsel %vm1089, %v3249, 0
    %3303 = vmatprep.subr.bf16.mxu0 0
    %3304 = vmatpush1.bf16.msra.mxu0 0
    %3305 = vmatprep.subr.bf16.mxu0 0
    %3306 = vmatpush1.bf16.msra.mxu0 0
    %3307 = vmatprep.subr.bf16.mxu0 0
    %3308 = vmatpush1.bf16.msra.mxu0 0
    %3309 = vmatprep.subr.bf16.mxu0 0
    %3310 = vmatpush1.bf16.msra.mxu0 0
    %3311 = vmatprep.subr.bf16.mxu0 0
    %3312 = vmatpush1.bf16.msra.mxu0 0
    %3313 = vmatprep.subr.bf16.mxu0 0
    %3314 = vmatpush1.bf16.msra.mxu0 0
    %3315 = vmatprep.subr.bf16.mxu0 0
    %3316 = vmatpush1.bf16.msra.mxu0 0
    %3317 = vmatprep.subr.bf16.mxu0 0
    %3318 = vmatpush1.bf16.msra.mxu0 %v2673
    %3319 = vmatprep.subr.bf16.mxu0 0
    %3320 = vmatpush2.bf16.msra.mxu0 0
    %3321 = vmatprep.subr.bf16.mxu0 0
    %3322 = vmatpush2.bf16.msra.mxu0 0
    %3323 = vmatprep.subr.bf16.mxu0 0
    %3324 = vmatpush2.bf16.msra.mxu0 0
    %3325 = vmatprep.subr.bf16.mxu0 0
    %3326 = vmatpush2.bf16.msra.mxu0 0
    %3327 = vmatprep.subr.bf16.mxu0 0
    %3328 = vmatpush2.bf16.msra.mxu0 0
    %3329 = vmatprep.subr.bf16.mxu0 0
    %3330 = vmatpush2.bf16.msra.mxu0 0
    %3331 = vmatprep.subr.bf16.mxu0 0
    %3332 = vmatpush2.bf16.msra.mxu0 0
    %3333 = vmatprep.subr.bf16.mxu0 0
    %3334 = vmatpush2.bf16.msra.mxu0 0
    %3335 = vmatprep.mubr.bf16.mxu0 0
    %3336 = vmatmul.mubr.bf16.gmra.mxu0 %v3301
    %v3337 = vpop.f32.mrf.mxu0
    %v3338 = vadd.f32 0.0, %v3337
    %v3339 = vpop.f32.mrf.mxu0
    %v3340 = vpop.f32.mrf.mxu0
    %v3341 = vadd.f32 0.0, %v3340
    %v3342 = vpop.f32.mrf.mxu0
    %3343 = vdwg.mxu0
    %v3345 = vsel %vm1089, %v3250, 0
    %3347 = vmatprep.subr.bf16.mxu0 0
    %3348 = vmatpush1.bf16.msra.mxu0 0
    %3349 = vmatprep.subr.bf16.mxu0 0
    %3350 = vmatpush1.bf16.msra.mxu0 0
    %3351 = vmatprep.subr.bf16.mxu0 0
    %3352 = vmatpush1.bf16.msra.mxu0 0
    %3353 = vmatprep.subr.bf16.mxu0 0
    %3354 = vmatpush1.bf16.msra.mxu0 0
    %3355 = vmatprep.subr.bf16.mxu0 0
    %3356 = vmatpush1.bf16.msra.mxu0 0
    %3357 = vmatprep.subr.bf16.mxu0 0
    %3358 = vmatpush1.bf16.msra.mxu0 0
    %3359 = vmatprep.subr.bf16.mxu0 0
    %3360 = vmatpush1.bf16.msra.mxu0 0
    %3361 = vmatprep.subr.bf16.mxu0 0
    %3362 = vmatpush1.bf16.msra.mxu0 %v2674
    %3363 = vmatprep.subr.bf16.mxu0 0
    %3364 = vmatpush2.bf16.msra.mxu0 0
    %3365 = vmatprep.subr.bf16.mxu0 0
    %3366 = vmatpush2.bf16.msra.mxu0 0
    %3367 = vmatprep.subr.bf16.mxu0 0
    %3368 = vmatpush2.bf16.msra.mxu0 0
    %3369 = vmatprep.subr.bf16.mxu0 0
    %3370 = vmatpush2.bf16.msra.mxu0 0
    %3371 = vmatprep.subr.bf16.mxu0 0
    %3372 = vmatpush2.bf16.msra.mxu0 0
    %3373 = vmatprep.subr.bf16.mxu0 0
    %3374 = vmatpush2.bf16.msra.mxu0 0
    %3375 = vmatprep.subr.bf16.mxu0 0
    %3376 = vmatpush2.bf16.msra.mxu0 0
    %3377 = vmatprep.subr.bf16.mxu0 0
    %3378 = vmatpush2.bf16.msra.mxu0 0
    %3379 = vmatprep.mubr.bf16.mxu0 0
    %3380 = vmatmul.mubr.bf16.gmra.mxu0 %v3345
    %v3381 = vpop.f32.mrf.mxu0
    %v3382 = vadd.f32 0.0, %v3381
    %v3383 = vpop.f32.mrf.mxu0
    %v3384 = vpop.f32.mrf.mxu0
    %v3385 = vadd.f32 0.0, %v3384
    %v3386 = vpop.f32.mrf.mxu0
    %3387 = vdwg.mxu0
    %v3389 = vsel %vm1089, %v3251, 0
    %3391 = vmatprep.subr.bf16.mxu0 0
    %3392 = vmatpush1.bf16.msra.mxu0 0
    %3393 = vmatprep.subr.bf16.mxu0 0
    %3394 = vmatpush1.bf16.msra.mxu0 0
    %3395 = vmatprep.subr.bf16.mxu0 0
    %3396 = vmatpush1.bf16.msra.mxu0 0
    %3397 = vmatprep.subr.bf16.mxu0 0
    %3398 = vmatpush1.bf16.msra.mxu0 0
    %3399 = vmatprep.subr.bf16.mxu0 0
    %3400 = vmatpush1.bf16.msra.mxu0 0
    %3401 = vmatprep.subr.bf16.mxu0 0
    %3402 = vmatpush1.bf16.msra.mxu0 0
    %3403 = vmatprep.subr.bf16.mxu0 0
    %3404 = vmatpush1.bf16.msra.mxu0 0
    %3405 = vmatprep.subr.bf16.mxu0 0
    %3406 = vmatpush1.bf16.msra.mxu0 %v2675
    %3407 = vmatprep.subr.bf16.mxu0 0
    %3408 = vmatpush2.bf16.msra.mxu0 0
    %3409 = vmatprep.subr.bf16.mxu0 0
    %3410 = vmatpush2.bf16.msra.mxu0 0
    %3411 = vmatprep.subr.bf16.mxu0 0
    %3412 = vmatpush2.bf16.msra.mxu0 0
    %3413 = vmatprep.subr.bf16.mxu0 0
    %3414 = vmatpush2.bf16.msra.mxu0 0
    %3415 = vmatprep.subr.bf16.mxu0 0
    %3416 = vmatpush2.bf16.msra.mxu0 0
    %3417 = vmatprep.subr.bf16.mxu0 0
    %3418 = vmatpush2.bf16.msra.mxu0 0
    %3419 = vmatprep.subr.bf16.mxu0 0
    %3420 = vmatpush2.bf16.msra.mxu0 0
    %3421 = vmatprep.subr.bf16.mxu0 0
    %3422 = vmatpush2.bf16.msra.mxu0 0
    %3423 = vmatprep.mubr.bf16.mxu0 0
    %3424 = vmatmul.mubr.bf16.gmra.mxu0 %v3389
    %v3425 = vpop.f32.mrf.mxu0
    %v3426 = vadd.f32 0.0, %v3425
    %v3427 = vpop.f32.mrf.mxu0
    %v3428 = vpop.f32.mrf.mxu0
    %v3429 = vadd.f32 0.0, %v3428
    %v3430 = vpop.f32.mrf.mxu0
    %3431 = vdwg.mxu0
    %v3433 = vsel %vm1089, %v3252, 0
    %3435 = vmatprep.subr.bf16.mxu0 0
    %3436 = vmatpush1.bf16.msra.mxu0 0
    %3437 = vmatprep.subr.bf16.mxu0 0
    %3438 = vmatpush1.bf16.msra.mxu0 0
    %3439 = vmatprep.subr.bf16.mxu0 0
    %3440 = vmatpush1.bf16.msra.mxu0 0
    %3441 = vmatprep.subr.bf16.mxu0 0
    %3442 = vmatpush1.bf16.msra.mxu0 0
    %3443 = vmatprep.subr.bf16.mxu0 0
    %3444 = vmatpush1.bf16.msra.mxu0 0
    %3445 = vmatprep.subr.bf16.mxu0 0
    %3446 = vmatpush1.bf16.msra.mxu0 0
    %3447 = vmatprep.subr.bf16.mxu0 0
    %3448 = vmatpush1.bf16.msra.mxu0 0
    %3449 = vmatprep.subr.bf16.mxu0 0
    %3450 = vmatpush1.bf16.msra.mxu0 %v2676
    %3451 = vmatprep.subr.bf16.mxu0 0
    %3452 = vmatpush2.bf16.msra.mxu0 0
    %3453 = vmatprep.subr.bf16.mxu0 0
    %3454 = vmatpush2.bf16.msra.mxu0 0
    %3455 = vmatprep.subr.bf16.mxu0 0
    %3456 = vmatpush2.bf16.msra.mxu0 0
    %3457 = vmatprep.subr.bf16.mxu0 0
    %3458 = vmatpush2.bf16.msra.mxu0 0
    %3459 = vmatprep.subr.bf16.mxu0 0
    %3460 = vmatpush2.bf16.msra.mxu0 0
    %3461 = vmatprep.subr.bf16.mxu0 0
    %3462 = vmatpush2.bf16.msra.mxu0 0
    %3463 = vmatprep.subr.bf16.mxu0 0
    %3464 = vmatpush2.bf16.msra.mxu0 0
    %3465 = vmatprep.subr.bf16.mxu0 0
    %3466 = vmatpush2.bf16.msra.mxu0 0
    %3467 = vmatprep.mubr.bf16.mxu0 0
    %3468 = vmatmul.mubr.bf16.gmra.mxu0 %v3433
    %v3469 = vpop.f32.mrf.mxu0
    %v3470 = vadd.f32 0.0, %v3469
    %v3471 = vpop.f32.mrf.mxu0
    %v3472 = vpop.f32.mrf.mxu0
    %v3473 = vadd.f32 0.0, %v3472
    %v3474 = vpop.f32.mrf.mxu0
    %3475 = vdwg.mxu0
    %v3477 = vsel %vm1089, %v3253, 0
    %3479 = vmatprep.subr.bf16.mxu0 0
    %3480 = vmatpush1.bf16.msra.mxu0 0
    %3481 = vmatprep.subr.bf16.mxu0 0
    %3482 = vmatpush1.bf16.msra.mxu0 0
    %3483 = vmatprep.subr.bf16.mxu0 0
    %3484 = vmatpush1.bf16.msra.mxu0 0
    %3485 = vmatprep.subr.bf16.mxu0 0
    %3486 = vmatpush1.bf16.msra.mxu0 0
    %3487 = vmatprep.subr.bf16.mxu0 0
    %3488 = vmatpush1.bf16.msra.mxu0 0
    %3489 = vmatprep.subr.bf16.mxu0 0
    %3490 = vmatpush1.bf16.msra.mxu0 0
    %3491 = vmatprep.subr.bf16.mxu0 0
    %3492 = vmatpush1.bf16.msra.mxu0 0
    %3493 = vmatprep.subr.bf16.mxu0 0
    %3494 = vmatpush1.bf16.msra.mxu0 %v2677
    %3495 = vmatprep.subr.bf16.mxu0 0
    %3496 = vmatpush2.bf16.msra.mxu0 0
    %3497 = vmatprep.subr.bf16.mxu0 0
    %3498 = vmatpush2.bf16.msra.mxu0 0
    %3499 = vmatprep.subr.bf16.mxu0 0
    %3500 = vmatpush2.bf16.msra.mxu0 0
    %3501 = vmatprep.subr.bf16.mxu0 0
    %3502 = vmatpush2.bf16.msra.mxu0 0
    %3503 = vmatprep.subr.bf16.mxu0 0
    %3504 = vmatpush2.bf16.msra.mxu0 0
    %3505 = vmatprep.subr.bf16.mxu0 0
    %3506 = vmatpush2.bf16.msra.mxu0 0
    %3507 = vmatprep.subr.bf16.mxu0 0
    %3508 = vmatpush2.bf16.msra.mxu0 0
    %3509 = vmatprep.subr.bf16.mxu0 0
    %3510 = vmatpush2.bf16.msra.mxu0 0
    %3511 = vmatprep.mubr.bf16.mxu0 0
    %3512 = vmatmul.mubr.bf16.gmra.mxu0 %v3477
    %v3513 = vpop.f32.mrf.mxu0
    %v3514 = vadd.f32 0.0, %v3513
    %v3515 = vpop.f32.mrf.mxu0
    %v3516 = vpop.f32.mrf.mxu0
    %v3517 = vadd.f32 0.0, %v3516
    %v3518 = vpop.f32.mrf.mxu0
    %3519 = vdwg.mxu0
    %v3521 = vsel %vm1089, %v3254, 0
    %3523 = vmatprep.subr.bf16.mxu0 0
    %3524 = vmatpush1.bf16.msra.mxu0 0
    %3525 = vmatprep.subr.bf16.mxu0 0
    %3526 = vmatpush1.bf16.msra.mxu0 0
    %3527 = vmatprep.subr.bf16.mxu0 0
    %3528 = vmatpush1.bf16.msra.mxu0 0
    %3529 = vmatprep.subr.bf16.mxu0 0
    %3530 = vmatpush1.bf16.msra.mxu0 0
    %3531 = vmatprep.subr.bf16.mxu0 0
    %3532 = vmatpush1.bf16.msra.mxu0 0
    %3533 = vmatprep.subr.bf16.mxu0 0
    %3534 = vmatpush1.bf16.msra.mxu0 0
    %3535 = vmatprep.subr.bf16.mxu0 0
    %3536 = vmatpush1.bf16.msra.mxu0 0
    %3537 = vmatprep.subr.bf16.mxu0 0
    %3538 = vmatpush1.bf16.msra.mxu0 %v2678
    %3539 = vmatprep.subr.bf16.mxu0 0
    %3540 = vmatpush2.bf16.msra.mxu0 0
    %3541 = vmatprep.subr.bf16.mxu0 0
    %3542 = vmatpush2.bf16.msra.mxu0 0
    %3543 = vmatprep.subr.bf16.mxu0 0
    %3544 = vmatpush2.bf16.msra.mxu0 0
    %3545 = vmatprep.subr.bf16.mxu0 0
    %3546 = vmatpush2.bf16.msra.mxu0 0
    %3547 = vmatprep.subr.bf16.mxu0 0
    %3548 = vmatpush2.bf16.msra.mxu0 0
    %3549 = vmatprep.subr.bf16.mxu0 0
    %3550 = vmatpush2.bf16.msra.mxu0 0
    %3551 = vmatprep.subr.bf16.mxu0 0
    %3552 = vmatpush2.bf16.msra.mxu0 0
    %3553 = vmatprep.subr.bf16.mxu0 0
    %3554 = vmatpush2.bf16.msra.mxu0 0
    %3555 = vmatprep.mubr.bf16.mxu0 0
    %3556 = vmatmul.mubr.bf16.gmra.mxu0 %v3521
    %v3557 = vpop.f32.mrf.mxu0
    %v3558 = vadd.f32 0.0, %v3557
    %v3559 = vpop.f32.mrf.mxu0
    %v3560 = vpop.f32.mrf.mxu0
    %v3561 = vadd.f32 0.0, %v3560
    %v3562 = vpop.f32.mrf.mxu0
    %3563 = vdwg.mxu0
    %v3565 = vsel %vm1089, %v3255, 0
    %3567 = vmatprep.subr.bf16.mxu0 0
    %3568 = vmatpush1.bf16.msra.mxu0 0
    %3569 = vmatprep.subr.bf16.mxu0 0
    %3570 = vmatpush1.bf16.msra.mxu0 0
    %3571 = vmatprep.subr.bf16.mxu0 0
    %3572 = vmatpush1.bf16.msra.mxu0 0
    %3573 = vmatprep.subr.bf16.mxu0 0
    %3574 = vmatpush1.bf16.msra.mxu0 0
    %3575 = vmatprep.subr.bf16.mxu0 0
    %3576 = vmatpush1.bf16.msra.mxu0 0
    %3577 = vmatprep.subr.bf16.mxu0 0
    %3578 = vmatpush1.bf16.msra.mxu0 0
    %3579 = vmatprep.subr.bf16.mxu0 0
    %3580 = vmatpush1.bf16.msra.mxu0 0
    %3581 = vmatprep.subr.bf16.mxu0 0
    %3582 = vmatpush1.bf16.msra.mxu0 %v2679
    %3583 = vmatprep.subr.bf16.mxu0 0
    %3584 = vmatpush2.bf16.msra.mxu0 0
    %3585 = vmatprep.subr.bf16.mxu0 0
    %3586 = vmatpush2.bf16.msra.mxu0 0
    %3587 = vmatprep.subr.bf16.mxu0 0
    %3588 = vmatpush2.bf16.msra.mxu0 0
    %3589 = vmatprep.subr.bf16.mxu0 0
    %3590 = vmatpush2.bf16.msra.mxu0 0
    %3591 = vmatprep.subr.bf16.mxu0 0
    %3592 = vmatpush2.bf16.msra.mxu0 0
    %3593 = vmatprep.subr.bf16.mxu0 0
    %3594 = vmatpush2.bf16.msra.mxu0 0
    %3595 = vmatprep.subr.bf16.mxu0 0
    %3596 = vmatpush2.bf16.msra.mxu0 0
    %3597 = vmatprep.subr.bf16.mxu0 0
    %3598 = vmatpush2.bf16.msra.mxu0 0
    %3599 = vmatprep.mubr.bf16.mxu0 0
    %3600 = vmatmul.mubr.bf16.gmra.mxu0 %v3565
    %v3601 = vpop.f32.mrf.mxu0
    %v3602 = vadd.f32 0.0, %v3601
    %v3603 = vpop.f32.mrf.mxu0
    %v3604 = vpop.f32.mrf.mxu0
    %v3605 = vadd.f32 0.0, %v3604
    %v3606 = vpop.f32.mrf.mxu0
    %3607 = vdwg.mxu0
    %3612 = vrot.lane.b32.xlu0 %v3382, 32
    %v3613 = vpop.permute.xlu0 %3612
    %3614 = vrot.lane.b32.xlu0 %v3385, 32
    %v3615 = vpop.permute.xlu0 %3614
    %3616 = vrot.lane.b32.xlu0 %v3426, 32
    %v3617 = vpop.permute.xlu0 %3616
    %3618 = vrot.lane.b32.xlu0 %v3429, 32
    %v3619 = vpop.permute.xlu0 %3618
    %3628 = vrot.lane.b32.xlu0 %v3470, 64
    %v3629 = vpop.permute.xlu0 %3628
    %3630 = vrot.lane.b32.xlu0 %v3473, 64
    %v3631 = vpop.permute.xlu0 %3630
    %3632 = vrot.lane.b32.xlu0 %v3514, 64
    %v3633 = vpop.permute.xlu0 %3632
    %3634 = vrot.lane.b32.xlu0 %v3517, 64
    %v3635 = vpop.permute.xlu0 %3634
    %3644 = vrot.lane.b32.xlu0 %v3558, 96
    %v3645 = vpop.permute.xlu0 %3644
    %3646 = vrot.lane.b32.xlu0 %v3561, 96
    %v3647 = vpop.permute.xlu0 %3646
    %3648 = vrot.lane.b32.xlu0 %v3602, 96
    %v3649 = vpop.permute.xlu0 %3648
    %3650 = vrot.lane.b32.xlu0 %v3605, 96
    %v3651 = vpop.permute.xlu0 %3650
    %v3656 = vsel %vm696, %v3294, %v3613
    %v3657 = vsel %vm696, %v3297, %v3615
    %v3658 = vsel %vm696, %v3338, %v3617
    %v3659 = vsel %vm696, %v3341, %v3619
    %v3660 = vsel %vm1678, %v3656, %v3629
    %v3661 = vsel %vm1678, %v3657, %v3631
    %v3662 = vsel %vm1678, %v3658, %v3633
    %v3663 = vsel %vm1678, %v3659, %v3635
    %v3664 = vsel %vm1683, %v3660, %v3645
    %v3665 = vsel %vm1683, %v3661, %v3647
    %v3666 = vsel %vm1683, %v3662, %v3649
    %v3667 = vsel %vm1683, %v3663, %v3651
    %v3668 = vpack.c.bf16 %v3665, %v3664
    %v3669 = vpack.c.bf16 %v3667, %v3666
    %v3670 = vld [vmem:[%s2 + $0x280] sm:$0xf]
    %v3671 = vld [vmem:[%s2 + $0x284] sm:$0xf]
    %v3672 = vld [vmem:[%s2 + $0x288] sm:$0xf]
    %v3673 = vld [vmem:[%s2 + $0x28c] sm:$0xf]
    %v3674 = vld [vmem:[%s2 + $0x290] sm:$0xf]
    %v3675 = vld [vmem:[%s2 + $0x294] sm:$0xf]
    %v3676 = vld [vmem:[%s2 + $0x298] sm:$0xf]
    %v3677 = vld [vmem:[%s2 + $0x29c] sm:$0xf]
    %v3678 = vld [vmem:[%s2 + $0x2a0] sm:$0xf]
    %v3679 = vld [vmem:[%s2 + $0x2a4] sm:$0xf]
    %v3680 = vld [vmem:[%s2 + $0x2a8] sm:$0xf]
    %v3681 = vld [vmem:[%s2 + $0x2ac] sm:$0xf]
    %v3682 = vld [vmem:[%s2 + $0x2b0] sm:$0xf]
    %v3683 = vld [vmem:[%s2 + $0x2b4] sm:$0xf]
    %v3684 = vld [vmem:[%s2 + $0x2b8] sm:$0xf]
    %v3685 = vld [vmem:[%s2 + $0x2bc] sm:$0xf]
    %v3702 = vunpack.c.l.b16 %v3670
    %v3703 = vunpack.c.l.b16 %v3671
    %v3704 = vunpack.c.l.b16 %v3672
    %v3705 = vunpack.c.l.b16 %v3673
    %v3706 = vunpack.c.l.b16 %v3674
    %v3707 = vunpack.c.l.b16 %v3675
    %v3708 = vunpack.c.l.b16 %v3676
    %v3709 = vunpack.c.l.b16 %v3677
    %v3710 = vunpack.c.l.b16 %v3678
    %v3711 = vunpack.c.l.b16 %v3679
    %v3712 = vunpack.c.l.b16 %v3680
    %v3713 = vunpack.c.l.b16 %v3681
    %v3714 = vunpack.c.l.b16 %v3682
    %v3715 = vunpack.c.l.b16 %v3683
    %v3716 = vunpack.c.l.b16 %v3684
    %v3717 = vunpack.c.l.b16 %v3685
    %v3718 = vpack.c.b16 %v3703, %v3702
    %v3719 = vpack.c.b16 %v3705, %v3704
    %v3720 = vpack.c.b16 %v3707, %v3706
    %v3721 = vpack.c.b16 %v3709, %v3708
    %v3722 = vpack.c.b16 %v3711, %v3710
    %v3723 = vpack.c.b16 %v3713, %v3712
    %v3724 = vpack.c.b16 %v3715, %v3714
    %v3725 = vpack.c.b16 %v3717, %v3716
    %3734 = vmatprep.subr.bf16.mxu0 0
    %3735 = vmatpush1.bf16.msra.mxu0 %v3725
    %3736 = vmatprep.subr.bf16.mxu0 0
    %3737 = vmatpush1.bf16.msra.mxu0 %v3724
    %3738 = vmatprep.subr.bf16.mxu0 0
    %3739 = vmatpush1.bf16.msra.mxu0 %v3723
    %3740 = vmatprep.subr.bf16.mxu0 0
    %3741 = vmatpush1.bf16.msra.mxu0 %v3722
    %3742 = vmatprep.subr.bf16.mxu0 0
    %3743 = vmatpush1.bf16.msra.mxu0 %v3721
    %3744 = vmatprep.subr.bf16.mxu0 0
    %3745 = vmatpush1.bf16.msra.mxu0 %v3720
    %3746 = vmatprep.subr.bf16.mxu0 0
    %3747 = vmatpush1.bf16.msra.mxu0 %v3719
    %3748 = vmatprep.subr.bf16.mxu0 0
    %3749 = vmatpush1.bf16.msra.mxu0 %v3718
    %3750 = vmatprep.subr.bf16.mxu0 0
    %3751 = vmatpush2.bf16.msra.mxu0 0
    %3752 = vmatprep.subr.bf16.mxu0 0
    %3753 = vmatpush2.bf16.msra.mxu0 0
    %3754 = vmatprep.subr.bf16.mxu0 0
    %3755 = vmatpush2.bf16.msra.mxu0 0
    %3756 = vmatprep.subr.bf16.mxu0 0
    %3757 = vmatpush2.bf16.msra.mxu0 0
    %3758 = vmatprep.subr.bf16.mxu0 0
    %3759 = vmatpush2.bf16.msra.mxu0 0
    %3760 = vmatprep.subr.bf16.mxu0 0
    %3761 = vmatpush2.bf16.msra.mxu0 0
    %3762 = vmatprep.subr.bf16.mxu0 0
    %3763 = vmatpush2.bf16.msra.mxu0 0
    %3764 = vmatprep.subr.bf16.mxu0 0
    %3765 = vmatpush2.bf16.msra.mxu0 0
    %3766 = vmatprep.mubr.bf16.mxu0 0
    %3767 = vmatmul.mubr.bf16.gmra.mxu0 %v3668
    %v3768 = vpop.f32.mrf.mxu0
    %v3769 = vadd.f32 0.0, %v3768
    %v3770 = vpop.f32.mrf.mxu0
    %v3771 = vpop.f32.mrf.mxu0
    %v3772 = vadd.f32 0.0, %v3771
    %v3773 = vpop.f32.mrf.mxu0
    %3774 = vmatprep.mubr.bf16.mxu0 0
    %3775 = vmatmul.mubr.bf16.gmra.mxu0 %v3669
    %v3776 = vpop.f32.mrf.mxu0
    %v3777 = vadd.f32 0.0, %v3776
    %v3778 = vpop.f32.mrf.mxu0
    %v3779 = vpop.f32.mrf.mxu0
    %v3780 = vadd.f32 0.0, %v3779
    %v3781 = vpop.f32.mrf.mxu0
    %3782 = vdwg.mxu0
    %v3783 = vadd.f32 %v2129, %v3769
    %v3784 = vadd.f32 %v2130, %v3772
    %v3785 = vadd.f32 %v2131, %v3777
    %v3786 = vadd.f32 %v2132, %v3780
    %v3787 = vld [vmem:[%s1 + $0x29] sm:$0x1]
    %v3788 = vld [vmem:[%s1 + $0x2a] sm:$0x1]
    %3789 = vadd.xlane.f32.xlu0 %v3783
    %v3790 = vpop.xlane.xlu0 %3789
    %3791 = vadd.xlane.f32.xlu0 %v3784
    %v3792 = vpop.xlane.xlu0 %3791
    %3793 = vadd.xlane.f32.xlu0 %v3785
    %v3794 = vpop.xlane.xlu0 %3793
    %3795 = vadd.xlane.f32.xlu0 %v3786
    %v3796 = vpop.xlane.xlu0 %3795
    %v3797 = vmul.f32 %v3790, %v158
    %v3798 = vmul.f32 %v3792, %v158
    %v3799 = vmul.f32 %v3794, %v158
    %v3800 = vmul.f32 %v3796, %v158
    %v3801 = vsub.f32 %v3783, %v3797
    %v3802 = vsub.f32 %v3784, %v3798
    %v3803 = vsub.f32 %v3785, %v3799
    %v3804 = vsub.f32 %v3786, %v3800
    %v3805 = vmul.f32 %v3801, %v3801
    %v3806 = vmul.f32 %v3802, %v3802
    %v3807 = vmul.f32 %v3803, %v3803
    %v3808 = vmul.f32 %v3804, %v3804
    %3809 = vadd.xlane.f32.xlu0 %v3805
    %v3810 = vpop.xlane.xlu0 %3809
    %3811 = vadd.xlane.f32.xlu0 %v3806
    %v3812 = vpop.xlane.xlu0 %3811
    %3813 = vadd.xlane.f32.xlu0 %v3807
    %v3814 = vpop.xlane.xlu0 %3813
    %3815 = vadd.xlane.f32.xlu0 %v3808
    %v3816 = vpop.xlane.xlu0 %3815
    %v3817 = vmul.f32 %v3810, %v158
    %v3818 = vmul.f32 %v3812, %v158
    %v3819 = vmul.f32 %v3814, %v158
    %v3820 = vmul.f32 %v3816, %v158
    %v3821 = vadd.f32 %v3817, 1e-05
    %v3822 = vadd.f32 %v3818, 1e-05
    %v3823 = vadd.f32 %v3819, 1e-05
    %v3824 = vadd.f32 %v3820, 1e-05
    %v3825 = vrsqrt.pop %v3821
    %v3826 = vrsqrt.pop %v3822
    %v3827 = vrsqrt.pop %v3823
    %v3828 = vrsqrt.pop %v3824
    %v3829 = vmul.f32 %v3801, %v3825
    %v3830 = vmul.f32 %v3802, %v3826
    %v3831 = vmul.f32 %v3803, %v3827
    %v3832 = vmul.f32 %v3804, %v3828
    %v3833 = vlaneseq
    %v3834 = vshrl.u32 %v3833, 7
    %v3835 = vsub.s32 0, %v3834
    %v3836 = vrot.slane %v3787, %v3835
    %v3837 = vmul.f32 %v3829, %v3836
    %v3838 = vmul.f32 %v3830, %v3836
    %v3839 = vmul.f32 %v3831, %v3836
    %v3840 = vmul.f32 %v3832, %v3836
    %v3841 = vlaneseq
    %v3842 = vshrl.u32 %v3841, 7
    %v3843 = vsub.s32 0, %v3842
    %v3844 = vrot.slane %v3788, %v3843
    %v3845 = vadd.f32 %v3837, %v3844
    %v3846 = vadd.f32 %v3838, %v3844
    %v3847 = vadd.f32 %v3839, %v3844
    %v3848 = vadd.f32 %v3840, %v3844
    %v3849 = vpack.c.bf16 %v3846, %v3845
    %v3850 = vpack.c.bf16 %v3848, %v3847
    %v3851 = vld [vmem:[%s2 + $0x2c0] sm:$0xf]
    %v3852 = vld [vmem:[%s2 + $0x2c4] sm:$0xf]
    %v3853 = vld [vmem:[%s2 + $0x2c8] sm:$0xf]
    %v3854 = vld [vmem:[%s2 + $0x2cc] sm:$0xf]
    %v3855 = vld [vmem:[%s2 + $0x2d0] sm:$0xf]
    %v3856 = vld [vmem:[%s2 + $0x2d4] sm:$0xf]
    %v3857 = vld [vmem:[%s2 + $0x2d8] sm:$0xf]
    %v3858 = vld [vmem:[%s2 + $0x2dc] sm:$0xf]
    %v3859 = vld [vmem:[%s2 + $0x2e0] sm:$0xf]
    %v3860 = vld [vmem:[%s2 + $0x2e4] sm:$0xf]
    %v3861 = vld [vmem:[%s2 + $0x2e8] sm:$0xf]
    %v3862 = vld [vmem:[%s2 + $0x2ec] sm:$0xf]
    %v3863 = vld [vmem:[%s2 + $0x2f0] sm:$0xf]
    %v3864 = vld [vmem:[%s2 + $0x2f4] sm:$0xf]
    %v3865 = vld [vmem:[%s2 + $0x2f8] sm:$0xf]
    %v3866 = vld [vmem:[%s2 + $0x2fc] sm:$0xf]
    %v3867 = vld [vmem:[%s1 + $0x2b] sm:$0x1]
    %v3868 = vlaneseq
    %v3869 = vshrl.u32 %v3868, 7
    %v3870 = vsub.s32 0, %v3869
    %v3871 = vrot.slane %v3867, %v3870
    %v3888 = vunpack.c.l.b16 %v3851
    %v3889 = vunpack.c.l.b16 %v3852
    %v3890 = vunpack.c.l.b16 %v3853
    %v3891 = vunpack.c.l.b16 %v3854
    %v3892 = vunpack.c.l.b16 %v3855
    %v3893 = vunpack.c.l.b16 %v3856
    %v3894 = vunpack.c.l.b16 %v3857
    %v3895 = vunpack.c.l.b16 %v3858
    %v3896 = vunpack.c.l.b16 %v3859
    %v3897 = vunpack.c.l.b16 %v3860
    %v3898 = vunpack.c.l.b16 %v3861
    %v3899 = vunpack.c.l.b16 %v3862
    %v3900 = vunpack.c.l.b16 %v3863
    %v3901 = vunpack.c.l.b16 %v3864
    %v3902 = vunpack.c.l.b16 %v3865
    %v3903 = vunpack.c.l.b16 %v3866
    %v3904 = vpack.c.b16 %v3889, %v3888
    %v3905 = vpack.c.b16 %v3891, %v3890
    %v3906 = vpack.c.b16 %v3893, %v3892
    %v3907 = vpack.c.b16 %v3895, %v3894
    %v3908 = vpack.c.b16 %v3897, %v3896
    %v3909 = vpack.c.b16 %v3899, %v3898
    %v3910 = vpack.c.b16 %v3901, %v3900
    %v3911 = vpack.c.b16 %v3903, %v3902
    %3920 = vmatprep.subr.bf16.mxu0 0
    %3921 = vmatpush1.bf16.msra.mxu0 %v3911
    %3922 = vmatprep.subr.bf16.mxu0 0
    %3923 = vmatpush1.bf16.msra.mxu0 %v3910
    %3924 = vmatprep.subr.bf16.mxu0 0
    %3925 = vmatpush1.bf16.msra.mxu0 %v3909
    %3926 = vmatprep.subr.bf16.mxu0 0
    %3927 = vmatpush1.bf16.msra.mxu0 %v3908
    %3928 = vmatprep.subr.bf16.mxu0 0
    %3929 = vmatpush1.bf16.msra.mxu0 %v3907
    %3930 = vmatprep.subr.bf16.mxu0 0
    %3931 = vmatpush1.bf16.msra.mxu0 %v3906
    %3932 = vmatprep.subr.bf16.mxu0 0
    %3933 = vmatpush1.bf16.msra.mxu0 %v3905
    %3934 = vmatprep.subr.bf16.mxu0 0
    %3935 = vmatpush1.bf16.msra.mxu0 %v3904
    %3936 = vmatprep.subr.bf16.mxu0 0
    %3937 = vmatpush2.bf16.msra.mxu0 0
    %3938 = vmatprep.subr.bf16.mxu0 0
    %3939 = vmatpush2.bf16.msra.mxu0 0
    %3940 = vmatprep.subr.bf16.mxu0 0
    %3941 = vmatpush2.bf16.msra.mxu0 0
    %3942 = vmatprep.subr.bf16.mxu0 0
    %3943 = vmatpush2.bf16.msra.mxu0 0
    %3944 = vmatprep.subr.bf16.mxu0 0
    %3945 = vmatpush2.bf16.msra.mxu0 0
    %3946 = vmatprep.subr.bf16.mxu0 0
    %3947 = vmatpush2.bf16.msra.mxu0 0
    %3948 = vmatprep.subr.bf16.mxu0 0
    %3949 = vmatpush2.bf16.msra.mxu0 0
    %3950 = vmatprep.subr.bf16.mxu0 0
    %3951 = vmatpush2.bf16.msra.mxu0 0
    %3952 = vmatprep.mubr.bf16.mxu0 0
    %3953 = vmatmul.mubr.bf16.gmra.mxu0 %v3849
    %v3954 = vpop.f32.mrf.mxu0
    %v3955 = vadd.f32 %v3871, %v3954
    %v3956 = vpop.f32.mrf.mxu0
    %v3957 = vpop.f32.mrf.mxu0
    %v3958 = vadd.f32 %v3871, %v3957
    %v3959 = vpop.f32.mrf.mxu0
    %3960 = vmatprep.mubr.bf16.mxu0 0
    %3961 = vmatmul.mubr.bf16.gmra.mxu0 %v3850
    %v3962 = vpop.f32.mrf.mxu0
    %v3963 = vadd.f32 %v3871, %v3962
    %v3964 = vpop.f32.mrf.mxu0
    %v3965 = vpop.f32.mrf.mxu0
    %v3966 = vadd.f32 %v3871, %v3965
    %v3967 = vpop.f32.mrf.mxu0
    %3968 = vdwg.mxu0
    %v3969 = vmul.f32 %v3955, 0.5
    %v3970 = vmul.f32 %v3958, 0.5
    %v3971 = vmul.f32 %v3963, 0.5
    %v3972 = vmul.f32 %v3966, 0.5
    %v3973 = vmul.f32 %v3955, 0.70710677
    %v3974 = vmul.f32 %v3958, 0.70710677
    %v3975 = vmul.f32 %v3963, 0.70710677
    %v3976 = vmul.f32 %v3966, 0.70710677
    %v3977 = verf.f32.pop %v3973
    %v3978 = verf.f32.pop %v3974
    %v3979 = verf.f32.pop %v3975
    %v3980 = verf.f32.pop %v3976
    %v3981 = vadd.f32 %v3977, 1.0
    %v3982 = vadd.f32 %v3978, 1.0
    %v3983 = vadd.f32 %v3979, 1.0
    %v3984 = vadd.f32 %v3980, 1.0
    %v3985 = vmul.f32 %v3969, %v3981
    %v3986 = vmul.f32 %v3970, %v3982
    %v3987 = vmul.f32 %v3971, %v3983
    %v3988 = vmul.f32 %v3972, %v3984
    %v3989 = vpack.c.bf16 %v3986, %v3985
    %v3990 = vpack.c.bf16 %v3988, %v3987
    %v3991 = vld [vmem:[%s2 + $0x300] sm:$0xf]
    %v3992 = vld [vmem:[%s2 + $0x304] sm:$0xf]
    %v3993 = vld [vmem:[%s2 + $0x308] sm:$0xf]
    %v3994 = vld [vmem:[%s2 + $0x30c] sm:$0xf]
    %v3995 = vld [vmem:[%s2 + $0x310] sm:$0xf]
    %v3996 = vld [vmem:[%s2 + $0x314] sm:$0xf]
    %v3997 = vld [vmem:[%s2 + $0x318] sm:$0xf]
    %v3998 = vld [vmem:[%s2 + $0x31c] sm:$0xf]
    %v3999 = vld [vmem:[%s2 + $0x320] sm:$0xf]
    %v4000 = vld [vmem:[%s2 + $0x324] sm:$0xf]
    %v4001 = vld [vmem:[%s2 + $0x328] sm:$0xf]
    %v4002 = vld [vmem:[%s2 + $0x32c] sm:$0xf]
    %v4003 = vld [vmem:[%s2 + $0x330] sm:$0xf]
    %v4004 = vld [vmem:[%s2 + $0x334] sm:$0xf]
    %v4005 = vld [vmem:[%s2 + $0x338] sm:$0xf]
    %v4006 = vld [vmem:[%s2 + $0x33c] sm:$0xf]
    %v4007 = vld [vmem:[%s1 + $0x2c] sm:$0x1]
    %v4008 = vlaneseq
    %v4009 = vshrl.u32 %v4008, 7
    %v4010 = vsub.s32 0, %v4009
    %v4011 = vrot.slane %v4007, %v4010
    %v4028 = vunpack.c.l.b16 %v3991
    %v4029 = vunpack.c.l.b16 %v3992
    %v4030 = vunpack.c.l.b16 %v3993
    %v4031 = vunpack.c.l.b16 %v3994
    %v4032 = vunpack.c.l.b16 %v3995
    %v4033 = vunpack.c.l.b16 %v3996
    %v4034 = vunpack.c.l.b16 %v3997
    %v4035 = vunpack.c.l.b16 %v3998
    %v4036 = vunpack.c.l.b16 %v3999
    %v4037 = vunpack.c.l.b16 %v4000
    %v4038 = vunpack.c.l.b16 %v4001
    %v4039 = vunpack.c.l.b16 %v4002
    %v4040 = vunpack.c.l.b16 %v4003
    %v4041 = vunpack.c.l.b16 %v4004
    %v4042 = vunpack.c.l.b16 %v4005
    %v4043 = vunpack.c.l.b16 %v4006
    %v4044 = vpack.c.b16 %v4029, %v4028
    %v4045 = vpack.c.b16 %v4031, %v4030
    %v4046 = vpack.c.b16 %v4033, %v4032
    %v4047 = vpack.c.b16 %v4035, %v4034
    %v4048 = vpack.c.b16 %v4037, %v4036
    %v4049 = vpack.c.b16 %v4039, %v4038
    %v4050 = vpack.c.b16 %v4041, %v4040
    %v4051 = vpack.c.b16 %v4043, %v4042
    %4060 = vmatprep.subr.bf16.mxu0 0
    %4061 = vmatpush1.bf16.msra.mxu0 %v4051
    %4062 = vmatprep.subr.bf16.mxu0 0
    %4063 = vmatpush1.bf16.msra.mxu0 %v4050
    %4064 = vmatprep.subr.bf16.mxu0 0
    %4065 = vmatpush1.bf16.msra.mxu0 %v4049
    %4066 = vmatprep.subr.bf16.mxu0 0
    %4067 = vmatpush1.bf16.msra.mxu0 %v4048
    %4068 = vmatprep.subr.bf16.mxu0 0
    %4069 = vmatpush1.bf16.msra.mxu0 %v4047
    %4070 = vmatprep.subr.bf16.mxu0 0
    %4071 = vmatpush1.bf16.msra.mxu0 %v4046
    %4072 = vmatprep.subr.bf16.mxu0 0
    %4073 = vmatpush1.bf16.msra.mxu0 %v4045
    %4074 = vmatprep.subr.bf16.mxu0 0
    %4075 = vmatpush1.bf16.msra.mxu0 %v4044
    %4076 = vmatprep.subr.bf16.mxu0 0
    %4077 = vmatpush2.bf16.msra.mxu0 0
    %4078 = vmatprep.subr.bf16.mxu0 0
    %4079 = vmatpush2.bf16.msra.mxu0 0
    %4080 = vmatprep.subr.bf16.mxu0 0
    %4081 = vmatpush2.bf16.msra.mxu0 0
    %4082 = vmatprep.subr.bf16.mxu0 0
    %4083 = vmatpush2.bf16.msra.mxu0 0
    %4084 = vmatprep.subr.bf16.mxu0 0
    %4085 = vmatpush2.bf16.msra.mxu0 0
    %4086 = vmatprep.subr.bf16.mxu0 0
    %4087 = vmatpush2.bf16.msra.mxu0 0
    %4088 = vmatprep.subr.bf16.mxu0 0
    %4089 = vmatpush2.bf16.msra.mxu0 0
    %4090 = vmatprep.subr.bf16.mxu0 0
    %4091 = vmatpush2.bf16.msra.mxu0 0
    %4092 = vmatprep.mubr.bf16.mxu0 0
    %4093 = vmatmul.mubr.bf16.gmra.mxu0 %v3989
    %v4094 = vpop.f32.mrf.mxu0
    %v4095 = vadd.f32 %v4011, %v4094
    %v4096 = vpop.f32.mrf.mxu0
    %v4097 = vpop.f32.mrf.mxu0
    %v4098 = vadd.f32 %v4011, %v4097
    %v4099 = vpop.f32.mrf.mxu0
    %4100 = vmatprep.mubr.bf16.mxu0 0
    %4101 = vmatmul.mubr.bf16.gmra.mxu0 %v3990
    %v4102 = vpop.f32.mrf.mxu0
    %v4103 = vadd.f32 %v4011, %v4102
    %v4104 = vpop.f32.mrf.mxu0
    %v4105 = vpop.f32.mrf.mxu0
    %v4106 = vadd.f32 %v4011, %v4105
    %v4107 = vpop.f32.mrf.mxu0
    %4108 = vdwg.mxu0
    %v4109 = vadd.f32 %v3783, %v4095
    %v4110 = vadd.f32 %v3784, %v4098
    %v4111 = vadd.f32 %v3785, %v4103
    %v4112 = vadd.f32 %v3786, %v4106
    %v4113 = vadd.f32 %v4109, %v4110
    %v4114 = vrot.slane %v4113, 4
    %v4115 = vadd.f32 %v4113, %v4114
    %v4116 = vrot.slane %v4115, 2
    %v4117 = vadd.f32 %v4115, %v4116
    %v4118 = vrot.slane %v4117, 1
    %v4119 = vadd.f32 %v4117, %v4118
    %v4120 = vadd.f32 %v4111, %v4112
    %v4121 = vrot.slane %v4120, 4
    %v4122 = vadd.f32 %v4120, %v4121
    %v4123 = vrot.slane %v4122, 2
    %v4124 = vadd.f32 %v4122, %v4123
    %v4125 = vrot.slane %v4124, 1
    %v4126 = vadd.f32 %v4124, %v4125
    %v4127 = vmul.f32 %v4119, 0.0625
    %v4128 = vmul.f32 %v4126, 0.0625
    %v4129 = vld [vmem:[%s1 + $0x2d] sm:$0x1]
    %v4130 = vld [vmem:[%s1 + $0x2e] sm:$0x1]
    %vm4133 = vcmask 1041409
    %v4134 = vsel %vm4133, %v4128, %v4127
    %vm4136 = vcmask 1041408
    %v4137 = vsel %vm4136, %v4134, 0.0
    %4138 = vadd.xlane.f32.xlu0 %v4137
    %v4139 = vpop.xlane.xlu0 %4138
    %v4140 = vmul.f32 %v4139, %v158
    %v4142 = vrot.slane %v4140, 1
    %v4145 = vsub.f32 %v4127, %v4140
    %v4146 = vsub.f32 %v4128, %v4142
    %v4147 = vmul.f32 %v4145, %v4145
    %v4148 = vmul.f32 %v4146, %v4146
    %v4151 = vrot.slane %v4148, 7
    %v4152 = vsel %vm4133, %v4151, %v4147
    %v4154 = vsel %vm4136, %v4152, 0.0
    %4155 = vadd.xlane.f32.xlu0 %v4154
    %v4156 = vpop.xlane.xlu0 %4155
    %v4157 = vmul.f32 %v4156, %v158
    %v4158 = vadd.f32 %v4157, 1e-05
    %v4159 = vrsqrt.pop %v4158
    %v4161 = vrot.slane %v4159, 1
    %v4164 = vmul.f32 %v4145, %v4159
    %v4165 = vmul.f32 %v4146, %v4161
    %v4166 = vlaneseq
    %v4167 = vshrl.u32 %v4166, 7
    %v4168 = vsub.s32 0, %v4167
    %v4169 = vrot.slane %v4129, %v4168
    %v4170 = vmul.f32 %v4164, %v4169
    %v4171 = vmul.f32 %v4165, %v4169
    %v4172 = vlaneseq
    %v4173 = vshrl.u32 %v4172, 7
    %v4174 = vsub.s32 0, %v4173
    %v4175 = vrot.slane %v4130, %v4174
    %v4176 = vadd.f32 %v4170, %v4175
    %v4177 = vadd.f32 %v4171, %v4175
    %v4178 = vpack.c.bf16 %v4176, %v4176
    %v4179 = vpack.c.bf16 %v4177, %v4177
    %v4180 = vld [vmem:[%s2 + $0x340] sm:$0xf]
    %v4181 = vld [vmem:[%s2 + $0x344] sm:$0xf]
    %v4182 = vld [vmem:[%s2 + $0x348] sm:$0xf]
    %v4183 = vld [vmem:[%s2 + $0x34c] sm:$0xf]
    %v4184 = vld [vmem:[%s2 + $0x350] sm:$0xf]
    %v4185 = vld [vmem:[%s2 + $0x354] sm:$0xf]
    %v4186 = vld [vmem:[%s2 + $0x358] sm:$0xf]
    %v4187 = vld [vmem:[%s2 + $0x35c] sm:$0xf]
    %v4188 = vld [vmem:[%s2 + $0x360] sm:$0xf]
    %v4189 = vld [vmem:[%s2 + $0x364] sm:$0xf]
    %v4190 = vld [vmem:[%s2 + $0x368] sm:$0xf]
    %v4191 = vld [vmem:[%s2 + $0x36c] sm:$0xf]
    %v4192 = vld [vmem:[%s2 + $0x370] sm:$0xf]
    %v4193 = vld [vmem:[%s2 + $0x374] sm:$0xf]
    %v4194 = vld [vmem:[%s2 + $0x378] sm:$0xf]
    %v4195 = vld [vmem:[%s2 + $0x37c] sm:$0xf]
    %v4196 = vld [vmem:[%s1 + $0x2f] sm:$0x1]
    %v4197 = vlaneseq
    %v4198 = vshrl.u32 %v4197, 7
    %v4199 = vsub.s32 0, %v4198
    %v4200 = vrot.slane %v4196, %v4199
    %v4203 = vunpack.c.l.b16 %v4178
    %v4204 = vunpack.c.l.b16 %v4179
    %v4205 = vrot.slane %v4204, 7
    %v4206 = vsel %vm4133, %v4205, %v4203
    %v4207 = vpack.c.b16 %v4206, %v4206
    %v4225 = vunpack.c.l.b16 %v4180
    %v4226 = vunpack.c.l.b16 %v4181
    %v4227 = vunpack.c.l.b16 %v4182
    %v4228 = vunpack.c.l.b16 %v4183
    %v4229 = vunpack.c.l.b16 %v4184
    %v4230 = vunpack.c.l.b16 %v4185
    %v4231 = vunpack.c.l.b16 %v4186
    %v4232 = vunpack.c.l.b16 %v4187
    %v4233 = vunpack.c.l.b16 %v4188
    %v4234 = vunpack.c.l.b16 %v4189
    %v4235 = vunpack.c.l.b16 %v4190
    %v4236 = vunpack.c.l.b16 %v4191
    %v4237 = vunpack.c.l.b16 %v4192
    %v4238 = vunpack.c.l.b16 %v4193
    %v4239 = vunpack.c.l.b16 %v4194
    %v4240 = vunpack.c.l.b16 %v4195
    %v4241 = vpack.c.b16 %v4226, %v4225
    %v4242 = vpack.c.b16 %v4228, %v4227
    %v4243 = vpack.c.b16 %v4230, %v4229
    %v4244 = vpack.c.b16 %v4232, %v4231
    %v4245 = vpack.c.b16 %v4234, %v4233
    %v4246 = vpack.c.b16 %v4236, %v4235
    %v4247 = vpack.c.b16 %v4238, %v4237
    %v4248 = vpack.c.b16 %v4240, %v4239
    %4257 = vmatprep.subr.bf16.mxu0 0
    %4258 = vmatpush1.bf16.msra.mxu0 %v4248
    %4259 = vmatprep.subr.bf16.mxu0 0
    %4260 = vmatpush1.bf16.msra.mxu0 %v4247
    %4261 = vmatprep.subr.bf16.mxu0 0
    %4262 = vmatpush1.bf16.msra.mxu0 %v4246
    %4263 = vmatprep.subr.bf16.mxu0 0
    %4264 = vmatpush1.bf16.msra.mxu0 %v4245
    %4265 = vmatprep.subr.bf16.mxu0 0
    %4266 = vmatpush1.bf16.msra.mxu0 %v4244
    %4267 = vmatprep.subr.bf16.mxu0 0
    %4268 = vmatpush1.bf16.msra.mxu0 %v4243
    %4269 = vmatprep.subr.bf16.mxu0 0
    %4270 = vmatpush1.bf16.msra.mxu0 %v4242
    %4271 = vmatprep.subr.bf16.mxu0 0
    %4272 = vmatpush1.bf16.msra.mxu0 %v4241
    %4273 = vmatprep.subr.bf16.mxu0 0
    %4274 = vmatpush2.bf16.msra.mxu0 0
    %4275 = vmatprep.subr.bf16.mxu0 0
    %4276 = vmatpush2.bf16.msra.mxu0 0
    %4277 = vmatprep.subr.bf16.mxu0 0
    %4278 = vmatpush2.bf16.msra.mxu0 0
    %4279 = vmatprep.subr.bf16.mxu0 0
    %4280 = vmatpush2.bf16.msra.mxu0 0
    %4281 = vmatprep.subr.bf16.mxu0 0
    %4282 = vmatpush2.bf16.msra.mxu0 0
    %4283 = vmatprep.subr.bf16.mxu0 0
    %4284 = vmatpush2.bf16.msra.mxu0 0
    %4285 = vmatprep.subr.bf16.mxu0 0
    %4286 = vmatpush2.bf16.msra.mxu0 0
    %4287 = vmatprep.subr.bf16.mxu0 0
    %4288 = vmatpush2.bf16.msra.mxu0 0
    %4289 = vmatprep.mubr.bf16.mxu0 0
    %4290 = vmatmul.mubr.bf16.gmra.mxu0 %v4207
    %v4291 = vpop.f32.mrf.mxu0
    %v4292 = vadd.f32 %v4200, %v4291
    %v4293 = vpop.f32.mrf.mxu0
    %v4294 = vpop.f32.mrf.mxu0
    %v4295 = vpop.f32.mrf.mxu0
    %4296 = vdwg.mxu0
    %4297 = vst [vmem:[#allocation2] sm:$0x3] %v4292
    // Predicated region
    $region14: #{simple_vit_forward.1} parent=1 // pred_check
      _
    $region15: #{simple_vit_forward.1} parent=1 // pred_check_branch
      %4299 = sbr.rel (0) target = $region17
    $region16: #{simple_vit_forward.1} parent=1 // pred_region
      %s4301 = ssub.s32 32, 32
      %4302 = vsyncadd [#allocation3], %s4301
      %s4304 = sshll.u32 [#allocation2], 4
      %s4305 = int_to_ptr.vmem [resolvable:$true] %s4304
      %4307 = dma.vmem_to_hbm [thread:$0]  %s4305, 32, %s3, [#allocation3]
    $region17: #{simple_vit_forward.1} parent=1 // pred_fallthru
      _
    // Predicated region
    $region18: #{simple_vit_forward.1} parent=1 // pred_check
      _
    $region19: #{simple_vit_forward.1} parent=1 // pred_check_branch
      %4309 = sbr.rel (0) target = $region21
    $region20: #{simple_vit_forward.1} parent=1 // pred_region
      %4310 = dma.done [#allocation3], 32
    $region21: #{simple_vit_forward.1} parent=1 // pred_fallthru
      _
    %4311 = vsyncpa [#allocation3], 1

</llo_original>
